<compile_context>
chip_gen: v5e
topology: v5e:2x2
jax: 0.10.0
libtpu: 0.0.40
codegen_flags: <defaults>
</compile_context>

<pallas_src>
import jax
import jax.numpy as jnp
from jax.experimental import pallas as pl
from jax.experimental.pallas import tpu as pltpu

_EPS_BN = 1e-5
_EPS_LN = 1e-5


# ---------------------------------------------------------------------------
# The fused GLSA kernel (one grid step == one image).
# ---------------------------------------------------------------------------
def _make_glsa_kernel(E, H, W, P):
    HW = H * W

    def sigmoid(x):
        # Exact division kept for accuracy (EUP-slot approx reciprocal is
        # available via pl.reciprocal(..., approx=True) if tolerance allows).
        return 1.0 / (1.0 + jnp.exp(-x))

    def kernel(x_ref, w01_ref, b01_ref, pww_ref, pwb_ref, dwk_ref, dwb_ref,
               m_ref, mw_ref, mb_ref, cm1w_ref, cm1b_ref, lng_ref, lnb_ref,
               cm2w_ref, cm2b_ref, fwl_ref, fwg_ref, fb_ref, o_ref):
        f32 = jnp.float32
        x = x_ref[...]                                            # (C, HW)

        # local_11conv + global_11conv as one block-diagonal (2E,C) matmul.
        tt = jnp.dot(w01_ref[...], x, preferred_element_type=f32) + b01_ref[...]
        t0 = tt[:E, :]                                            # local input
        t1 = tt[E:, :]                                            # global input

        def pw(idx, v):
            # 1x1 conv (+ folded-BN bias) on the MXU.
            return (jnp.dot(pww_ref[idx], v, preferred_element_type=f32)
                    + pwb_ref[idx])

        def dw_res(idx, v):
            # depthwise 3x3 (pad=1) + folded-BN bias + ReLU + residual add.
            acc = dwk_ref[idx * 9 + 4] * v        # center tap: no shift/mask
            t = 0
            for dh in (-1, 0, 1):
                for dw in (-1, 0, 1):
                    if dh == 0 and dw == 0:
                        t += 1
                        continue
                    s = dh * W + dw
                    shifted = pltpu.roll(v, (-s) % HW, axis=1)
                    acc = acc + dwk_ref[idx * 9 + t] * (shifted * m_ref[t:t + 1, :])
                    t += 1
            return v + jnp.maximum(acc + dwb_ref[idx], 0.0)

        # ---- local branch: ConvBranch ----
        y = jnp.maximum(pw(0, t0), 0.0)           # conv1 + BN + ReLU
        y = dw_res(0, y)                          # conv2 (+ residual)
        y = jnp.maximum(pw(1, y), 0.0)            # conv3 + BN + ReLU
        y = dw_res(1, y)                          # conv4 (+ residual)
        y5 = pw(2, y)                             # conv5 + BN
        y = y5 * sigmoid(y5)                      # SiLU
        y = dw_res(2, y)                          # conv6 (+ residual)
        y7 = jnp.maximum(
            jnp.dot(pww_ref[3], y, preferred_element_type=f32), 0.0)  # conv7
        local = t0 * (1.0 + sigmoid(y7))          # spatial gate + residual

        # ---- global branch: ContextBlock ('att' pooling + channel_mul) ----
        ones_col = jnp.ones((HW, 1), f32)
        logits = (jnp.dot(mw_ref[...], t1, preferred_element_type=f32)
                  + mb_ref[...])                                    # (1, HW)
        lmax = jnp.max(logits, axis=-1, keepdims=True)
        pexp = jnp.exp(logits - lmax)
        p = pexp / jnp.sum(pexp, axis=-1, keepdims=True)            # softmax
        ctx = jnp.dot(t1 * p, ones_col, preferred_element_type=f32)  # (E, 1)

        v = (jnp.dot(cm1w_ref[...], ctx, preferred_element_type=f32)
             + cm1b_ref[...])                                       # (P, 1)
        mu = jnp.mean(v, axis=0, keepdims=True)
        var = jnp.mean((v - mu) ** 2, axis=0, keepdims=True)
        v = (v - mu) / jnp.sqrt(var + _EPS_LN) * lng_ref[...] + lnb_ref[...]
        v = jnp.maximum(v, 0.0)
        u = (jnp.dot(cm2w_ref[...], v, preferred_element_type=f32)
             + cm2b_ref[...])                                       # (E, 1)
        glob = t1 * (1.0 + sigmoid(u))                              # channel gate

        # ---- concat + conv1_1 (BasicConv2d 2E->E, BN folded, ReLU) ----
        out = jnp.dot(fwl_ref[...], local, preferred_element_type=f32)
        out = out + jnp.dot(fwg_ref[...], glob, preferred_element_type=f32)
        o_ref[...] = jnp.maximum(out + fb_ref[...], 0.0)

    return kernel


# ---------------------------------------------------------------------------
# GLSA forward (Pallas path): one pallas_call, grid=(batch,), "parallel".
# ---------------------------------------------------------------------------
@jax.jit
def glsa_forward(params, x):
    """x: [N, input_dim, H, W] (NCHW) -> [N, embed_dim, H, W]."""
    N, C, H, W = x.shape
    HW = H * W
    E = params["pw_w"].shape[1]
    P = params["cm1_w"].shape[0]
    xf = x.reshape(N, C, HW)                     # channel-major slab, no copy

    # Per-tap validity masks for the padded 3x3 depthwise convs.
    hh = jnp.arange(HW, dtype=jnp.int32) // W
    ww = jnp.arange(HW, dtype=jnp.int32) % W
    masks = []
    for dh in (-1, 0, 1):
        for dw in (-1, 0, 1):
            valid = ((hh + dh >= 0) & (hh + dh < H)
                     & (ww + dw >= 0) & (ww + dw < W))
            masks.append(valid.astype(jnp.float32))
    mask = jnp.stack(masks, axis=0)              # (9, HW)

    const2 = lambda n: (0, 0)
    const3 = lambda n: (0, 0, 0)
    out = pl.pallas_call(
        _make_glsa_kernel(E, H, W, P),
        out_shape=jax.ShapeDtypeStruct((N, E, HW), jnp.float32),
        grid_spec=pltpu.PrefetchScalarGridSpec(
            num_scalar_prefetch=0,
            grid=(N,),
            in_specs=[
                pl.BlockSpec((None, C, HW), lambda n: (n, 0, 0)),   # x slab
                pl.BlockSpec((2 * E, C), const2),                   # w01
                pl.BlockSpec((2 * E, 1), const2),                   # b01
                pl.BlockSpec((4, E, E), const3),                    # pw weights
                pl.BlockSpec((4, E, 1), const3),                    # pw biases
                pl.BlockSpec((27, E, 1), const3),                   # dw taps
                pl.BlockSpec((3, E, 1), const3),                    # dw biases
                pl.BlockSpec((9, HW), const2),                      # dw masks
                pl.BlockSpec((1, E), const2),                       # conv_mask w
                pl.BlockSpec((1, 1), const2),                       # conv_mask b
                pl.BlockSpec((P, E), const2),                       # cm1 w
                pl.BlockSpec((P, 1), const2),                       # cm1 b
                pl.BlockSpec((P, 1), const2),                       # LN gamma
                pl.BlockSpec((P, 1), const2),                       # LN beta
                pl.BlockSpec((E, P), const2),                       # cm2 w
                pl.BlockSpec((E, 1), const2),                       # cm2 b
                pl.BlockSpec((E, E), const2),                       # conv1_1 wl
                pl.BlockSpec((E, E), const2),                       # conv1_1 wg
                pl.BlockSpec((E, 1), const2),                       # conv1_1 b
            ],
            out_specs=pl.BlockSpec((None, E, HW), lambda n: (n, 0, 0)),
        ),
        compiler_params=pltpu.CompilerParams(
            dimension_semantics=("parallel",)),
    )(xf, params["w01"], params["b01"], params["pw_w"], params["pw_b"],
      params["dw_k"], params["dw_b"], mask, params["mask_w"], params["mask_b"],
      params["cm1_w"], params["cm1_b"], params["ln_g"], params["ln_b"],
      params["cm2_w"], params["cm2_b"], params["f_wl"], params["f_wg"],
      params["f_b"])
    return out.reshape(N, E, H, W)               # already NCHW, no transpose


# ---------------------------------------------------------------------------
# Parameters (deterministic synthetic values) + inference-BN folding.
# ---------------------------------------------------------------------------
def _init_raw_params(key, input_dim, embed_dim):
    E = embed_dim
    half = input_dim // 2
    P = 2 * E                      # ContextBlock planes = int(E * ratio=2)
    keys = iter(jax.random.split(key, 32))

    def uni(shape, fan_in):
        bound = 1.0 / float(fan_in) ** 0.5
        return jax.random.uniform(next(keys), shape, jnp.float32, -bound, bound)

    def bn_params():
        k1, k2, k3 = jax.random.split(next(keys), 3)
        gamma = 1.0 + 0.1 * jax.random.normal(k1, (E,), jnp.float32)
        beta = 0.05 * jax.random.normal(k2, (E,), jnp.float32)
        mean = 0.05 * jax.random.normal(k3, (E,), jnp.float32)
        var = jnp.linspace(0.8, 1.2, E, dtype=jnp.float32)
        return (gamma, beta, mean, var)

    raw = {
        # GLSA.local_11conv / global_11conv: plain 1x1 convs (with bias).
        "local11_w": uni((E, half), half), "local11_b": uni((E,), half),
        "glob11_w": uni((E, half), half), "glob11_b": uni((E,), half),
        # ConvBranch conv1..conv7 (1x1 bias=False; depthwise 3x3 groups=E).
        "c1_w": uni((E, E), E), "c1_bn": bn_params(),
        "c2_k": uni((E, 3, 3), 9), "c2_bn": bn_params(),
        "c3_w": uni((E, E), E), "c3_bn": bn_params(),
        "c4_k": uni((E, 3, 3), 9), "c4_bn": bn_params(),
        "c5_w": uni((E, E), E), "c5_bn": bn_params(),
        "c6_k": uni((E, 3, 3), 9), "c6_bn": bn_params(),
        "c7_w": uni((E, E), E),
        # ContextBlock.conv_mask (E -> 1, with bias).
        "mask_w": uni((1, E), E), "mask_b": uni((1,), E),
        # ContextBlock.channel_mul_conv: 1x1 (E->2E) + LayerNorm + ReLU + 1x1.
        "cm1_w": uni((P, E), E), "cm1_b": uni((P,), E),
        "ln_g": 1.0 + 0.1 * jax.random.normal(next(keys), (P,), jnp.float32),
        "ln_b": 0.05 * jax.random.normal(next(keys), (P,), jnp.float32),
        # NOTE: PyTorch zero-inits this last conv (last_zero_init); random
        # values are used here so the channel_mul path is actually exercised.
        "cm2_w": uni((E, P), P), "cm2_b": uni((E,), P),
        # GLSA.conv1_1: BasicConv2d(2E -> E, 1x1, bias=False) + BN + ReLU.
        "f_w": uni((E, 2 * E), 2 * E), "f_bn": bn_params(),
    }
    return raw


def _fold_params(raw):
    E = raw["c1_w"].shape[0]
    half = raw["local11_w"].shape[1]
    C = 2 * half
    P = raw["cm1_w"].shape[0]

    def fold_pw(w, bn):
        g, b, mu, var = bn
        s = g / jnp.sqrt(var + _EPS_BN)
        return w * s[:, None], b - mu * s

    def fold_dw(k, bn):
        g, b, mu, var = bn
        s = g / jnp.sqrt(var + _EPS_BN)
        return (k * s[:, None, None]).reshape(E, 9), b - mu * s

    c1_w, c1_b = fold_pw(raw["c1_w"], raw["c1_bn"])
    c3_w, c3_b = fold_pw(raw["c3_w"], raw["c3_bn"])
    c5_w, c5_b = fold_pw(raw["c5_w"], raw["c5_bn"])
    c2_k, c2_b = fold_dw(raw["c2_k"], raw["c2_bn"])
    c4_k, c4_b = fold_dw(raw["c4_k"], raw["c4_bn"])
    c6_k, c6_b = fold_dw(raw["c6_k"], raw["c6_bn"])
    f_w, f_b = fold_pw(raw["f_w"], raw["f_bn"])

    # Stacked local_11conv + global_11conv as one block-diagonal weight.
    w01 = jnp.zeros((2 * E, C), jnp.float32)
    w01 = w01.at[:E, :half].set(raw["local11_w"])
    w01 = w01.at[E:, half:].set(raw["glob11_w"])
    b01 = jnp.concatenate([raw["local11_b"], raw["glob11_b"]]).reshape(2 * E, 1)

    pw_w = jnp.stack([c1_w, c3_w, c5_w, raw["c7_w"]], axis=0)        # (4,E,E)
    pw_b = jnp.stack([c1_b, c3_b, c5_b,
                      jnp.zeros((E,), jnp.float32)], axis=0)[..., None]  # (4,E,1)
    dw_k = jnp.stack([c2_k, c4_k, c6_k], axis=0)                     # (3,E,9)
    dw_k = jnp.transpose(dw_k, (0, 2, 1)).reshape(27, E)[..., None]  # (27,E,1)
    dw_b = jnp.stack([c2_b, c4_b, c6_b], axis=0)[..., None]          # (3,E,1)

    return {
        "w01": w01, "b01": b01,
        "pw_w": pw_w, "pw_b": pw_b, "dw_k": dw_k, "dw_b": dw_b,
        "mask_w": raw["mask_w"].reshape(1, E),
        "mask_b": raw["mask_b"].reshape(1, 1),
        "cm1_w": raw["cm1_w"], "cm1_b": raw["cm1_b"].reshape(P, 1),
        "ln_g": raw["ln_g"].reshape(P, 1), "ln_b": raw["ln_b"].reshape(P, 1),
        "cm2_w": raw["cm2_w"], "cm2_b": raw["cm2_b"].reshape(E, 1),
        "f_wl": f_w[:, :E], "f_wg": f_w[:, E:], "f_b": f_b.reshape(E, 1),
    }


# ---------------------------------------------------------------------------
# Pure-JAX reference (independent path: lax.conv, unfolded BN) for checking.
# ---------------------------------------------------------------------------
def _conv1x1_ref(x, w, b=None):
    y = jax.lax.conv_general_dilated(
        x, w[:, :, None, None], window_strides=(1, 1), padding="VALID",
        dimension_numbers=("NCHW", "OIHW", "NCHW"),
        precision=jax.lax.Precision.HIGHEST)
    if b is not None:
        y = y + b[None, :, None, None]
    return y


def _dw3x3_ref(x, k):
    C = x.shape[1]
    return jax.lax.conv_general_dilated(
        x, k[:, None, :, :], window_strides=(1, 1), padding=((1, 1), (1, 1)),
        dimension_numbers=("NCHW", "OIHW", "NCHW"),
        feature_group_count=C, precision=jax.lax.Precision.HIGHEST)


def _bn_ref(x, bn):
    g, b, mu, var = bn
    s = g / jnp.sqrt(var + _EPS_BN)
    return x * s[None, :, None, None] + (b - mu * s)[None, :, None, None]


def _reference(raw, x):
    relu = lambda a: jnp.maximum(a, 0.0)
    sigmoid = jax.nn.sigmoid
    N, C, H, W = x.shape
    half = C // 2
    E = raw["c1_w"].shape[0]
    x0, x1 = x[:, :half], x[:, half:]

    # local branch
    t0 = _conv1x1_ref(x0, raw["local11_w"], raw["local11_b"])
    y = relu(_bn_ref(_conv1x1_ref(t0, raw["c1_w"]), raw["c1_bn"]))
    y = y + relu(_bn_ref(_dw3x3_ref(y, raw["c2_k"]), raw["c2_bn"]))
    y = relu(_bn_ref(_conv1x1_ref(y, raw["c3_w"]), raw["c3_bn"]))
    y = y + relu(_bn_ref(_dw3x3_ref(y, raw["c4_k"]), raw["c4_bn"]))
    y5 = _bn_ref(_conv1x1_ref(y, raw["c5_w"]), raw["c5_bn"])
    y = y5 * sigmoid(y5)
    y = y + relu(_bn_ref(_dw3x3_ref(y, raw["c6_k"]), raw["c6_bn"]))
    y = relu(_conv1x1_ref(y, raw["c7_w"]))
    local = t0 + t0 * sigmoid(y)

    # global branch
    t1 = _conv1x1_ref(x1, raw["glob11_w"], raw["glob11_b"])
    logits = _conv1x1_ref(t1, raw["mask_w"], raw["mask_b"])       # [N,1,H,W]
    p = jax.nn.softmax(logits.reshape(N, 1, H * W), axis=2)
    ctx = jnp.einsum("nek,nk->ne", t1.reshape(N, E, H * W), p[:, 0, :],
                     precision=jax.lax.Precision.HIGHEST)
    v = jnp.einsum("ne,pe->np", ctx, raw["cm1_w"],
                   precision=jax.lax.Precision.HIGHEST) + raw["cm1_b"]
    mu = jnp.mean(v, axis=-1, keepdims=True)
    var = jnp.mean((v - mu) ** 2, axis=-1, keepdims=True)
    v = (v - mu) / jnp.sqrt(var + _EPS_LN) * raw["ln_g"] + raw["ln_b"]
    v = relu(v)
    u = jnp.einsum("np,ep->ne", v, raw["cm2_w"],
                   precision=jax.lax.Precision.HIGHEST) + raw["cm2_b"]
    cm = sigmoid(u)
    glob = t1 + t1 * cm[:, :, None, None]

    cat = jnp.concatenate([local, glob], axis=1)
    out = relu(_bn_ref(_conv1x1_ref(cat, raw["f_w"]), raw["f_bn"]))
    return out


if __name__ == "__main__":
    key = jax.random.PRNGKey(0)
    k_param, k_x = jax.random.split(key)

    INPUT_DIM, EMBED_DIM = 96, 32        # scaled-down GLSA (defaults 512 / 32)
    N, H, W = 2, 16, 16

    x = jax.random.normal(k_x, (N, INPUT_DIM, H, W), dtype=jnp.float32)
    raw = _init_raw_params(k_param, INPUT_DIM, EMBED_DIM)
    params = _fold_params(raw)

    out = jax.block_until_ready(glsa_forward(params, x))
    ref = jax.block_until_ready(_reference(raw, x))

    assert out.shape == ref.shape == (N, EMBED_DIM, H, W)
    max_err = float(jnp.max(jnp.abs(out - ref)))
    assert max_err < 2e-3, f"mismatch vs reference: {max_err}"
    print("KERNEL_OK")
</pallas_src>

<mosaic_0001>
module attributes {stable_mosaic.version = 11 : i64} {
  func.func @kernel(%arg0: i32, %arg1: memref<1x96x256xf32, #tpu.memory_space<vmem>>, %arg2: memref<64x96xf32, #tpu.memory_space<vmem>>, %arg3: memref<64x1xf32, #tpu.memory_space<vmem>>, %arg4: memref<4x32x32xf32, #tpu.memory_space<vmem>>, %arg5: memref<4x32x1xf32, #tpu.memory_space<vmem>>, %arg6: memref<27x32x1xf32, #tpu.memory_space<vmem>>, %arg7: memref<3x32x1xf32, #tpu.memory_space<vmem>>, %arg8: memref<9x256xf32, #tpu.memory_space<vmem>>, %arg9: memref<1x32xf32, #tpu.memory_space<vmem>>, %arg10: memref<1x1xf32, #tpu.memory_space<vmem>>, %arg11: memref<64x32xf32, #tpu.memory_space<vmem>>, %arg12: memref<64x1xf32, #tpu.memory_space<vmem>>, %arg13: memref<64x1xf32, #tpu.memory_space<vmem>>, %arg14: memref<64x1xf32, #tpu.memory_space<vmem>>, %arg15: memref<32x64xf32, #tpu.memory_space<vmem>>, %arg16: memref<32x1xf32, #tpu.memory_space<vmem>>, %arg17: memref<32x32xf32, #tpu.memory_space<vmem>>, %arg18: memref<32x32xf32, #tpu.memory_space<vmem>>, %arg19: memref<32x1xf32, #tpu.memory_space<vmem>>, %arg20: memref<1x32x256xf32, #tpu.memory_space<vmem>>) attributes {dimension_semantics = [#tpu.dimension_semantics<parallel>], iteration_bounds = array<i64: 2>, scalar_prefetch = 0 : i64, scratch_operands = 0 : i64, tpu.core_type = #tpu.core_type<tc>, window_params = [{transform_indices = @transform_0, window_bounds = array<i64: 1, 96, 256>}, {pipeline_mode = #tpu.pipeline_mode<synchronous>, transform_indices = @transform_1, window_bounds = array<i64: 64, 96>}, {pipeline_mode = #tpu.pipeline_mode<synchronous>, transform_indices = @transform_2, window_bounds = array<i64: 64, 1>}, {pipeline_mode = #tpu.pipeline_mode<synchronous>, transform_indices = @transform_3, window_bounds = array<i64: 4, 32, 32>}, {pipeline_mode = #tpu.pipeline_mode<synchronous>, transform_indices = @transform_4, window_bounds = array<i64: 4, 32, 1>}, {pipeline_mode = #tpu.pipeline_mode<synchronous>, transform_indices = @transform_5, window_bounds = array<i64: 27, 32, 1>}, {pipeline_mode = #tpu.pipeline_mode<synchronous>, transform_indices = @transform_6, window_bounds = array<i64: 3, 32, 1>}, {pipeline_mode = #tpu.pipeline_mode<synchronous>, transform_indices = @transform_7, window_bounds = array<i64: 9, 256>}, {pipeline_mode = #tpu.pipeline_mode<synchronous>, transform_indices = @transform_8, window_bounds = array<i64: 1, 32>}, {pipeline_mode = #tpu.pipeline_mode<synchronous>, transform_indices = @transform_9, window_bounds = array<i64: 1, 1>}, {pipeline_mode = #tpu.pipeline_mode<synchronous>, transform_indices = @transform_10, window_bounds = array<i64: 64, 32>}, {pipeline_mode = #tpu.pipeline_mode<synchronous>, transform_indices = @transform_11, window_bounds = array<i64: 64, 1>}, {pipeline_mode = #tpu.pipeline_mode<synchronous>, transform_indices = @transform_12, window_bounds = array<i64: 64, 1>}, {pipeline_mode = #tpu.pipeline_mode<synchronous>, transform_indices = @transform_13, window_bounds = array<i64: 64, 1>}, {pipeline_mode = #tpu.pipeline_mode<synchronous>, transform_indices = @transform_14, window_bounds = array<i64: 32, 64>}, {pipeline_mode = #tpu.pipeline_mode<synchronous>, transform_indices = @transform_15, window_bounds = array<i64: 32, 1>}, {pipeline_mode = #tpu.pipeline_mode<synchronous>, transform_indices = @transform_16, window_bounds = array<i64: 32, 32>}, {pipeline_mode = #tpu.pipeline_mode<synchronous>, transform_indices = @transform_17, window_bounds = array<i64: 32, 32>}, {pipeline_mode = #tpu.pipeline_mode<synchronous>, transform_indices = @transform_18, window_bounds = array<i64: 32, 1>}, {transform_indices = @transform_19, window_bounds = array<i64: 1, 32, 256>}]} {
    %c0 = arith.constant 0 : index
    %c0_0 = arith.constant 0 : index
    %c0_1 = arith.constant 0 : index
    %0 = vector.load %arg1[%c0, %c0_0, %c0_1] : memref<1x96x256xf32, #tpu.memory_space<vmem>>, vector<1x96x256xf32>
    %1 = vector.shape_cast %0 : vector<1x96x256xf32> to vector<96x256xf32>
    %c0_2 = arith.constant 0 : index
    %c0_3 = arith.constant 0 : index
    %2 = vector.load %arg2[%c0_2, %c0_3] : memref<64x96xf32, #tpu.memory_space<vmem>>, vector<64x96xf32>
    %cst = arith.constant dense<0.000000e+00> : vector<64x256xf32>
    %3 = tpu.matmul %2, %1, %cst {dimension_numbers = #tpu.dot_dimension_numbers<[1], [0], [0], [1], [0, 0, 1, 1], [], []>} : vector<64x96xf32>, vector<96x256xf32>, vector<64x256xf32> -> vector<64x256xf32>
    %c0_4 = arith.constant 0 : index
    %c0_5 = arith.constant 0 : index
    %4 = vector.load %arg3[%c0_4, %c0_5] : memref<64x1xf32, #tpu.memory_space<vmem>>, vector<64x1xf32>
    %5 = vector.broadcast %4 : vector<64x1xf32> to vector<64x256xf32>
    %6 = arith.addf %3, %5 : vector<64x256xf32>
    %7 = vector.extract_strided_slice %6 {offsets = [0, 0], sizes = [32, 256], strides = [1, 1]} : vector<64x256xf32> to vector<32x256xf32>
    %8 = vector.extract_strided_slice %6 {offsets = [32, 0], sizes = [32, 256], strides = [1, 1]} : vector<64x256xf32> to vector<32x256xf32>
    %c0_6 = arith.constant 0 : index
    %c0_7 = arith.constant 0 : index
    %c0_8 = arith.constant 0 : index
    %9 = vector.load %arg4[%c0_6, %c0_7, %c0_8] : memref<4x32x32xf32, #tpu.memory_space<vmem>>, vector<1x32x32xf32>
    %10 = vector.shape_cast %9 : vector<1x32x32xf32> to vector<32x32xf32>
    %cst_9 = arith.constant dense<0.000000e+00> : vector<32x256xf32>
    %11 = tpu.matmul %10, %7, %cst_9 {dimension_numbers = #tpu.dot_dimension_numbers<[1], [0], [0], [1], [0, 0, 1, 1], [], []>} : vector<32x32xf32>, vector<32x256xf32>, vector<32x256xf32> -> vector<32x256xf32>
    %c0_10 = arith.constant 0 : index
    %c0_11 = arith.constant 0 : index
    %c0_12 = arith.constant 0 : index
    %12 = vector.load %arg5[%c0_10, %c0_11, %c0_12] : memref<4x32x1xf32, #tpu.memory_space<vmem>>, vector<1x32x1xf32>
    %13 = vector.shape_cast %12 : vector<1x32x1xf32> to vector<32x1xf32>
    %14 = vector.broadcast %13 : vector<32x1xf32> to vector<32x256xf32>
    %15 = arith.addf %11, %14 : vector<32x256xf32>
    %cst_13 = arith.constant 0.000000e+00 : f32
    %16 = vector.broadcast %cst_13 : f32 to vector<32x256xf32>
    %17 = arith.maximumf %15, %16 : vector<32x256xf32>
    %c4 = arith.constant 4 : index
    %c0_14 = arith.constant 0 : index
    %c0_15 = arith.constant 0 : index
    %18 = vector.load %arg6[%c4, %c0_14, %c0_15] : memref<27x32x1xf32, #tpu.memory_space<vmem>>, vector<1x32x1xf32>
    %19 = vector.shape_cast %18 : vector<1x32x1xf32> to vector<32x1xf32>
    %20 = vector.broadcast %19 : vector<32x1xf32> to vector<32x256xf32>
    %21 = arith.mulf %20, %17 : vector<32x256xf32>
    %c17_i32 = arith.constant 17 : i32
    %22 = tpu.dynamic_rotate %17 by %c17_i32 dim 1 : vector<32x256xf32>, i32 -> vector<32x256xf32>
    %c0_16 = arith.constant 0 : index
    %c0_17 = arith.constant 0 : index
    %c0_18 = arith.constant 0 : index
    %23 = vector.load %arg6[%c0_16, %c0_17, %c0_18] : memref<27x32x1xf32, #tpu.memory_space<vmem>>, vector<1x32x1xf32>
    %24 = vector.shape_cast %23 : vector<1x32x1xf32> to vector<32x1xf32>
    %c0_19 = arith.constant 0 : index
    %c0_20 = arith.constant 0 : index
    %25 = vector.load %arg8[%c0_19, %c0_20] : memref<9x256xf32, #tpu.memory_space<vmem>>, vector<1x256xf32>
    %26 = vector.broadcast %25 : vector<1x256xf32> to vector<32x256xf32>
    %27 = arith.mulf %22, %26 : vector<32x256xf32>
    %28 = vector.broadcast %24 : vector<32x1xf32> to vector<32x256xf32>
    %29 = arith.mulf %28, %27 : vector<32x256xf32>
    %30 = arith.addf %21, %29 : vector<32x256xf32>
    %c16_i32 = arith.constant 16 : i32
    %31 = tpu.dynamic_rotate %17 by %c16_i32 dim 1 : vector<32x256xf32>, i32 -> vector<32x256xf32>
    %c1 = arith.constant 1 : index
    %c0_21 = arith.constant 0 : index
    %c0_22 = arith.constant 0 : index
    %32 = vector.load %arg6[%c1, %c0_21, %c0_22] : memref<27x32x1xf32, #tpu.memory_space<vmem>>, vector<1x32x1xf32>
    %33 = vector.shape_cast %32 : vector<1x32x1xf32> to vector<32x1xf32>
    %c1_23 = arith.constant 1 : index
    %c0_24 = arith.constant 0 : index
    %34 = vector.load %arg8[%c1_23, %c0_24] : memref<9x256xf32, #tpu.memory_space<vmem>>, vector<1x256xf32>
    %35 = vector.broadcast %34 : vector<1x256xf32> to vector<32x256xf32>
    %36 = arith.mulf %31, %35 : vector<32x256xf32>
    %37 = vector.broadcast %33 : vector<32x1xf32> to vector<32x256xf32>
    %38 = arith.mulf %37, %36 : vector<32x256xf32>
    %39 = arith.addf %30, %38 : vector<32x256xf32>
    %c15_i32 = arith.constant 15 : i32
    %40 = tpu.dynamic_rotate %17 by %c15_i32 dim 1 : vector<32x256xf32>, i32 -> vector<32x256xf32>
    %c2 = arith.constant 2 : index
    %c0_25 = arith.constant 0 : index
    %c0_26 = arith.constant 0 : index
    %41 = vector.load %arg6[%c2, %c0_25, %c0_26] : memref<27x32x1xf32, #tpu.memory_space<vmem>>, vector<1x32x1xf32>
    %42 = vector.shape_cast %41 : vector<1x32x1xf32> to vector<32x1xf32>
    %c2_27 = arith.constant 2 : index
    %c0_28 = arith.constant 0 : index
    %43 = vector.load %arg8[%c2_27, %c0_28] : memref<9x256xf32, #tpu.memory_space<vmem>>, vector<1x256xf32>
    %44 = vector.broadcast %43 : vector<1x256xf32> to vector<32x256xf32>
    %45 = arith.mulf %40, %44 : vector<32x256xf32>
    %46 = vector.broadcast %42 : vector<32x1xf32> to vector<32x256xf32>
    %47 = arith.mulf %46, %45 : vector<32x256xf32>
    %48 = arith.addf %39, %47 : vector<32x256xf32>
    %c1_i32 = arith.constant 1 : i32
    %49 = tpu.dynamic_rotate %17 by %c1_i32 dim 1 : vector<32x256xf32>, i32 -> vector<32x256xf32>
    %c3 = arith.constant 3 : index
    %c0_29 = arith.constant 0 : index
    %c0_30 = arith.constant 0 : index
    %50 = vector.load %arg6[%c3, %c0_29, %c0_30] : memref<27x32x1xf32, #tpu.memory_space<vmem>>, vector<1x32x1xf32>
    %51 = vector.shape_cast %50 : vector<1x32x1xf32> to vector<32x1xf32>
    %c3_31 = arith.constant 3 : index
    %c0_32 = arith.constant 0 : index
    %52 = vector.load %arg8[%c3_31, %c0_32] : memref<9x256xf32, #tpu.memory_space<vmem>>, vector<1x256xf32>
    %53 = vector.broadcast %52 : vector<1x256xf32> to vector<32x256xf32>
    %54 = arith.mulf %49, %53 : vector<32x256xf32>
    %55 = vector.broadcast %51 : vector<32x1xf32> to vector<32x256xf32>
    %56 = arith.mulf %55, %54 : vector<32x256xf32>
    %57 = arith.addf %48, %56 : vector<32x256xf32>
    %c255_i32 = arith.constant 255 : i32
    %58 = tpu.dynamic_rotate %17 by %c255_i32 dim 1 : vector<32x256xf32>, i32 -> vector<32x256xf32>
    %c5 = arith.constant 5 : index
    %c0_33 = arith.constant 0 : index
    %c0_34 = arith.constant 0 : index
    %59 = vector.load %arg6[%c5, %c0_33, %c0_34] : memref<27x32x1xf32, #tpu.memory_space<vmem>>, vector<1x32x1xf32>
    %60 = vector.shape_cast %59 : vector<1x32x1xf32> to vector<32x1xf32>
    %c5_35 = arith.constant 5 : index
    %c0_36 = arith.constant 0 : index
    %61 = vector.load %arg8[%c5_35, %c0_36] : memref<9x256xf32, #tpu.memory_space<vmem>>, vector<1x256xf32>
    %62 = vector.broadcast %61 : vector<1x256xf32> to vector<32x256xf32>
    %63 = arith.mulf %58, %62 : vector<32x256xf32>
    %64 = vector.broadcast %60 : vector<32x1xf32> to vector<32x256xf32>
    %65 = arith.mulf %64, %63 : vector<32x256xf32>
    %66 = arith.addf %57, %65 : vector<32x256xf32>
    %c241_i32 = arith.constant 241 : i32
    %67 = tpu.dynamic_rotate %17 by %c241_i32 dim 1 : vector<32x256xf32>, i32 -> vector<32x256xf32>
    %c6 = arith.constant 6 : index
    %c0_37 = arith.constant 0 : index
    %c0_38 = arith.constant 0 : index
    %68 = vector.load %arg6[%c6, %c0_37, %c0_38] : memref<27x32x1xf32, #tpu.memory_space<vmem>>, vector<1x32x1xf32>
    %69 = vector.shape_cast %68 : vector<1x32x1xf32> to vector<32x1xf32>
    %c6_39 = arith.constant 6 : index
    %c0_40 = arith.constant 0 : index
    %70 = vector.load %arg8[%c6_39, %c0_40] : memref<9x256xf32, #tpu.memory_space<vmem>>, vector<1x256xf32>
    %71 = vector.broadcast %70 : vector<1x256xf32> to vector<32x256xf32>
    %72 = arith.mulf %67, %71 : vector<32x256xf32>
    %73 = vector.broadcast %69 : vector<32x1xf32> to vector<32x256xf32>
    %74 = arith.mulf %73, %72 : vector<32x256xf32>
    %75 = arith.addf %66, %74 : vector<32x256xf32>
    %c240_i32 = arith.constant 240 : i32
    %76 = tpu.dynamic_rotate %17 by %c240_i32 dim 1 : vector<32x256xf32>, i32 -> vector<32x256xf32>
    %c7 = arith.constant 7 : index
    %c0_41 = arith.constant 0 : index
    %c0_42 = arith.constant 0 : index
    %77 = vector.load %arg6[%c7, %c0_41, %c0_42] : memref<27x32x1xf32, #tpu.memory_space<vmem>>, vector<1x32x1xf32>
    %78 = vector.shape_cast %77 : vector<1x32x1xf32> to vector<32x1xf32>
    %c7_43 = arith.constant 7 : index
    %c0_44 = arith.constant 0 : index
    %79 = vector.load %arg8[%c7_43, %c0_44] : memref<9x256xf32, #tpu.memory_space<vmem>>, vector<1x256xf32>
    %80 = vector.broadcast %79 : vector<1x256xf32> to vector<32x256xf32>
    %81 = arith.mulf %76, %80 : vector<32x256xf32>
    %82 = vector.broadcast %78 : vector<32x1xf32> to vector<32x256xf32>
    %83 = arith.mulf %82, %81 : vector<32x256xf32>
    %84 = arith.addf %75, %83 : vector<32x256xf32>
    %c239_i32 = arith.constant 239 : i32
    %85 = tpu.dynamic_rotate %17 by %c239_i32 dim 1 : vector<32x256xf32>, i32 -> vector<32x256xf32>
    %c8 = arith.constant 8 : index
    %c0_45 = arith.constant 0 : index
    %c0_46 = arith.constant 0 : index
    %86 = vector.load %arg6[%c8, %c0_45, %c0_46] : memref<27x32x1xf32, #tpu.memory_space<vmem>>, vector<1x32x1xf32>
    %87 = vector.shape_cast %86 : vector<1x32x1xf32> to vector<32x1xf32>
    %c8_47 = arith.constant 8 : index
    %c0_48 = arith.constant 0 : index
    %88 = vector.load %arg8[%c8_47, %c0_48] : memref<9x256xf32, #tpu.memory_space<vmem>>, vector<1x256xf32>
    %89 = vector.broadcast %88 : vector<1x256xf32> to vector<32x256xf32>
    %90 = arith.mulf %85, %89 : vector<32x256xf32>
    %91 = vector.broadcast %87 : vector<32x1xf32> to vector<32x256xf32>
    %92 = arith.mulf %91, %90 : vector<32x256xf32>
    %93 = arith.addf %84, %92 : vector<32x256xf32>
    %c0_49 = arith.constant 0 : index
    %c0_50 = arith.constant 0 : index
    %c0_51 = arith.constant 0 : index
    %94 = vector.load %arg7[%c0_49, %c0_50, %c0_51] : memref<3x32x1xf32, #tpu.memory_space<vmem>>, vector<1x32x1xf32>
    %95 = vector.shape_cast %94 : vector<1x32x1xf32> to vector<32x1xf32>
    %96 = vector.broadcast %95 : vector<32x1xf32> to vector<32x256xf32>
    %97 = arith.addf %93, %96 : vector<32x256xf32>
    %cst_52 = arith.constant 0.000000e+00 : f32
    %98 = vector.broadcast %cst_52 : f32 to vector<32x256xf32>
    %99 = arith.maximumf %97, %98 : vector<32x256xf32>
    %100 = arith.addf %17, %99 : vector<32x256xf32>
    %c1_53 = arith.constant 1 : index
    %c0_54 = arith.constant 0 : index
    %c0_55 = arith.constant 0 : index
    %101 = vector.load %arg4[%c1_53, %c0_54, %c0_55] : memref<4x32x32xf32, #tpu.memory_space<vmem>>, vector<1x32x32xf32>
    %102 = vector.shape_cast %101 : vector<1x32x32xf32> to vector<32x32xf32>
    %cst_56 = arith.constant dense<0.000000e+00> : vector<32x256xf32>
    %103 = tpu.matmul %102, %100, %cst_56 {dimension_numbers = #tpu.dot_dimension_numbers<[1], [0], [0], [1], [0, 0, 1, 1], [], []>} : vector<32x32xf32>, vector<32x256xf32>, vector<32x256xf32> -> vector<32x256xf32>
    %c1_57 = arith.constant 1 : index
    %c0_58 = arith.constant 0 : index
    %c0_59 = arith.constant 0 : index
    %104 = vector.load %arg5[%c1_57, %c0_58, %c0_59] : memref<4x32x1xf32, #tpu.memory_space<vmem>>, vector<1x32x1xf32>
    %105 = vector.shape_cast %104 : vector<1x32x1xf32> to vector<32x1xf32>
    %106 = vector.broadcast %105 : vector<32x1xf32> to vector<32x256xf32>
    %107 = arith.addf %103, %106 : vector<32x256xf32>
    %cst_60 = arith.constant 0.000000e+00 : f32
    %108 = vector.broadcast %cst_60 : f32 to vector<32x256xf32>
    %109 = arith.maximumf %107, %108 : vector<32x256xf32>
    %c13 = arith.constant 13 : index
    %c0_61 = arith.constant 0 : index
    %c0_62 = arith.constant 0 : index
    %110 = vector.load %arg6[%c13, %c0_61, %c0_62] : memref<27x32x1xf32, #tpu.memory_space<vmem>>, vector<1x32x1xf32>
    %111 = vector.shape_cast %110 : vector<1x32x1xf32> to vector<32x1xf32>
    %112 = vector.broadcast %111 : vector<32x1xf32> to vector<32x256xf32>
    %113 = arith.mulf %112, %109 : vector<32x256xf32>
    %c17_i32_63 = arith.constant 17 : i32
    %114 = tpu.dynamic_rotate %109 by %c17_i32_63 dim 1 : vector<32x256xf32>, i32 -> vector<32x256xf32>
    %c9 = arith.constant 9 : index
    %c0_64 = arith.constant 0 : index
    %c0_65 = arith.constant 0 : index
    %115 = vector.load %arg6[%c9, %c0_64, %c0_65] : memref<27x32x1xf32, #tpu.memory_space<vmem>>, vector<1x32x1xf32>
    %116 = vector.shape_cast %115 : vector<1x32x1xf32> to vector<32x1xf32>
    %c0_66 = arith.constant 0 : index
    %c0_67 = arith.constant 0 : index
    %117 = vector.load %arg8[%c0_66, %c0_67] : memref<9x256xf32, #tpu.memory_space<vmem>>, vector<1x256xf32>
    %118 = vector.broadcast %117 : vector<1x256xf32> to vector<32x256xf32>
    %119 = arith.mulf %114, %118 : vector<32x256xf32>
    %120 = vector.broadcast %116 : vector<32x1xf32> to vector<32x256xf32>
    %121 = arith.mulf %120, %119 : vector<32x256xf32>
    %122 = arith.addf %113, %121 : vector<32x256xf32>
    %c16_i32_68 = arith.constant 16 : i32
    %123 = tpu.dynamic_rotate %109 by %c16_i32_68 dim 1 : vector<32x256xf32>, i32 -> vector<32x256xf32>
    %c10 = arith.constant 10 : index
    %c0_69 = arith.constant 0 : index
    %c0_70 = arith.constant 0 : index
    %124 = vector.load %arg6[%c10, %c0_69, %c0_70] : memref<27x32x1xf32, #tpu.memory_space<vmem>>, vector<1x32x1xf32>
    %125 = vector.shape_cast %124 : vector<1x32x1xf32> to vector<32x1xf32>
    %c1_71 = arith.constant 1 : index
    %c0_72 = arith.constant 0 : index
    %126 = vector.load %arg8[%c1_71, %c0_72] : memref<9x256xf32, #tpu.memory_space<vmem>>, vector<1x256xf32>
    %127 = vector.broadcast %126 : vector<1x256xf32> to vector<32x256xf32>
    %128 = arith.mulf %123, %127 : vector<32x256xf32>
    %129 = vector.broadcast %125 : vector<32x1xf32> to vector<32x256xf32>
    %130 = arith.mulf %129, %128 : vector<32x256xf32>
    %131 = arith.addf %122, %130 : vector<32x256xf32>
    %c15_i32_73 = arith.constant 15 : i32
    %132 = tpu.dynamic_rotate %109 by %c15_i32_73 dim 1 : vector<32x256xf32>, i32 -> vector<32x256xf32>
    %c11 = arith.constant 11 : index
    %c0_74 = arith.constant 0 : index
    %c0_75 = arith.constant 0 : index
    %133 = vector.load %arg6[%c11, %c0_74, %c0_75] : memref<27x32x1xf32, #tpu.memory_space<vmem>>, vector<1x32x1xf32>
    %134 = vector.shape_cast %133 : vector<1x32x1xf32> to vector<32x1xf32>
    %c2_76 = arith.constant 2 : index
    %c0_77 = arith.constant 0 : index
    %135 = vector.load %arg8[%c2_76, %c0_77] : memref<9x256xf32, #tpu.memory_space<vmem>>, vector<1x256xf32>
    %136 = vector.broadcast %135 : vector<1x256xf32> to vector<32x256xf32>
    %137 = arith.mulf %132, %136 : vector<32x256xf32>
    %138 = vector.broadcast %134 : vector<32x1xf32> to vector<32x256xf32>
    %139 = arith.mulf %138, %137 : vector<32x256xf32>
    %140 = arith.addf %131, %139 : vector<32x256xf32>
    %c1_i32_78 = arith.constant 1 : i32
    %141 = tpu.dynamic_rotate %109 by %c1_i32_78 dim 1 : vector<32x256xf32>, i32 -> vector<32x256xf32>
    %c12 = arith.constant 12 : index
    %c0_79 = arith.constant 0 : index
    %c0_80 = arith.constant 0 : index
    %142 = vector.load %arg6[%c12, %c0_79, %c0_80] : memref<27x32x1xf32, #tpu.memory_space<vmem>>, vector<1x32x1xf32>
    %143 = vector.shape_cast %142 : vector<1x32x1xf32> to vector<32x1xf32>
    %c3_81 = arith.constant 3 : index
    %c0_82 = arith.constant 0 : index
    %144 = vector.load %arg8[%c3_81, %c0_82] : memref<9x256xf32, #tpu.memory_space<vmem>>, vector<1x256xf32>
    %145 = vector.broadcast %144 : vector<1x256xf32> to vector<32x256xf32>
    %146 = arith.mulf %141, %145 : vector<32x256xf32>
    %147 = vector.broadcast %143 : vector<32x1xf32> to vector<32x256xf32>
    %148 = arith.mulf %147, %146 : vector<32x256xf32>
    %149 = arith.addf %140, %148 : vector<32x256xf32>
    %c255_i32_83 = arith.constant 255 : i32
    %150 = tpu.dynamic_rotate %109 by %c255_i32_83 dim 1 : vector<32x256xf32>, i32 -> vector<32x256xf32>
    %c14 = arith.constant 14 : index
    %c0_84 = arith.constant 0 : index
    %c0_85 = arith.constant 0 : index
    %151 = vector.load %arg6[%c14, %c0_84, %c0_85] : memref<27x32x1xf32, #tpu.memory_space<vmem>>, vector<1x32x1xf32>
    %152 = vector.shape_cast %151 : vector<1x32x1xf32> to vector<32x1xf32>
    %c5_86 = arith.constant 5 : index
    %c0_87 = arith.constant 0 : index
    %153 = vector.load %arg8[%c5_86, %c0_87] : memref<9x256xf32, #tpu.memory_space<vmem>>, vector<1x256xf32>
    %154 = vector.broadcast %153 : vector<1x256xf32> to vector<32x256xf32>
    %155 = arith.mulf %150, %154 : vector<32x256xf32>
    %156 = vector.broadcast %152 : vector<32x1xf32> to vector<32x256xf32>
    %157 = arith.mulf %156, %155 : vector<32x256xf32>
    %158 = arith.addf %149, %157 : vector<32x256xf32>
    %c241_i32_88 = arith.constant 241 : i32
    %159 = tpu.dynamic_rotate %109 by %c241_i32_88 dim 1 : vector<32x256xf32>, i32 -> vector<32x256xf32>
    %c15 = arith.constant 15 : index
    %c0_89 = arith.constant 0 : index
    %c0_90 = arith.constant 0 : index
    %160 = vector.load %arg6[%c15, %c0_89, %c0_90] : memref<27x32x1xf32, #tpu.memory_space<vmem>>, vector<1x32x1xf32>
    %161 = vector.shape_cast %160 : vector<1x32x1xf32> to vector<32x1xf32>
    %c6_91 = arith.constant 6 : index
    %c0_92 = arith.constant 0 : index
    %162 = vector.load %arg8[%c6_91, %c0_92] : memref<9x256xf32, #tpu.memory_space<vmem>>, vector<1x256xf32>
    %163 = vector.broadcast %162 : vector<1x256xf32> to vector<32x256xf32>
    %164 = arith.mulf %159, %163 : vector<32x256xf32>
    %165 = vector.broadcast %161 : vector<32x1xf32> to vector<32x256xf32>
    %166 = arith.mulf %165, %164 : vector<32x256xf32>
    %167 = arith.addf %158, %166 : vector<32x256xf32>
    %c240_i32_93 = arith.constant 240 : i32
    %168 = tpu.dynamic_rotate %109 by %c240_i32_93 dim 1 : vector<32x256xf32>, i32 -> vector<32x256xf32>
    %c16 = arith.constant 16 : index
    %c0_94 = arith.constant 0 : index
    %c0_95 = arith.constant 0 : index
    %169 = vector.load %arg6[%c16, %c0_94, %c0_95] : memref<27x32x1xf32, #tpu.memory_space<vmem>>, vector<1x32x1xf32>
    %170 = vector.shape_cast %169 : vector<1x32x1xf32> to vector<32x1xf32>
    %c7_96 = arith.constant 7 : index
    %c0_97 = arith.constant 0 : index
    %171 = vector.load %arg8[%c7_96, %c0_97] : memref<9x256xf32, #tpu.memory_space<vmem>>, vector<1x256xf32>
    %172 = vector.broadcast %171 : vector<1x256xf32> to vector<32x256xf32>
    %173 = arith.mulf %168, %172 : vector<32x256xf32>
    %174 = vector.broadcast %170 : vector<32x1xf32> to vector<32x256xf32>
    %175 = arith.mulf %174, %173 : vector<32x256xf32>
    %176 = arith.addf %167, %175 : vector<32x256xf32>
    %c239_i32_98 = arith.constant 239 : i32
    %177 = tpu.dynamic_rotate %109 by %c239_i32_98 dim 1 : vector<32x256xf32>, i32 -> vector<32x256xf32>
    %c17 = arith.constant 17 : index
    %c0_99 = arith.constant 0 : index
    %c0_100 = arith.constant 0 : index
    %178 = vector.load %arg6[%c17, %c0_99, %c0_100] : memref<27x32x1xf32, #tpu.memory_space<vmem>>, vector<1x32x1xf32>
    %179 = vector.shape_cast %178 : vector<1x32x1xf32> to vector<32x1xf32>
    %c8_101 = arith.constant 8 : index
    %c0_102 = arith.constant 0 : index
    %180 = vector.load %arg8[%c8_101, %c0_102] : memref<9x256xf32, #tpu.memory_space<vmem>>, vector<1x256xf32>
    %181 = vector.broadcast %180 : vector<1x256xf32> to vector<32x256xf32>
    %182 = arith.mulf %177, %181 : vector<32x256xf32>
    %183 = vector.broadcast %179 : vector<32x1xf32> to vector<32x256xf32>
    %184 = arith.mulf %183, %182 : vector<32x256xf32>
    %185 = arith.addf %176, %184 : vector<32x256xf32>
    %c1_103 = arith.constant 1 : index
    %c0_104 = arith.constant 0 : index
    %c0_105 = arith.constant 0 : index
    %186 = vector.load %arg7[%c1_103, %c0_104, %c0_105] : memref<3x32x1xf32, #tpu.memory_space<vmem>>, vector<1x32x1xf32>
    %187 = vector.shape_cast %186 : vector<1x32x1xf32> to vector<32x1xf32>
    %188 = vector.broadcast %187 : vector<32x1xf32> to vector<32x256xf32>
    %189 = arith.addf %185, %188 : vector<32x256xf32>
    %cst_106 = arith.constant 0.000000e+00 : f32
    %190 = vector.broadcast %cst_106 : f32 to vector<32x256xf32>
    %191 = arith.maximumf %189, %190 : vector<32x256xf32>
    %192 = arith.addf %109, %191 : vector<32x256xf32>
    %c2_107 = arith.constant 2 : index
    %c0_108 = arith.constant 0 : index
    %c0_109 = arith.constant 0 : index
    %193 = vector.load %arg4[%c2_107, %c0_108, %c0_109] : memref<4x32x32xf32, #tpu.memory_space<vmem>>, vector<1x32x32xf32>
    %194 = vector.shape_cast %193 : vector<1x32x32xf32> to vector<32x32xf32>
    %cst_110 = arith.constant dense<0.000000e+00> : vector<32x256xf32>
    %195 = tpu.matmul %194, %192, %cst_110 {dimension_numbers = #tpu.dot_dimension_numbers<[1], [0], [0], [1], [0, 0, 1, 1], [], []>} : vector<32x32xf32>, vector<32x256xf32>, vector<32x256xf32> -> vector<32x256xf32>
    %c2_111 = arith.constant 2 : index
    %c0_112 = arith.constant 0 : index
    %c0_113 = arith.constant 0 : index
    %196 = vector.load %arg5[%c2_111, %c0_112, %c0_113] : memref<4x32x1xf32, #tpu.memory_space<vmem>>, vector<1x32x1xf32>
    %197 = vector.shape_cast %196 : vector<1x32x1xf32> to vector<32x1xf32>
    %198 = vector.broadcast %197 : vector<32x1xf32> to vector<32x256xf32>
    %199 = arith.addf %195, %198 : vector<32x256xf32>
    %cst_114 = arith.constant 0.000000e+00 : f32
    %200 = vector.broadcast %cst_114 : f32 to vector<32x256xf32>
    %201 = arith.subf %200, %199 : vector<32x256xf32>
    %202 = math.exp %201 : vector<32x256xf32>
    %cst_115 = arith.constant 1.000000e+00 : f32
    %203 = vector.broadcast %cst_115 : f32 to vector<32x256xf32>
    %204 = arith.addf %203, %202 : vector<32x256xf32>
    %cst_116 = arith.constant 1.000000e+00 : f32
    %205 = vector.broadcast %cst_116 : f32 to vector<32x256xf32>
    %206 = arith.divf %205, %204 : vector<32x256xf32>
    %207 = arith.mulf %199, %206 : vector<32x256xf32>
    %c22 = arith.constant 22 : index
    %c0_117 = arith.constant 0 : index
    %c0_118 = arith.constant 0 : index
    %208 = vector.load %arg6[%c22, %c0_117, %c0_118] : memref<27x32x1xf32, #tpu.memory_space<vmem>>, vector<1x32x1xf32>
    %209 = vector.shape_cast %208 : vector<1x32x1xf32> to vector<32x1xf32>
    %210 = vector.broadcast %209 : vector<32x1xf32> to vector<32x256xf32>
    %211 = arith.mulf %210, %207 : vector<32x256xf32>
    %c17_i32_119 = arith.constant 17 : i32
    %212 = tpu.dynamic_rotate %207 by %c17_i32_119 dim 1 : vector<32x256xf32>, i32 -> vector<32x256xf32>
    %c18 = arith.constant 18 : index
    %c0_120 = arith.constant 0 : index
    %c0_121 = arith.constant 0 : index
    %213 = vector.load %arg6[%c18, %c0_120, %c0_121] : memref<27x32x1xf32, #tpu.memory_space<vmem>>, vector<1x32x1xf32>
    %214 = vector.shape_cast %213 : vector<1x32x1xf32> to vector<32x1xf32>
    %c0_122 = arith.constant 0 : index
    %c0_123 = arith.constant 0 : index
    %215 = vector.load %arg8[%c0_122, %c0_123] : memref<9x256xf32, #tpu.memory_space<vmem>>, vector<1x256xf32>
    %216 = vector.broadcast %215 : vector<1x256xf32> to vector<32x256xf32>
    %217 = arith.mulf %212, %216 : vector<32x256xf32>
    %218 = vector.broadcast %214 : vector<32x1xf32> to vector<32x256xf32>
    %219 = arith.mulf %218, %217 : vector<32x256xf32>
    %220 = arith.addf %211, %219 : vector<32x256xf32>
    %c16_i32_124 = arith.constant 16 : i32
    %221 = tpu.dynamic_rotate %207 by %c16_i32_124 dim 1 : vector<32x256xf32>, i32 -> vector<32x256xf32>
    %c19 = arith.constant 19 : index
    %c0_125 = arith.constant 0 : index
    %c0_126 = arith.constant 0 : index
    %222 = vector.load %arg6[%c19, %c0_125, %c0_126] : memref<27x32x1xf32, #tpu.memory_space<vmem>>, vector<1x32x1xf32>
    %223 = vector.shape_cast %222 : vector<1x32x1xf32> to vector<32x1xf32>
    %c1_127 = arith.constant 1 : index
    %c0_128 = arith.constant 0 : index
    %224 = vector.load %arg8[%c1_127, %c0_128] : memref<9x256xf32, #tpu.memory_space<vmem>>, vector<1x256xf32>
    %225 = vector.broadcast %224 : vector<1x256xf32> to vector<32x256xf32>
    %226 = arith.mulf %221, %225 : vector<32x256xf32>
    %227 = vector.broadcast %223 : vector<32x1xf32> to vector<32x256xf32>
    %228 = arith.mulf %227, %226 : vector<32x256xf32>
    %229 = arith.addf %220, %228 : vector<32x256xf32>
    %c15_i32_129 = arith.constant 15 : i32
    %230 = tpu.dynamic_rotate %207 by %c15_i32_129 dim 1 : vector<32x256xf32>, i32 -> vector<32x256xf32>
    %c20 = arith.constant 20 : index
    %c0_130 = arith.constant 0 : index
    %c0_131 = arith.constant 0 : index
    %231 = vector.load %arg6[%c20, %c0_130, %c0_131] : memref<27x32x1xf32, #tpu.memory_space<vmem>>, vector<1x32x1xf32>
    %232 = vector.shape_cast %231 : vector<1x32x1xf32> to vector<32x1xf32>
    %c2_132 = arith.constant 2 : index
    %c0_133 = arith.constant 0 : index
    %233 = vector.load %arg8[%c2_132, %c0_133] : memref<9x256xf32, #tpu.memory_space<vmem>>, vector<1x256xf32>
    %234 = vector.broadcast %233 : vector<1x256xf32> to vector<32x256xf32>
    %235 = arith.mulf %230, %234 : vector<32x256xf32>
    %236 = vector.broadcast %232 : vector<32x1xf32> to vector<32x256xf32>
    %237 = arith.mulf %236, %235 : vector<32x256xf32>
    %238 = arith.addf %229, %237 : vector<32x256xf32>
    %c1_i32_134 = arith.constant 1 : i32
    %239 = tpu.dynamic_rotate %207 by %c1_i32_134 dim 1 : vector<32x256xf32>, i32 -> vector<32x256xf32>
    %c21 = arith.constant 21 : index
    %c0_135 = arith.constant 0 : index
    %c0_136 = arith.constant 0 : index
    %240 = vector.load %arg6[%c21, %c0_135, %c0_136] : memref<27x32x1xf32, #tpu.memory_space<vmem>>, vector<1x32x1xf32>
    %241 = vector.shape_cast %240 : vector<1x32x1xf32> to vector<32x1xf32>
    %c3_137 = arith.constant 3 : index
    %c0_138 = arith.constant 0 : index
    %242 = vector.load %arg8[%c3_137, %c0_138] : memref<9x256xf32, #tpu.memory_space<vmem>>, vector<1x256xf32>
    %243 = vector.broadcast %242 : vector<1x256xf32> to vector<32x256xf32>
    %244 = arith.mulf %239, %243 : vector<32x256xf32>
    %245 = vector.broadcast %241 : vector<32x1xf32> to vector<32x256xf32>
    %246 = arith.mulf %245, %244 : vector<32x256xf32>
    %247 = arith.addf %238, %246 : vector<32x256xf32>
    %c255_i32_139 = arith.constant 255 : i32
    %248 = tpu.dynamic_rotate %207 by %c255_i32_139 dim 1 : vector<32x256xf32>, i32 -> vector<32x256xf32>
    %c23 = arith.constant 23 : index
    %c0_140 = arith.constant 0 : index
    %c0_141 = arith.constant 0 : index
    %249 = vector.load %arg6[%c23, %c0_140, %c0_141] : memref<27x32x1xf32, #tpu.memory_space<vmem>>, vector<1x32x1xf32>
    %250 = vector.shape_cast %249 : vector<1x32x1xf32> to vector<32x1xf32>
    %c5_142 = arith.constant 5 : index
    %c0_143 = arith.constant 0 : index
    %251 = vector.load %arg8[%c5_142, %c0_143] : memref<9x256xf32, #tpu.memory_space<vmem>>, vector<1x256xf32>
    %252 = vector.broadcast %251 : vector<1x256xf32> to vector<32x256xf32>
    %253 = arith.mulf %248, %252 : vector<32x256xf32>
    %254 = vector.broadcast %250 : vector<32x1xf32> to vector<32x256xf32>
    %255 = arith.mulf %254, %253 : vector<32x256xf32>
    %256 = arith.addf %247, %255 : vector<32x256xf32>
    %c241_i32_144 = arith.constant 241 : i32
    %257 = tpu.dynamic_rotate %207 by %c241_i32_144 dim 1 : vector<32x256xf32>, i32 -> vector<32x256xf32>
    %c24 = arith.constant 24 : index
    %c0_145 = arith.constant 0 : index
    %c0_146 = arith.constant 0 : index
    %258 = vector.load %arg6[%c24, %c0_145, %c0_146] : memref<27x32x1xf32, #tpu.memory_space<vmem>>, vector<1x32x1xf32>
    %259 = vector.shape_cast %258 : vector<1x32x1xf32> to vector<32x1xf32>
    %c6_147 = arith.constant 6 : index
    %c0_148 = arith.constant 0 : index
    %260 = vector.load %arg8[%c6_147, %c0_148] : memref<9x256xf32, #tpu.memory_space<vmem>>, vector<1x256xf32>
    %261 = vector.broadcast %260 : vector<1x256xf32> to vector<32x256xf32>
    %262 = arith.mulf %257, %261 : vector<32x256xf32>
    %263 = vector.broadcast %259 : vector<32x1xf32> to vector<32x256xf32>
    %264 = arith.mulf %263, %262 : vector<32x256xf32>
    %265 = arith.addf %256, %264 : vector<32x256xf32>
    %c240_i32_149 = arith.constant 240 : i32
    %266 = tpu.dynamic_rotate %207 by %c240_i32_149 dim 1 : vector<32x256xf32>, i32 -> vector<32x256xf32>
    %c25 = arith.constant 25 : index
    %c0_150 = arith.constant 0 : index
    %c0_151 = arith.constant 0 : index
    %267 = vector.load %arg6[%c25, %c0_150, %c0_151] : memref<27x32x1xf32, #tpu.memory_space<vmem>>, vector<1x32x1xf32>
    %268 = vector.shape_cast %267 : vector<1x32x1xf32> to vector<32x1xf32>
    %c7_152 = arith.constant 7 : index
    %c0_153 = arith.constant 0 : index
    %269 = vector.load %arg8[%c7_152, %c0_153] : memref<9x256xf32, #tpu.memory_space<vmem>>, vector<1x256xf32>
    %270 = vector.broadcast %269 : vector<1x256xf32> to vector<32x256xf32>
    %271 = arith.mulf %266, %270 : vector<32x256xf32>
    %272 = vector.broadcast %268 : vector<32x1xf32> to vector<32x256xf32>
    %273 = arith.mulf %272, %271 : vector<32x256xf32>
    %274 = arith.addf %265, %273 : vector<32x256xf32>
    %c239_i32_154 = arith.constant 239 : i32
    %275 = tpu.dynamic_rotate %207 by %c239_i32_154 dim 1 : vector<32x256xf32>, i32 -> vector<32x256xf32>
    %c26 = arith.constant 26 : index
    %c0_155 = arith.constant 0 : index
    %c0_156 = arith.constant 0 : index
    %276 = vector.load %arg6[%c26, %c0_155, %c0_156] : memref<27x32x1xf32, #tpu.memory_space<vmem>>, vector<1x32x1xf32>
    %277 = vector.shape_cast %276 : vector<1x32x1xf32> to vector<32x1xf32>
    %c8_157 = arith.constant 8 : index
    %c0_158 = arith.constant 0 : index
    %278 = vector.load %arg8[%c8_157, %c0_158] : memref<9x256xf32, #tpu.memory_space<vmem>>, vector<1x256xf32>
    %279 = vector.broadcast %278 : vector<1x256xf32> to vector<32x256xf32>
    %280 = arith.mulf %275, %279 : vector<32x256xf32>
    %281 = vector.broadcast %277 : vector<32x1xf32> to vector<32x256xf32>
    %282 = arith.mulf %281, %280 : vector<32x256xf32>
    %283 = arith.addf %274, %282 : vector<32x256xf32>
    %c2_159 = arith.constant 2 : index
    %c0_160 = arith.constant 0 : index
    %c0_161 = arith.constant 0 : index
    %284 = vector.load %arg7[%c2_159, %c0_160, %c0_161] : memref<3x32x1xf32, #tpu.memory_space<vmem>>, vector<1x32x1xf32>
    %285 = vector.shape_cast %284 : vector<1x32x1xf32> to vector<32x1xf32>
    %286 = vector.broadcast %285 : vector<32x1xf32> to vector<32x256xf32>
    %287 = arith.addf %283, %286 : vector<32x256xf32>
    %cst_162 = arith.constant 0.000000e+00 : f32
    %288 = vector.broadcast %cst_162 : f32 to vector<32x256xf32>
    %289 = arith.maximumf %287, %288 : vector<32x256xf32>
    %290 = arith.addf %207, %289 : vector<32x256xf32>
    %c3_163 = arith.constant 3 : index
    %c0_164 = arith.constant 0 : index
    %c0_165 = arith.constant 0 : index
    %291 = vector.load %arg4[%c3_163, %c0_164, %c0_165] : memref<4x32x32xf32, #tpu.memory_space<vmem>>, vector<1x32x32xf32>
    %292 = vector.shape_cast %291 : vector<1x32x32xf32> to vector<32x32xf32>
    %cst_166 = arith.constant dense<0.000000e+00> : vector<32x256xf32>
    %293 = tpu.matmul %292, %290, %cst_166 {dimension_numbers = #tpu.dot_dimension_numbers<[1], [0], [0], [1], [0, 0, 1, 1], [], []>} : vector<32x32xf32>, vector<32x256xf32>, vector<32x256xf32> -> vector<32x256xf32>
    %cst_167 = arith.constant 0.000000e+00 : f32
    %294 = vector.broadcast %cst_167 : f32 to vector<32x256xf32>
    %295 = arith.maximumf %293, %294 : vector<32x256xf32>
    %cst_168 = arith.constant 0.000000e+00 : f32
    %296 = vector.broadcast %cst_168 : f32 to vector<32x256xf32>
    %297 = arith.subf %296, %295 : vector<32x256xf32>
    %298 = math.exp %297 : vector<32x256xf32>
    %cst_169 = arith.constant 1.000000e+00 : f32
    %299 = vector.broadcast %cst_169 : f32 to vector<32x256xf32>
    %300 = arith.addf %299, %298 : vector<32x256xf32>
    %cst_170 = arith.constant 1.000000e+00 : f32
    %301 = vector.broadcast %cst_170 : f32 to vector<32x256xf32>
    %302 = arith.divf %301, %300 : vector<32x256xf32>
    %cst_171 = arith.constant 1.000000e+00 : f32
    %303 = vector.broadcast %cst_171 : f32 to vector<32x256xf32>
    %304 = arith.addf %303, %302 : vector<32x256xf32>
    %305 = arith.mulf %7, %304 : vector<32x256xf32>
    %cst_172 = arith.constant 1.000000e+00 : f32
    %306 = vector.broadcast %cst_172 : f32 to vector<256x1xf32>
    %c0_173 = arith.constant 0 : index
    %c0_174 = arith.constant 0 : index
    %307 = vector.load %arg9[%c0_173, %c0_174] : memref<1x32xf32, #tpu.memory_space<vmem>>, vector<1x32xf32>
    %cst_175 = arith.constant dense<0.000000e+00> : vector<1x256xf32>
    %308 = tpu.matmul %307, %8, %cst_175 {dimension_numbers = #tpu.dot_dimension_numbers<[1], [0], [0], [1], [0, 0, 1, 1], [], []>} : vector<1x32xf32>, vector<32x256xf32>, vector<1x256xf32> -> vector<1x256xf32>
    %c0_176 = arith.constant 0 : index
    %c0_177 = arith.constant 0 : index
    %309 = vector.load %arg10[%c0_176, %c0_177] : memref<1x1xf32, #tpu.memory_space<vmem>>, vector<1x1xf32>
    %310 = vector.broadcast %309 : vector<1x1xf32> to vector<1x256xf32>
    %311 = arith.addf %308, %310 : vector<1x256xf32>
    %cst_178 = arith.constant dense<0xFF800000> : vector<1xf32>
    %312 = vector.multi_reduction <maximumf>, %311, %cst_178 [1] : vector<1x256xf32> to vector<1xf32>
    %313 = vector.shape_cast %312 : vector<1xf32> to vector<1x1xf32>
    %314 = vector.broadcast %313 : vector<1x1xf32> to vector<1x256xf32>
    %315 = arith.subf %311, %314 : vector<1x256xf32>
    %316 = math.exp %315 : vector<1x256xf32>
    %cst_179 = arith.constant dense<0.000000e+00> : vector<1xf32>
    %317 = vector.multi_reduction <add>, %316, %cst_179 [1] : vector<1x256xf32> to vector<1xf32>
    %318 = vector.shape_cast %317 : vector<1xf32> to vector<1x1xf32>
    %319 = vector.broadcast %318 : vector<1x1xf32> to vector<1x256xf32>
    %320 = arith.divf %316, %319 : vector<1x256xf32>
    %321 = vector.broadcast %320 : vector<1x256xf32> to vector<32x256xf32>
    %322 = arith.mulf %8, %321 : vector<32x256xf32>
    %cst_180 = arith.constant dense<0.000000e+00> : vector<32x1xf32>
    %323 = tpu.matmul %322, %306, %cst_180 {dimension_numbers = #tpu.dot_dimension_numbers<[1], [0], [0], [1], [0, 0, 1, 1], [], []>} : vector<32x256xf32>, vector<256x1xf32>, vector<32x1xf32> -> vector<32x1xf32>
    %c0_181 = arith.constant 0 : index
    %c0_182 = arith.constant 0 : index
    %324 = vector.load %arg11[%c0_181, %c0_182] : memref<64x32xf32, #tpu.memory_space<vmem>>, vector<64x32xf32>
    %cst_183 = arith.constant dense<0.000000e+00> : vector<64x1xf32>
    %325 = tpu.matmul %324, %323, %cst_183 {dimension_numbers = #tpu.dot_dimension_numbers<[1], [0], [0], [1], [0, 0, 1, 1], [], []>} : vector<64x32xf32>, vector<32x1xf32>, vector<64x1xf32> -> vector<64x1xf32>
    %c0_184 = arith.constant 0 : index
    %c0_185 = arith.constant 0 : index
    %326 = vector.load %arg12[%c0_184, %c0_185] : memref<64x1xf32, #tpu.memory_space<vmem>>, vector<64x1xf32>
    %327 = arith.addf %325, %326 : vector<64x1xf32>
    %cst_186 = arith.constant dense<0.000000e+00> : vector<1xf32>
    %328 = vector.multi_reduction <add>, %327, %cst_186 [0] : vector<64x1xf32> to vector<1xf32>
    %329 = vector.shape_cast %328 : vector<1xf32> to vector<1x1xf32>
    %cst_187 = arith.constant 6.400000e+01 : f32
    %330 = vector.broadcast %cst_187 : f32 to vector<1x1xf32>
    %331 = arith.divf %329, %330 : vector<1x1xf32>
    %332 = vector.broadcast %331 : vector<1x1xf32> to vector<64x1xf32>
    %333 = arith.subf %327, %332 : vector<64x1xf32>
    %334 = arith.mulf %333, %333 : vector<64x1xf32>
    %cst_188 = arith.constant dense<0.000000e+00> : vector<1xf32>
    %335 = vector.multi_reduction <add>, %334, %cst_188 [0] : vector<64x1xf32> to vector<1xf32>
    %336 = vector.shape_cast %335 : vector<1xf32> to vector<1x1xf32>
    %cst_189 = arith.constant 6.400000e+01 : f32
    %337 = vector.broadcast %cst_189 : f32 to vector<1x1xf32>
    %338 = arith.divf %336, %337 : vector<1x1xf32>
    %339 = vector.broadcast %331 : vector<1x1xf32> to vector<64x1xf32>
    %340 = arith.subf %327, %339 : vector<64x1xf32>
    %cst_190 = arith.constant 9.99999974E-6 : f32
    %341 = vector.broadcast %cst_190 : f32 to vector<1x1xf32>
    %342 = arith.addf %338, %341 : vector<1x1xf32>
    %343 = math.sqrt %342 : vector<1x1xf32>
    %344 = vector.broadcast %343 : vector<1x1xf32> to vector<64x1xf32>
    %345 = arith.divf %340, %344 : vector<64x1xf32>
    %c0_191 = arith.constant 0 : index
    %c0_192 = arith.constant 0 : index
    %346 = vector.load %arg13[%c0_191, %c0_192] : memref<64x1xf32, #tpu.memory_space<vmem>>, vector<64x1xf32>
    %347 = arith.mulf %345, %346 : vector<64x1xf32>
    %c0_193 = arith.constant 0 : index
    %c0_194 = arith.constant 0 : index
    %348 = vector.load %arg14[%c0_193, %c0_194] : memref<64x1xf32, #tpu.memory_space<vmem>>, vector<64x1xf32>
    %349 = arith.addf %347, %348 : vector<64x1xf32>
    %cst_195 = arith.constant 0.000000e+00 : f32
    %350 = vector.broadcast %cst_195 : f32 to vector<64x1xf32>
    %351 = arith.maximumf %349, %350 : vector<64x1xf32>
    %c0_196 = arith.constant 0 : index
    %c0_197 = arith.constant 0 : index
    %352 = vector.load %arg15[%c0_196, %c0_197] : memref<32x64xf32, #tpu.memory_space<vmem>>, vector<32x64xf32>
    %cst_198 = arith.constant dense<0.000000e+00> : vector<32x1xf32>
    %353 = tpu.matmul %352, %351, %cst_198 {dimension_numbers = #tpu.dot_dimension_numbers<[1], [0], [0], [1], [0, 0, 1, 1], [], []>} : vector<32x64xf32>, vector<64x1xf32>, vector<32x1xf32> -> vector<32x1xf32>
    %c0_199 = arith.constant 0 : index
    %c0_200 = arith.constant 0 : index
    %354 = vector.load %arg16[%c0_199, %c0_200] : memref<32x1xf32, #tpu.memory_space<vmem>>, vector<32x1xf32>
    %355 = arith.addf %353, %354 : vector<32x1xf32>
    %cst_201 = arith.constant 0.000000e+00 : f32
    %356 = vector.broadcast %cst_201 : f32 to vector<32x1xf32>
    %357 = arith.subf %356, %355 : vector<32x1xf32>
    %358 = math.exp %357 : vector<32x1xf32>
    %cst_202 = arith.constant 1.000000e+00 : f32
    %359 = vector.broadcast %cst_202 : f32 to vector<32x1xf32>
    %360 = arith.addf %359, %358 : vector<32x1xf32>
    %cst_203 = arith.constant 1.000000e+00 : f32
    %361 = vector.broadcast %cst_203 : f32 to vector<32x1xf32>
    %362 = arith.divf %361, %360 : vector<32x1xf32>
    %cst_204 = arith.constant 1.000000e+00 : f32
    %363 = vector.broadcast %cst_204 : f32 to vector<32x1xf32>
    %364 = arith.addf %363, %362 : vector<32x1xf32>
    %365 = vector.broadcast %364 : vector<32x1xf32> to vector<32x256xf32>
    %366 = arith.mulf %8, %365 : vector<32x256xf32>
    %c0_205 = arith.constant 0 : index
    %c0_206 = arith.constant 0 : index
    %367 = vector.load %arg17[%c0_205, %c0_206] : memref<32x32xf32, #tpu.memory_space<vmem>>, vector<32x32xf32>
    %cst_207 = arith.constant dense<0.000000e+00> : vector<32x256xf32>
    %368 = tpu.matmul %367, %305, %cst_207 {dimension_numbers = #tpu.dot_dimension_numbers<[1], [0], [0], [1], [0, 0, 1, 1], [], []>} : vector<32x32xf32>, vector<32x256xf32>, vector<32x256xf32> -> vector<32x256xf32>
    %c0_208 = arith.constant 0 : index
    %c0_209 = arith.constant 0 : index
    %369 = vector.load %arg18[%c0_208, %c0_209] : memref<32x32xf32, #tpu.memory_space<vmem>>, vector<32x32xf32>
    %cst_210 = arith.constant dense<0.000000e+00> : vector<32x256xf32>
    %370 = tpu.matmul %369, %366, %cst_210 {dimension_numbers = #tpu.dot_dimension_numbers<[1], [0], [0], [1], [0, 0, 1, 1], [], []>} : vector<32x32xf32>, vector<32x256xf32>, vector<32x256xf32> -> vector<32x256xf32>
    %371 = arith.addf %368, %370 : vector<32x256xf32>
    %c0_211 = arith.constant 0 : index
    %c0_212 = arith.constant 0 : index
    %372 = vector.load %arg19[%c0_211, %c0_212] : memref<32x1xf32, #tpu.memory_space<vmem>>, vector<32x1xf32>
    %373 = vector.broadcast %372 : vector<32x1xf32> to vector<32x256xf32>
    %374 = arith.addf %371, %373 : vector<32x256xf32>
    %cst_213 = arith.constant 0.000000e+00 : f32
    %375 = vector.broadcast %cst_213 : f32 to vector<32x256xf32>
    %376 = arith.maximumf %374, %375 : vector<32x256xf32>
    %c0_214 = arith.constant 0 : index
    %c0_215 = arith.constant 0 : index
    %c0_216 = arith.constant 0 : index
    %377 = vector.load %arg20[%c0_214, %c0_215, %c0_216] : memref<1x32x256xf32, #tpu.memory_space<vmem>>, vector<1x32x256xf32>
    %378 = vector.shape_cast %377 : vector<1x32x256xf32> to vector<32x256xf32>
    %379 = vector.shape_cast %376 : vector<32x256xf32> to vector<1x32x256xf32>
    tpu.vector_store %arg20[%c0_214, %c0_215, %c0_216], %379 {strides = array<i32>} : memref<1x32x256xf32, #tpu.memory_space<vmem>>, vector<1x32x256xf32>,
    return
  }
  func.func @transform_0(%arg0: i32) -> (i32, i32, i32) {
    %c0_i32 = arith.constant 0 : i32
    %c0_i32_0 = arith.constant 0 : i32
    %c0_i32_1 = arith.constant 0 : i32
    return %arg0, %c0_i32, %c0_i32_0 : i32, i32, i32
  }
  func.func @transform_1(%arg0: i32) -> (i32, i32) {
    %c0_i32 = arith.constant 0 : i32
    %c0_i32_0 = arith.constant 0 : i32
    %c0_i32_1 = arith.constant 0 : i32
    return %c0_i32, %c0_i32_0 : i32, i32
  }
  func.func @transform_2(%arg0: i32) -> (i32, i32) {
    %c0_i32 = arith.constant 0 : i32
    %c0_i32_0 = arith.constant 0 : i32
    %c0_i32_1 = arith.constant 0 : i32
    return %c0_i32, %c0_i32_0 : i32, i32
  }
  func.func @transform_3(%arg0: i32) -> (i32, i32, i32) {
    %c0_i32 = arith.constant 0 : i32
    %c0_i32_0 = arith.constant 0 : i32
    %c0_i32_1 = arith.constant 0 : i32
    %c0_i32_2 = arith.constant 0 : i32
    return %c0_i32, %c0_i32_0, %c0_i32_1 : i32, i32, i32
  }
  func.func @transform_4(%arg0: i32) -> (i32, i32, i32) {
    %c0_i32 = arith.constant 0 : i32
    %c0_i32_0 = arith.constant 0 : i32
    %c0_i32_1 = arith.constant 0 : i32
    %c0_i32_2 = arith.constant 0 : i32
    return %c0_i32, %c0_i32_0, %c0_i32_1 : i32, i32, i32
  }
  func.func @transform_5(%arg0: i32) -> (i32, i32, i32) {
    %c0_i32 = arith.constant 0 : i32
    %c0_i32_0 = arith.constant 0 : i32
    %c0_i32_1 = arith.constant 0 : i32
    %c0_i32_2 = arith.constant 0 : i32
    return %c0_i32, %c0_i32_0, %c0_i32_1 : i32, i32, i32
  }
  func.func @transform_6(%arg0: i32) -> (i32, i32, i32) {
    %c0_i32 = arith.constant 0 : i32
    %c0_i32_0 = arith.constant 0 : i32
    %c0_i32_1 = arith.constant 0 : i32
    %c0_i32_2 = arith.constant 0 : i32
    return %c0_i32, %c0_i32_0, %c0_i32_1 : i32, i32, i32
  }
  func.func @transform_7(%arg0: i32) -> (i32, i32) {
    %c0_i32 = arith.constant 0 : i32
    %c0_i32_0 = arith.constant 0 : i32
    %c0_i32_1 = arith.constant 0 : i32
    return %c0_i32, %c0_i32_0 : i32, i32
  }
  func.func @transform_8(%arg0: i32) -> (i32, i32) {
    %c0_i32 = arith.constant 0 : i32
    %c0_i32_0 = arith.constant 0 : i32
    %c0_i32_1 = arith.constant 0 : i32
    return %c0_i32, %c0_i32_0 : i32, i32
  }
  func.func @transform_9(%arg0: i32) -> (i32, i32) {
    %c0_i32 = arith.constant 0 : i32
    %c0_i32_0 = arith.constant 0 : i32
    %c0_i32_1 = arith.constant 0 : i32
    return %c0_i32, %c0_i32_0 : i32, i32
  }
  func.func @transform_10(%arg0: i32) -> (i32, i32) {
    %c0_i32 = arith.constant 0 : i32
    %c0_i32_0 = arith.constant 0 : i32
    %c0_i32_1 = arith.constant 0 : i32
    return %c0_i32, %c0_i32_0 : i32, i32
  }
  func.func @transform_11(%arg0: i32) -> (i32, i32) {
    %c0_i32 = arith.constant 0 : i32
    %c0_i32_0 = arith.constant 0 : i32
    %c0_i32_1 = arith.constant 0 : i32
    return %c0_i32, %c0_i32_0 : i32, i32
  }
  func.func @transform_12(%arg0: i32) -> (i32, i32) {
    %c0_i32 = arith.constant 0 : i32
    %c0_i32_0 = arith.constant 0 : i32
    %c0_i32_1 = arith.constant 0 : i32
    return %c0_i32, %c0_i32_0 : i32, i32
  }
  func.func @transform_13(%arg0: i32) -> (i32, i32) {
    %c0_i32 = arith.constant 0 : i32
    %c0_i32_0 = arith.constant 0 : i32
    %c0_i32_1 = arith.constant 0 : i32
    return %c0_i32, %c0_i32_0 : i32, i32
  }
  func.func @transform_14(%arg0: i32) -> (i32, i32) {
    %c0_i32 = arith.constant 0 : i32
    %c0_i32_0 = arith.constant 0 : i32
    %c0_i32_1 = arith.constant 0 : i32
    return %c0_i32, %c0_i32_0 : i32, i32
  }
  func.func @transform_15(%arg0: i32) -> (i32, i32) {
    %c0_i32 = arith.constant 0 : i32
    %c0_i32_0 = arith.constant 0 : i32
    %c0_i32_1 = arith.constant 0 : i32
    return %c0_i32, %c0_i32_0 : i32, i32
  }
  func.func @transform_16(%arg0: i32) -> (i32, i32) {
    %c0_i32 = arith.constant 0 : i32
    %c0_i32_0 = arith.constant 0 : i32
    %c0_i32_1 = arith.constant 0 : i32
    return %c0_i32, %c0_i32_0 : i32, i32
  }
  func.func @transform_17(%arg0: i32) -> (i32, i32) {
    %c0_i32 = arith.constant 0 : i32
    %c0_i32_0 = arith.constant 0 : i32
    %c0_i32_1 = arith.constant 0 : i32
    return %c0_i32, %c0_i32_0 : i32, i32
  }
  func.func @transform_18(%arg0: i32) -> (i32, i32) {
    %c0_i32 = arith.constant 0 : i32
    %c0_i32_0 = arith.constant 0 : i32
    %c0_i32_1 = arith.constant 0 : i32
    return %c0_i32, %c0_i32_0 : i32, i32
  }
  func.func @transform_19(%arg0: i32) -> (i32, i32, i32) {
    %c0_i32 = arith.constant 0 : i32
    %c0_i32_0 = arith.constant 0 : i32
    %c0_i32_1 = arith.constant 0 : i32
    return %arg0, %c0_i32, %c0_i32_0 : i32, i32, i32
  }
}

</mosaic_0001>

<llo_original>
// kernel: glsa_forward.1
$region0: #{glsa_forward.1}
  #allocation0 [shape = 'u32[]', space=smem, size = 0x4, offset = 0x4, fixed_abs, tag = 'smem constant byte address 0x4 - core index']
  #allocation1 [shape = 'u32[72,128]{1,0:T(1,128)}', space=vmem, size = 0x9000, scoped, tag = 'internal scratch']
  #allocation2 [shape = 'f32[1,1]{1,0:T(1,128)S(1)}', space=vmem, size = 0x200, scoped, tag = 'scoped memory for glsa_forward.1']
  %s0 = inlined_call_operand.vmem [shape: f32[2,96,256], index: 0, kind: input, shape index: {}]
  %s1 = inlined_call_operand.vmem [shape: f32[64,96], index: 1, kind: input, shape index: {}]
  %s2 = inlined_call_operand.vmem [shape: f32[64,1], index: 2, kind: input, shape index: {}]
  %s3 = inlined_call_operand.vmem [shape: f32[4,32,32], index: 3, kind: input, shape index: {}]
  %s4 = inlined_call_operand.vmem [shape: f32[4,32,1], index: 4, kind: input, shape index: {}]
  %s5 = inlined_call_operand.vmem [shape: f32[27,32,1], index: 5, kind: input, shape index: {}]
  %s6 = inlined_call_operand.vmem [shape: f32[3,32,1], index: 6, kind: input, shape index: {}]
  %s7 = inlined_call_operand.vmem [shape: f32[9,256], index: 7, kind: input, shape index: {}]
  %s8 = inlined_call_operand.vmem [shape: f32[1,32], index: 8, kind: input, shape index: {}]
  %s9 = inlined_call_operand.<no memory space> [shape: f32[1,1], index: 9, kind: input, shape index: {}]
  %s10 = inlined_call_operand.vmem [shape: f32[64,32], index: 10, kind: input, shape index: {}]
  %s11 = inlined_call_operand.vmem [shape: f32[64,1], index: 11, kind: input, shape index: {}]
  %s12 = inlined_call_operand.vmem [shape: f32[64,1], index: 12, kind: input, shape index: {}]
  %s13 = inlined_call_operand.vmem [shape: f32[64,1], index: 13, kind: input, shape index: {}]
  %s14 = inlined_call_operand.vmem [shape: f32[32,64], index: 14, kind: input, shape index: {}]
  %s15 = inlined_call_operand.vmem [shape: f32[32,1], index: 15, kind: input, shape index: {}]
  %s16 = inlined_call_operand.vmem [shape: f32[32,32], index: 16, kind: input, shape index: {}]
  %s17 = inlined_call_operand.vmem [shape: f32[32,32], index: 17, kind: input, shape index: {}]
  %s18 = inlined_call_operand.vmem [shape: f32[32,1], index: 18, kind: input, shape index: {}]
  %s19 = inlined_call_operand.vmem [shape: f32[2,32,256], index: 19, kind: output, shape index: {}]
  %s20 = sld [smem:[#allocation0]]
  $region109: #{glsa_forward.1} parent=0
    _
  %s22 = ssub.s32 1, %s20
  %s23 = scalar_select 0, %s22, %s20
  %v24 = vstv %s9
  %25 = vst [vmem:[#allocation2] sm:$0x1] %v24
  loop: start=0, step=1, limit=4
  $region2: #{glsa_forward.1} parent=0 // loop_pre_header
    _
  $region3: #{glsa_forward.1} parent=0 // loop_header
    %s27 = sphi 0, %s31
    %p28 = scmp.ge.s32.totalorder %s27, 4
    %s37 = sphi 0, %s39
    %s40 = sphi 0, %s37
    %s41 = sphi 0, %s40
    %s57 = sphi 0, %s41
    %s61 = sphi 0, %s61
    %s63 = sphi 0, %s61
    %s64 = sphi 0, %s63
    %s78 = sphi 0, %s64
    %s82 = sphi 0, %s82
    %s84 = sphi 0, %s82
    %s85 = sphi 0, %s84
    %s99 = sphi 0, %s85
    %s103 = sphi 0, %s103
    %s105 = sphi 0, %s103
    %s106 = sphi 0, %s105
    %s120 = sphi 0, %s106
    %s124 = sphi 0, %s124
    %s126 = sphi 0, %s124
    %s127 = sphi 0, %s126
    %s141 = sphi 0, %s127
    %s145 = sphi 0, %s145
    %s147 = sphi 0, %s145
    %s148 = sphi 0, %s147
    %s162 = sphi 0, %s148
    %s166 = sphi 0, %s166
    %s168 = sphi 0, %s166
    %s169 = sphi 0, %s168
    %s183 = sphi 0, %s169
    %s187 = sphi 0, %s187
    %s189 = sphi 0, %s187
    %s190 = sphi 0, %s189
    %s204 = sphi 0, %s190
    %s208 = sphi 0, %s208
    %s210 = sphi 0, %s208
    %s211 = sphi 0, %s210
    %s225 = sphi 0, %s211
    %s229 = sphi 0, %s229
    %s231 = sphi 0, %s229
    %s232 = sphi 0, %s231
    %s246 = sphi 0, %s232
    %s250 = sphi 0, %s250
    %s252 = sphi 0, %s250
    %s253 = sphi 0, %s252
    %s267 = sphi 0, %s253
    %s271 = sphi 0, %s271
    %s273 = sphi 0, %s271
    %s274 = sphi 0, %s273
    %s288 = sphi 0, %s274
    %s292 = sphi 0, %s292
    %s294 = sphi 0, %s292
    %s295 = sphi 0, %s294
    %s309 = sphi 0, %s295
    %s313 = sphi 0, %s313
    %s315 = sphi 0, %s313
    %s316 = sphi 0, %s315
    %s330 = sphi 0, %s316
    %s334 = sphi 0, %s334
    %s336 = sphi 0, %s334
    %s337 = sphi 0, %s336
    %s351 = sphi 0, %s337
    %s355 = sphi 0, %s355
    %s357 = sphi 0, %s355
    %s358 = sphi 0, %s357
    %s372 = sphi 0, %s358
    %s376 = sphi 0, %s376
    %s378 = sphi 0, %s376
    %s379 = sphi 0, %s378
    %s393 = sphi 0, %s379
    %s397 = sphi 0, %s397
    %s399 = sphi 0, %s397
    %s400 = sphi 0, %s399
    %s414 = sphi 0, %s400
    %s418 = sphi 0, %s418
    %s420 = sphi 0, %s418
    %s421 = sphi 0, %s420
    %s435 = sphi 0, %s421
    %s441 = sphi 0, %s443
    %s444 = sphi 0, %s441
    %s445 = sphi 0, %s444
    %s461 = sphi 0, %s445
  $region4: #{glsa_forward.1} parent=0 // loop_header_branch
    %30 = sbr.rel (%p28) target = $region8
  $region5: #{glsa_forward.1} parent=0 // loop_body
    %s32 = ssub.s32 %s27, 1
    %s33 = ssub.s32 %s27, 2
    %s34 = sadd.s32 %s27, 1
    %s35 = ssub.s32 %s27, %s34
    %p36 = scmp.eq.s32.totalorder %s35, 0
    %s38 = sadd.s32 %s37, 1
    %s39 = scalar_select %p36, %s37, %s38
    %p42 = pneg %p36
    %p43 = scmp.eq.s32.totalorder %s27, 1
    %p44 = por %p42, %p43
    %p45 = scmp.ne.s32.totalorder %s37, %s40
    %p46 = scmp.eq.s32.totalorder %s27, 0
    %p47 = por %p45, %p46
    %p48 = scmp.ne.s32.totalorder %s37, %s40
    %p49 = scmp.eq.s32.totalorder %s32, 1
    %p50 = por %p48, %p49
    %p51 = scmp.ne.s32.totalorder %s40, %s41
    %p52 = scmp.eq.s32.totalorder %s32, 0
    %p53 = por %p51, %p52
    %p54 = scmp.ne.s32.totalorder %s40, %s41
    %p55 = scmp.eq.s32.totalorder %s33, 1
    %p56 = por %p54, %p55
    %p58 = scmp.ne.s32.totalorder %s41, %s57
    %p59 = scmp.eq.s32.totalorder %s33, 0
    %p60 = por %p58, %p59
    %s62 = sadd.s32 %s61, 1
    %p65 = scmp.eq.s32.totalorder %s27, 1
    %p66 = scmp.ne.s32.totalorder %s61, %s63
    %p67 = scmp.eq.s32.totalorder %s27, 0
    %p68 = por %p66, %p67
    %p69 = scmp.ne.s32.totalorder %s61, %s63
    %p70 = scmp.eq.s32.totalorder %s32, 1
    %p71 = por %p69, %p70
    %p72 = scmp.ne.s32.totalorder %s63, %s64
    %p73 = scmp.eq.s32.totalorder %s32, 0
    %p74 = por %p72, %p73
    %p75 = scmp.ne.s32.totalorder %s63, %s64
    %p76 = scmp.eq.s32.totalorder %s33, 1
    %p77 = por %p75, %p76
    %p79 = scmp.ne.s32.totalorder %s64, %s78
    %p80 = scmp.eq.s32.totalorder %s33, 0
    %p81 = por %p79, %p80
    %s83 = sadd.s32 %s82, 1
    %p86 = scmp.eq.s32.totalorder %s27, 1
    %p87 = scmp.ne.s32.totalorder %s82, %s84
    %p88 = scmp.eq.s32.totalorder %s27, 0
    %p89 = por %p87, %p88
    %p90 = scmp.ne.s32.totalorder %s82, %s84
    %p91 = scmp.eq.s32.totalorder %s32, 1
    %p92 = por %p90, %p91
    %p93 = scmp.ne.s32.totalorder %s84, %s85
    %p94 = scmp.eq.s32.totalorder %s32, 0
    %p95 = por %p93, %p94
    %p96 = scmp.ne.s32.totalorder %s84, %s85
    %p97 = scmp.eq.s32.totalorder %s33, 1
    %p98 = por %p96, %p97
    %p100 = scmp.ne.s32.totalorder %s85, %s99
    %p101 = scmp.eq.s32.totalorder %s33, 0
    %p102 = por %p100, %p101
    %s104 = sadd.s32 %s103, 1
    %p107 = scmp.eq.s32.totalorder %s27, 1
    %p108 = scmp.ne.s32.totalorder %s103, %s105
    %p109 = scmp.eq.s32.totalorder %s27, 0
    %p110 = por %p108, %p109
    %p111 = scmp.ne.s32.totalorder %s103, %s105
    %p112 = scmp.eq.s32.totalorder %s32, 1
    %p113 = por %p111, %p112
    %p114 = scmp.ne.s32.totalorder %s105, %s106
    %p115 = scmp.eq.s32.totalorder %s32, 0
    %p116 = por %p114, %p115
    %p117 = scmp.ne.s32.totalorder %s105, %s106
    %p118 = scmp.eq.s32.totalorder %s33, 1
    %p119 = por %p117, %p118
    %p121 = scmp.ne.s32.totalorder %s106, %s120
    %p122 = scmp.eq.s32.totalorder %s33, 0
    %p123 = por %p121, %p122
    %s125 = sadd.s32 %s124, 1
    %p128 = scmp.eq.s32.totalorder %s27, 1
    %p129 = scmp.ne.s32.totalorder %s124, %s126
    %p130 = scmp.eq.s32.totalorder %s27, 0
    %p131 = por %p129, %p130
    %p132 = scmp.ne.s32.totalorder %s124, %s126
    %p133 = scmp.eq.s32.totalorder %s32, 1
    %p134 = por %p132, %p133
    %p135 = scmp.ne.s32.totalorder %s126, %s127
    %p136 = scmp.eq.s32.totalorder %s32, 0
    %p137 = por %p135, %p136
    %p138 = scmp.ne.s32.totalorder %s126, %s127
    %p139 = scmp.eq.s32.totalorder %s33, 1
    %p140 = por %p138, %p139
    %p142 = scmp.ne.s32.totalorder %s127, %s141
    %p143 = scmp.eq.s32.totalorder %s33, 0
    %p144 = por %p142, %p143
    %s146 = sadd.s32 %s145, 1
    %p149 = scmp.eq.s32.totalorder %s27, 1
    %p150 = scmp.ne.s32.totalorder %s145, %s147
    %p151 = scmp.eq.s32.totalorder %s27, 0
    %p152 = por %p150, %p151
    %p153 = scmp.ne.s32.totalorder %s145, %s147
    %p154 = scmp.eq.s32.totalorder %s32, 1
    %p155 = por %p153, %p154
    %p156 = scmp.ne.s32.totalorder %s147, %s148
    %p157 = scmp.eq.s32.totalorder %s32, 0
    %p158 = por %p156, %p157
    %p159 = scmp.ne.s32.totalorder %s147, %s148
    %p160 = scmp.eq.s32.totalorder %s33, 1
    %p161 = por %p159, %p160
    %p163 = scmp.ne.s32.totalorder %s148, %s162
    %p164 = scmp.eq.s32.totalorder %s33, 0
    %p165 = por %p163, %p164
    %s167 = sadd.s32 %s166, 1
    %p170 = scmp.eq.s32.totalorder %s27, 1
    %p171 = scmp.ne.s32.totalorder %s166, %s168
    %p172 = scmp.eq.s32.totalorder %s27, 0
    %p173 = por %p171, %p172
    %p174 = scmp.ne.s32.totalorder %s166, %s168
    %p175 = scmp.eq.s32.totalorder %s32, 1
    %p176 = por %p174, %p175
    %p177 = scmp.ne.s32.totalorder %s168, %s169
    %p178 = scmp.eq.s32.totalorder %s32, 0
    %p179 = por %p177, %p178
    %p180 = scmp.ne.s32.totalorder %s168, %s169
    %p181 = scmp.eq.s32.totalorder %s33, 1
    %p182 = por %p180, %p181
    %p184 = scmp.ne.s32.totalorder %s169, %s183
    %p185 = scmp.eq.s32.totalorder %s33, 0
    %p186 = por %p184, %p185
    %s188 = sadd.s32 %s187, 1
    %p191 = scmp.eq.s32.totalorder %s27, 1
    %p192 = scmp.ne.s32.totalorder %s187, %s189
    %p193 = scmp.eq.s32.totalorder %s27, 0
    %p194 = por %p192, %p193
    %p195 = scmp.ne.s32.totalorder %s187, %s189
    %p196 = scmp.eq.s32.totalorder %s32, 1
    %p197 = por %p195, %p196
    %p198 = scmp.ne.s32.totalorder %s189, %s190
    %p199 = scmp.eq.s32.totalorder %s32, 0
    %p200 = por %p198, %p199
    %p201 = scmp.ne.s32.totalorder %s189, %s190
    %p202 = scmp.eq.s32.totalorder %s33, 1
    %p203 = por %p201, %p202
    %p205 = scmp.ne.s32.totalorder %s190, %s204
    %p206 = scmp.eq.s32.totalorder %s33, 0
    %p207 = por %p205, %p206
    %s209 = sadd.s32 %s208, 1
    %p212 = scmp.eq.s32.totalorder %s27, 1
    %p213 = scmp.ne.s32.totalorder %s208, %s210
    %p214 = scmp.eq.s32.totalorder %s27, 0
    %p215 = por %p213, %p214
    %p216 = scmp.ne.s32.totalorder %s208, %s210
    %p217 = scmp.eq.s32.totalorder %s32, 1
    %p218 = por %p216, %p217
    %p219 = scmp.ne.s32.totalorder %s210, %s211
    %p220 = scmp.eq.s32.totalorder %s32, 0
    %p221 = por %p219, %p220
    %p222 = scmp.ne.s32.totalorder %s210, %s211
    %p223 = scmp.eq.s32.totalorder %s33, 1
    %p224 = por %p222, %p223
    %p226 = scmp.ne.s32.totalorder %s211, %s225
    %p227 = scmp.eq.s32.totalorder %s33, 0
    %p228 = por %p226, %p227
    %s230 = sadd.s32 %s229, 1
    %p233 = scmp.eq.s32.totalorder %s27, 1
    %p234 = scmp.ne.s32.totalorder %s229, %s231
    %p235 = scmp.eq.s32.totalorder %s27, 0
    %p236 = por %p234, %p235
    %p237 = scmp.ne.s32.totalorder %s229, %s231
    %p238 = scmp.eq.s32.totalorder %s32, 1
    %p239 = por %p237, %p238
    %p240 = scmp.ne.s32.totalorder %s231, %s232
    %p241 = scmp.eq.s32.totalorder %s32, 0
    %p242 = por %p240, %p241
    %p243 = scmp.ne.s32.totalorder %s231, %s232
    %p244 = scmp.eq.s32.totalorder %s33, 1
    %p245 = por %p243, %p244
    %p247 = scmp.ne.s32.totalorder %s232, %s246
    %p248 = scmp.eq.s32.totalorder %s33, 0
    %p249 = por %p247, %p248
    %s251 = sadd.s32 %s250, 1
    %p254 = scmp.eq.s32.totalorder %s27, 1
    %p255 = scmp.ne.s32.totalorder %s250, %s252
    %p256 = scmp.eq.s32.totalorder %s27, 0
    %p257 = por %p255, %p256
    %p258 = scmp.ne.s32.totalorder %s250, %s252
    %p259 = scmp.eq.s32.totalorder %s32, 1
    %p260 = por %p258, %p259
    %p261 = scmp.ne.s32.totalorder %s252, %s253
    %p262 = scmp.eq.s32.totalorder %s32, 0
    %p263 = por %p261, %p262
    %p264 = scmp.ne.s32.totalorder %s252, %s253
    %p265 = scmp.eq.s32.totalorder %s33, 1
    %p266 = por %p264, %p265
    %p268 = scmp.ne.s32.totalorder %s253, %s267
    %p269 = scmp.eq.s32.totalorder %s33, 0
    %p270 = por %p268, %p269
    %s272 = sadd.s32 %s271, 1
    %p275 = scmp.eq.s32.totalorder %s27, 1
    %p276 = scmp.ne.s32.totalorder %s271, %s273
    %p277 = scmp.eq.s32.totalorder %s27, 0
    %p278 = por %p276, %p277
    %p279 = scmp.ne.s32.totalorder %s271, %s273
    %p280 = scmp.eq.s32.totalorder %s32, 1
    %p281 = por %p279, %p280
    %p282 = scmp.ne.s32.totalorder %s273, %s274
    %p283 = scmp.eq.s32.totalorder %s32, 0
    %p284 = por %p282, %p283
    %p285 = scmp.ne.s32.totalorder %s273, %s274
    %p286 = scmp.eq.s32.totalorder %s33, 1
    %p287 = por %p285, %p286
    %p289 = scmp.ne.s32.totalorder %s274, %s288
    %p290 = scmp.eq.s32.totalorder %s33, 0
    %p291 = por %p289, %p290
    %s293 = sadd.s32 %s292, 1
    %p296 = scmp.eq.s32.totalorder %s27, 1
    %p297 = scmp.ne.s32.totalorder %s292, %s294
    %p298 = scmp.eq.s32.totalorder %s27, 0
    %p299 = por %p297, %p298
    %p300 = scmp.ne.s32.totalorder %s292, %s294
    %p301 = scmp.eq.s32.totalorder %s32, 1
    %p302 = por %p300, %p301
    %p303 = scmp.ne.s32.totalorder %s294, %s295
    %p304 = scmp.eq.s32.totalorder %s32, 0
    %p305 = por %p303, %p304
    %p306 = scmp.ne.s32.totalorder %s294, %s295
    %p307 = scmp.eq.s32.totalorder %s33, 1
    %p308 = por %p306, %p307
    %p310 = scmp.ne.s32.totalorder %s295, %s309
    %p311 = scmp.eq.s32.totalorder %s33, 0
    %p312 = por %p310, %p311
    %s314 = sadd.s32 %s313, 1
    %p317 = scmp.eq.s32.totalorder %s27, 1
    %p318 = scmp.ne.s32.totalorder %s313, %s315
    %p319 = scmp.eq.s32.totalorder %s27, 0
    %p320 = por %p318, %p319
    %p321 = scmp.ne.s32.totalorder %s313, %s315
    %p322 = scmp.eq.s32.totalorder %s32, 1
    %p323 = por %p321, %p322
    %p324 = scmp.ne.s32.totalorder %s315, %s316
    %p325 = scmp.eq.s32.totalorder %s32, 0
    %p326 = por %p324, %p325
    %p327 = scmp.ne.s32.totalorder %s315, %s316
    %p328 = scmp.eq.s32.totalorder %s33, 1
    %p329 = por %p327, %p328
    %p331 = scmp.ne.s32.totalorder %s316, %s330
    %p332 = scmp.eq.s32.totalorder %s33, 0
    %p333 = por %p331, %p332
    %s335 = sadd.s32 %s334, 1
    %p338 = scmp.eq.s32.totalorder %s27, 1
    %p339 = scmp.ne.s32.totalorder %s334, %s336
    %p340 = scmp.eq.s32.totalorder %s27, 0
    %p341 = por %p339, %p340
    %p342 = scmp.ne.s32.totalorder %s334, %s336
    %p343 = scmp.eq.s32.totalorder %s32, 1
    %p344 = por %p342, %p343
    %p345 = scmp.ne.s32.totalorder %s336, %s337
    %p346 = scmp.eq.s32.totalorder %s32, 0
    %p347 = por %p345, %p346
    %p348 = scmp.ne.s32.totalorder %s336, %s337
    %p349 = scmp.eq.s32.totalorder %s33, 1
    %p350 = por %p348, %p349
    %p352 = scmp.ne.s32.totalorder %s337, %s351
    %p353 = scmp.eq.s32.totalorder %s33, 0
    %p354 = por %p352, %p353
    %s356 = sadd.s32 %s355, 1
    %p359 = scmp.eq.s32.totalorder %s27, 1
    %p360 = scmp.ne.s32.totalorder %s355, %s357
    %p361 = scmp.eq.s32.totalorder %s27, 0
    %p362 = por %p360, %p361
    %p363 = scmp.ne.s32.totalorder %s355, %s357
    %p364 = scmp.eq.s32.totalorder %s32, 1
    %p365 = por %p363, %p364
    %p366 = scmp.ne.s32.totalorder %s357, %s358
    %p367 = scmp.eq.s32.totalorder %s32, 0
    %p368 = por %p366, %p367
    %p369 = scmp.ne.s32.totalorder %s357, %s358
    %p370 = scmp.eq.s32.totalorder %s33, 1
    %p371 = por %p369, %p370
    %p373 = scmp.ne.s32.totalorder %s358, %s372
    %p374 = scmp.eq.s32.totalorder %s33, 0
    %p375 = por %p373, %p374
    %s377 = sadd.s32 %s376, 1
    %p380 = scmp.eq.s32.totalorder %s27, 1
    %p381 = scmp.ne.s32.totalorder %s376, %s378
    %p382 = scmp.eq.s32.totalorder %s27, 0
    %p383 = por %p381, %p382
    %p384 = scmp.ne.s32.totalorder %s376, %s378
    %p385 = scmp.eq.s32.totalorder %s32, 1
    %p386 = por %p384, %p385
    %p387 = scmp.ne.s32.totalorder %s378, %s379
    %p388 = scmp.eq.s32.totalorder %s32, 0
    %p389 = por %p387, %p388
    %p390 = scmp.ne.s32.totalorder %s378, %s379
    %p391 = scmp.eq.s32.totalorder %s33, 1
    %p392 = por %p390, %p391
    %p394 = scmp.ne.s32.totalorder %s379, %s393
    %p395 = scmp.eq.s32.totalorder %s33, 0
    %p396 = por %p394, %p395
    %s398 = sadd.s32 %s397, 1
    %p401 = scmp.eq.s32.totalorder %s27, 1
    %p402 = scmp.ne.s32.totalorder %s397, %s399
    %p403 = scmp.eq.s32.totalorder %s27, 0
    %p404 = por %p402, %p403
    %p405 = scmp.ne.s32.totalorder %s397, %s399
    %p406 = scmp.eq.s32.totalorder %s32, 1
    %p407 = por %p405, %p406
    %p408 = scmp.ne.s32.totalorder %s399, %s400
    %p409 = scmp.eq.s32.totalorder %s32, 0
    %p410 = por %p408, %p409
    %p411 = scmp.ne.s32.totalorder %s399, %s400
    %p412 = scmp.eq.s32.totalorder %s33, 1
    %p413 = por %p411, %p412
    %p415 = scmp.ne.s32.totalorder %s400, %s414
    %p416 = scmp.eq.s32.totalorder %s33, 0
    %p417 = por %p415, %p416
    %s419 = sadd.s32 %s418, 1
    %p422 = scmp.eq.s32.totalorder %s27, 1
    %p423 = scmp.ne.s32.totalorder %s418, %s420
    %p424 = scmp.eq.s32.totalorder %s27, 0
    %p425 = por %p423, %p424
    %p426 = scmp.ne.s32.totalorder %s418, %s420
    %p427 = scmp.eq.s32.totalorder %s32, 1
    %p428 = por %p426, %p427
    %p429 = scmp.ne.s32.totalorder %s420, %s421
    %p430 = scmp.eq.s32.totalorder %s32, 0
    %p431 = por %p429, %p430
    %p432 = scmp.ne.s32.totalorder %s420, %s421
    %p433 = scmp.eq.s32.totalorder %s33, 1
    %p434 = por %p432, %p433
    %p436 = scmp.ne.s32.totalorder %s421, %s435
    %p437 = scmp.eq.s32.totalorder %s33, 0
    %p438 = por %p436, %p437
    %s439 = ssub.s32 %s27, %s34
    %p440 = scmp.eq.s32.totalorder %s439, 0
    %s442 = sadd.s32 %s441, 1
    %s443 = scalar_select %p440, %s441, %s442
    %p446 = pneg %p440
    %p447 = scmp.eq.s32.totalorder %s27, 1
    %p448 = por %p446, %p447
    %p449 = scmp.ne.s32.totalorder %s441, %s444
    %p450 = scmp.eq.s32.totalorder %s27, 0
    %p451 = por %p449, %p450
    %p452 = scmp.ne.s32.totalorder %s441, %s444
    %p453 = scmp.eq.s32.totalorder %s32, 1
    %p454 = por %p452, %p453
    %p455 = scmp.ne.s32.totalorder %s444, %s445
    %p456 = scmp.eq.s32.totalorder %s32, 0
    %p457 = por %p455, %p456
    %p458 = scmp.ne.s32.totalorder %s444, %s445
    %p459 = scmp.eq.s32.totalorder %s33, 1
    %p460 = por %p458, %p459
    %p462 = scmp.ne.s32.totalorder %s445, %s461
    %p463 = scmp.eq.s32.totalorder %s33, 0
    %p464 = por %p462, %p463
    %p465 = scmp.le.s32.totalorder 1, %s27
    %p466 = scmp.lt.s32.totalorder %s27, 3
    %p467 = pnand %p465, %p466
    %p468 = pneg %p467
    // Predicated region
    $region9: #{glsa_forward.1} parent=5 // pred_check
      _
    $region10: #{glsa_forward.1} parent=5 // pred_check_branch
      %470 = sbr.rel (%p467) target = $region12
    $region11: #{glsa_forward.1} parent=5 // pred_region
      %s471 = ssub.s32 %s27, 1
      // Predicated region
      $region13: #{glsa_forward.1} parent=11 // pred_check
        %p472 = pneg %p74
      $region14: #{glsa_forward.1} parent=11 // pred_check_branch
        %474 = sbr.rel (%p472) target = $region16
      $region15: #{glsa_forward.1} parent=11 // pred_region
        _
      $region16: #{glsa_forward.1} parent=11 // pred_fallthru
        _
      // Predicated region
      $region17: #{glsa_forward.1} parent=11 // pred_check
        %p475 = pneg %p95
      $region18: #{glsa_forward.1} parent=11 // pred_check_branch
        %477 = sbr.rel (%p475) target = $region20
      $region19: #{glsa_forward.1} parent=11 // pred_region
        _
      $region20: #{glsa_forward.1} parent=11 // pred_fallthru
        _
      // Predicated region
      $region21: #{glsa_forward.1} parent=11 // pred_check
        %p478 = pneg %p116
      $region22: #{glsa_forward.1} parent=11 // pred_check_branch
        %480 = sbr.rel (%p478) target = $region24
      $region23: #{glsa_forward.1} parent=11 // pred_region
        _
      $region24: #{glsa_forward.1} parent=11 // pred_fallthru
        _
      // Predicated region
      $region25: #{glsa_forward.1} parent=11 // pred_check
        %p481 = pneg %p137
      $region26: #{glsa_forward.1} parent=11 // pred_check_branch
        %483 = sbr.rel (%p481) target = $region28
      $region27: #{glsa_forward.1} parent=11 // pred_region
        _
      $region28: #{glsa_forward.1} parent=11 // pred_fallthru
        _
      // Predicated region
      $region29: #{glsa_forward.1} parent=11 // pred_check
        %p484 = pneg %p158
      $region30: #{glsa_forward.1} parent=11 // pred_check_branch
        %486 = sbr.rel (%p484) target = $region32
      $region31: #{glsa_forward.1} parent=11 // pred_region
        _
      $region32: #{glsa_forward.1} parent=11 // pred_fallthru
        _
      // Predicated region
      $region33: #{glsa_forward.1} parent=11 // pred_check
        %p487 = pneg %p179
      $region34: #{glsa_forward.1} parent=11 // pred_check_branch
        %489 = sbr.rel (%p487) target = $region36
      $region35: #{glsa_forward.1} parent=11 // pred_region
        _
      $region36: #{glsa_forward.1} parent=11 // pred_fallthru
        _
      // Predicated region
      $region37: #{glsa_forward.1} parent=11 // pred_check
        %p490 = pneg %p200
      $region38: #{glsa_forward.1} parent=11 // pred_check_branch
        %492 = sbr.rel (%p490) target = $region40
      $region39: #{glsa_forward.1} parent=11 // pred_region
        _
      $region40: #{glsa_forward.1} parent=11 // pred_fallthru
        _
      // Predicated region
      $region41: #{glsa_forward.1} parent=11 // pred_check
        %p493 = pneg %p221
      $region42: #{glsa_forward.1} parent=11 // pred_check_branch
        %495 = sbr.rel (%p493) target = $region44
      $region43: #{glsa_forward.1} parent=11 // pred_region
        _
      $region44: #{glsa_forward.1} parent=11 // pred_fallthru
        _
      // Predicated region
      $region45: #{glsa_forward.1} parent=11 // pred_check
        %p496 = pneg %p242
      $region46: #{glsa_forward.1} parent=11 // pred_check_branch
        %498 = sbr.rel (%p496) target = $region48
      $region47: #{glsa_forward.1} parent=11 // pred_region
        _
      $region48: #{glsa_forward.1} parent=11 // pred_fallthru
        _
      // Predicated region
      $region49: #{glsa_forward.1} parent=11 // pred_check
        %p499 = pneg %p263
      $region50: #{glsa_forward.1} parent=11 // pred_check_branch
        %501 = sbr.rel (%p499) target = $region52
      $region51: #{glsa_forward.1} parent=11 // pred_region
        _
      $region52: #{glsa_forward.1} parent=11 // pred_fallthru
        _
      // Predicated region
      $region53: #{glsa_forward.1} parent=11 // pred_check
        %p502 = pneg %p284
      $region54: #{glsa_forward.1} parent=11 // pred_check_branch
        %504 = sbr.rel (%p502) target = $region56
      $region55: #{glsa_forward.1} parent=11 // pred_region
        _
      $region56: #{glsa_forward.1} parent=11 // pred_fallthru
        _
      // Predicated region
      $region57: #{glsa_forward.1} parent=11 // pred_check
        %p505 = pneg %p305
      $region58: #{glsa_forward.1} parent=11 // pred_check_branch
        %507 = sbr.rel (%p505) target = $region60
      $region59: #{glsa_forward.1} parent=11 // pred_region
        _
      $region60: #{glsa_forward.1} parent=11 // pred_fallthru
        _
      // Predicated region
      $region61: #{glsa_forward.1} parent=11 // pred_check
        %p508 = pneg %p326
      $region62: #{glsa_forward.1} parent=11 // pred_check_branch
        %510 = sbr.rel (%p508) target = $region64
      $region63: #{glsa_forward.1} parent=11 // pred_region
        _
      $region64: #{glsa_forward.1} parent=11 // pred_fallthru
        _
      // Predicated region
      $region65: #{glsa_forward.1} parent=11 // pred_check
        %p511 = pneg %p347
      $region66: #{glsa_forward.1} parent=11 // pred_check_branch
        %513 = sbr.rel (%p511) target = $region68
      $region67: #{glsa_forward.1} parent=11 // pred_region
        _
      $region68: #{glsa_forward.1} parent=11 // pred_fallthru
        _
      // Predicated region
      $region69: #{glsa_forward.1} parent=11 // pred_check
        %p514 = pneg %p368
      $region70: #{glsa_forward.1} parent=11 // pred_check_branch
        %516 = sbr.rel (%p514) target = $region72
      $region71: #{glsa_forward.1} parent=11 // pred_region
        _
      $region72: #{glsa_forward.1} parent=11 // pred_fallthru
        _
      // Predicated region
      $region73: #{glsa_forward.1} parent=11 // pred_check
        %p517 = pneg %p389
      $region74: #{glsa_forward.1} parent=11 // pred_check_branch
        %519 = sbr.rel (%p517) target = $region76
      $region75: #{glsa_forward.1} parent=11 // pred_region
        _
      $region76: #{glsa_forward.1} parent=11 // pred_fallthru
        _
      // Predicated region
      $region77: #{glsa_forward.1} parent=11 // pred_check
        %p520 = pneg %p410
      $region78: #{glsa_forward.1} parent=11 // pred_check_branch
        %522 = sbr.rel (%p520) target = $region80
      $region79: #{glsa_forward.1} parent=11 // pred_region
        _
      $region80: #{glsa_forward.1} parent=11 // pred_fallthru
        _
      // Predicated region
      $region81: #{glsa_forward.1} parent=11 // pred_check
        %p523 = pneg %p431
      $region82: #{glsa_forward.1} parent=11 // pred_check_branch
        %525 = sbr.rel (%p523) target = $region84
      $region83: #{glsa_forward.1} parent=11 // pred_region
        _
      $region84: #{glsa_forward.1} parent=11 // pred_fallthru
        _
    $region12: #{glsa_forward.1} parent=5 // pred_fallthru
      _
    %p526 = scmp.lt.s32.totalorder %s27, 2
    // Predicated region
    $region85: #{glsa_forward.1} parent=5 // pred_check
      %p527 = pneg %p526
    $region86: #{glsa_forward.1} parent=5 // pred_check_branch
      %529 = sbr.rel (%p527) target = $region88
    $region87: #{glsa_forward.1} parent=5 // pred_region
      // Predicated region
      $region89: #{glsa_forward.1} parent=87 // pred_check
        %p530 = pneg %p47
      $region90: #{glsa_forward.1} parent=87 // pred_check_branch
        %532 = sbr.rel (%p530) target = $region92
      $region91: #{glsa_forward.1} parent=87 // pred_region
        %p533 = scmp.lt.s32.totalorder %s27, 1
        %s534 = scalar_select %p533, %s27, 1
        %s535 = smul.addr %s534, 24
        %s536 = smul.addr %s535, 8
        %s537 = scalar_lea.vmem %s0, %s536
      $region92: #{glsa_forward.1} parent=87 // pred_fallthru
        _
    $region88: #{glsa_forward.1} parent=5 // pred_fallthru
      _
    %p538 = scmp.le.s32.totalorder 1, %s27
    %p539 = scmp.lt.s32.totalorder %s27, 3
    %p540 = pnand %p538, %p539
    %p541 = pneg %p540
    // Predicated region
    $region93: #{glsa_forward.1} parent=5 // pred_check
      _
    $region94: #{glsa_forward.1} parent=5 // pred_check_branch
      %543 = sbr.rel (%p540) target = $region96
    $region95: #{glsa_forward.1} parent=5 // pred_region
      %s544 = ssub.s32 %s27, 1
      %p545 = scmp.lt.s32.totalorder %s32, 1
      %s546 = scalar_select %p545, %s32, 1
      %s547 = smul.addr %s546, 24
      %s548 = smul.addr %s547, 8
      %s549 = scalar_lea.vmem %s0, %s548
      %p550 = pneg %p53
      %p551 = pneg %p50
      %p552 = pneg %p74
      %p553 = pneg %p71
      %p554 = pneg %p95
      %p555 = pneg %p92
      %p556 = pneg %p116
      %p557 = pneg %p113
      %p558 = pneg %p137
      %p559 = pneg %p134
      %p560 = pneg %p158
      %p561 = pneg %p155
      %p562 = pneg %p179
      %p563 = pneg %p176
      %p564 = pneg %p200
      %p565 = pneg %p197
      %p566 = pneg %p221
      %p567 = pneg %p218
      %p568 = pneg %p242
      %p569 = pneg %p239
      %p570 = pneg %p263
      %p571 = pneg %p260
      %p572 = pneg %p284
      %p573 = pneg %p281
      %p574 = pneg %p305
      %p575 = pneg %p302
      %p576 = pneg %p326
      %p577 = pneg %p323
      %p578 = pneg %p347
      %p579 = pneg %p344
      %p580 = pneg %p368
      %p581 = pneg %p365
      %p582 = pneg %p389
      %p583 = pneg %p386
      %p584 = pneg %p410
      %p585 = pneg %p407
      %p586 = pneg %p431
      %p587 = pneg %p428
      %p588 = pneg %p457
      %p589 = pneg %p454
      %p590 = scmp.lt.s32.totalorder %s32, 1
      %s591 = scalar_select %p590, %s32, 1
      %s592 = smul.addr %s591, 8
      %s593 = smul.addr %s592, 8
      %s594 = scalar_lea.vmem %s19, %s593
      %p595 = scmp.lt.s32.totalorder %s32, 1
      %s596 = scalar_select %p595, %s32, 1
      %s597 = smul.addr %s596, 24
      %s598 = smul.addr %s597, 8
      %s599 = scalar_lea.vmem %s0, %s598
      %p600 = scmp.lt.s32.totalorder %s32, 1
      %s601 = scalar_select %p600, %s32, 1
      %s602 = smul.addr %s601, 8
      %s603 = smul.addr %s602, 8
      %s604 = scalar_lea.vmem %s19, %s603
      %v605 = vld [vmem:[%s599] sm:$0xff]
      %v606 = vld [vmem:[%s599 + $0x8] sm:$0xff]
      %v607 = vld [vmem:[%s599 + $0x10] sm:$0xff]
      %v608 = vld [vmem:[%s599 + $0x18] sm:$0xff]
      %v609 = vld [vmem:[%s599 + $0x20] sm:$0xff]
      %v610 = vld [vmem:[%s599 + $0x28] sm:$0xff]
      %v611 = vld [vmem:[%s599 + $0x30] sm:$0xff]
      %v612 = vld [vmem:[%s599 + $0x38] sm:$0xff]
      %v613 = vld [vmem:[%s599 + $0x40] sm:$0xff]
      %v614 = vld [vmem:[%s599 + $0x48] sm:$0xff]
      %v615 = vld [vmem:[%s599 + $0x50] sm:$0xff]
      %v616 = vld [vmem:[%s599 + $0x58] sm:$0xff]
      %v617 = vld [vmem:[%s599 + $0x60] sm:$0xff]
      %v618 = vld [vmem:[%s599 + $0x68] sm:$0xff]
      %v619 = vld [vmem:[%s599 + $0x70] sm:$0xff]
      %v620 = vld [vmem:[%s599 + $0x78] sm:$0xff]
      %v621 = vld [vmem:[%s599 + $0x80] sm:$0xff]
      %v622 = vld [vmem:[%s599 + $0x88] sm:$0xff]
      %v623 = vld [vmem:[%s599 + $0x90] sm:$0xff]
      %v624 = vld [vmem:[%s599 + $0x98] sm:$0xff]
      %v625 = vld [vmem:[%s599 + $0xa0] sm:$0xff]
      %v626 = vld [vmem:[%s599 + $0xa8] sm:$0xff]
      %v627 = vld [vmem:[%s599 + $0xb0] sm:$0xff]
      %v628 = vld [vmem:[%s599 + $0xb8] sm:$0xff]
      %v629 = vld [vmem:[%s1] sm:$0xff]
      %v630 = vld [vmem:[%s1 + $0x8] sm:$0xff]
      %v631 = vld [vmem:[%s1 + $0x10] sm:$0xff]
      %v632 = vld [vmem:[%s1 + $0x18] sm:$0xff]
      %v633 = vld [vmem:[%s1 + $0x20] sm:$0xff]
      %v634 = vld [vmem:[%s1 + $0x28] sm:$0xff]
      %v635 = vld [vmem:[%s1 + $0x30] sm:$0xff]
      %v636 = vld [vmem:[%s1 + $0x38] sm:$0xff]
      %v637 = vld [vmem:[%s2] sm:$0xff]
      %v638 = vld [vmem:[%s2 + $0x8] sm:$0xff]
      %v639 = vld [vmem:[%s2 + $0x10] sm:$0xff]
      %v640 = vld [vmem:[%s2 + $0x18] sm:$0xff]
      %v641 = vld [vmem:[%s2 + $0x20] sm:$0xff]
      %v642 = vld [vmem:[%s2 + $0x28] sm:$0xff]
      %v643 = vld [vmem:[%s2 + $0x30] sm:$0xff]
      %v644 = vld [vmem:[%s2 + $0x38] sm:$0xff]
      %646 = vset.pattern.permute.xlu0 0
      %647 = vperm.xlu0 %646, %v637
      %v648 = vpop.permute.xlu0 %647
      %651 = vset.pattern.permute.xlu0 0
      %652 = vperm.xlu0 %651, %v638
      %v653 = vpop.permute.xlu0 %652
      %656 = vset.pattern.permute.xlu0 0
      %657 = vperm.xlu0 %656, %v639
      %v658 = vpop.permute.xlu0 %657
      %661 = vset.pattern.permute.xlu0 0
      %662 = vperm.xlu0 %661, %v640
      %v663 = vpop.permute.xlu0 %662
      %666 = vset.pattern.permute.xlu0 0
      %667 = vperm.xlu0 %666, %v641
      %v668 = vpop.permute.xlu0 %667
      %671 = vset.pattern.permute.xlu0 0
      %672 = vperm.xlu0 %671, %v642
      %v673 = vpop.permute.xlu0 %672
      %676 = vset.pattern.permute.xlu0 0
      %677 = vperm.xlu0 %676, %v643
      %v678 = vpop.permute.xlu0 %677
      %681 = vset.pattern.permute.xlu0 0
      %682 = vperm.xlu0 %681, %v644
      %v683 = vpop.permute.xlu0 %682
      %vm685 = vcmask 785408
      %v687 = vsel %vm685, %v629, 0
      %v690 = vsel %vm685, %v630, 0
      %v693 = vsel %vm685, %v631, 0
      %v696 = vsel %vm685, %v632, 0
      %v699 = vsel %vm685, %v633, 0
      %v702 = vsel %vm685, %v634, 0
      %v705 = vsel %vm685, %v635, 0
      %v708 = vsel %vm685, %v636, 0
      %710 = vmatpush.msra.mxu0 0.0
      %711 = vmatpush.msra.mxu0 0.0
      %712 = vmatpush.msra.mxu0 0.0
      %713 = vmatpush.msra.mxu0 0.0
      %714 = vmatpush.msra.mxu0 %v627
      %715 = vmatpush.msra.mxu0 %v625
      %716 = vmatpush.msra.mxu0 %v623
      %717 = vmatpush.msra.mxu0 %v621
      %718 = vmatpush.msra.mxu0 %v619
      %719 = vmatpush.msra.mxu0 %v617
      %720 = vmatpush.msra.mxu0 %v615
      %721 = vmatpush.msra.mxu0 %v613
      %722 = vmatpush.msra.mxu0 %v611
      %723 = vmatpush.msra.mxu0 %v609
      %724 = vmatpush.msra.mxu0 %v607
      %725 = vmatpush.msra.mxu0 %v605
      %726 = vmatmul.f32.gmra.mxu0 %v687
      %v727 = vpop.f32.mrf.mxu0
      %v728 = vadd.f32 %v648, %v727
      %729 = vmatmul.f32.gmra.mxu0 %v690
      %v730 = vpop.f32.mrf.mxu0
      %v731 = vadd.f32 %v653, %v730
      %732 = vmatmul.f32.gmra.mxu0 %v693
      %v733 = vpop.f32.mrf.mxu0
      %v734 = vadd.f32 %v658, %v733
      %735 = vmatmul.f32.gmra.mxu0 %v696
      %v736 = vpop.f32.mrf.mxu0
      %v737 = vadd.f32 %v663, %v736
      %738 = vmatmul.f32.gmra.mxu0 %v699
      %v739 = vpop.f32.mrf.mxu0
      %v740 = vadd.f32 %v668, %v739
      %741 = vmatmul.f32.gmra.mxu0 %v702
      %v742 = vpop.f32.mrf.mxu0
      %v743 = vadd.f32 %v673, %v742
      %744 = vmatmul.f32.gmra.mxu0 %v705
      %v745 = vpop.f32.mrf.mxu0
      %v746 = vadd.f32 %v678, %v745
      %747 = vmatmul.f32.gmra.mxu0 %v708
      %v748 = vpop.f32.mrf.mxu0
      %v749 = vadd.f32 %v683, %v748
      %750 = vdwg.mxu0
      %751 = vmatpush.msra.mxu0 0.0
      %752 = vmatpush.msra.mxu0 0.0
      %753 = vmatpush.msra.mxu0 0.0
      %754 = vmatpush.msra.mxu0 0.0
      %755 = vmatpush.msra.mxu0 %v628
      %756 = vmatpush.msra.mxu0 %v626
      %757 = vmatpush.msra.mxu0 %v624
      %758 = vmatpush.msra.mxu0 %v622
      %759 = vmatpush.msra.mxu0 %v620
      %760 = vmatpush.msra.mxu0 %v618
      %761 = vmatpush.msra.mxu0 %v616
      %762 = vmatpush.msra.mxu0 %v614
      %763 = vmatpush.msra.mxu0 %v612
      %764 = vmatpush.msra.mxu0 %v610
      %765 = vmatpush.msra.mxu0 %v608
      %766 = vmatpush.msra.mxu0 %v606
      %767 = vmatmul.f32.gmra.mxu0 %v687
      %v768 = vpop.f32.mrf.mxu0
      %v769 = vadd.f32 %v648, %v768
      %770 = vmatmul.f32.gmra.mxu0 %v690
      %v771 = vpop.f32.mrf.mxu0
      %v772 = vadd.f32 %v653, %v771
      %773 = vmatmul.f32.gmra.mxu0 %v693
      %v774 = vpop.f32.mrf.mxu0
      %v775 = vadd.f32 %v658, %v774
      %776 = vmatmul.f32.gmra.mxu0 %v696
      %v777 = vpop.f32.mrf.mxu0
      %v778 = vadd.f32 %v663, %v777
      %779 = vmatmul.f32.gmra.mxu0 %v699
      %v780 = vpop.f32.mrf.mxu0
      %v781 = vadd.f32 %v668, %v780
      %782 = vmatmul.f32.gmra.mxu0 %v702
      %v783 = vpop.f32.mrf.mxu0
      %v784 = vadd.f32 %v673, %v783
      %785 = vmatmul.f32.gmra.mxu0 %v705
      %v786 = vpop.f32.mrf.mxu0
      %v787 = vadd.f32 %v678, %v786
      %788 = vmatmul.f32.gmra.mxu0 %v708
      %v789 = vpop.f32.mrf.mxu0
      %v790 = vadd.f32 %v683, %v789
      %791 = vdwg.mxu0
      %v792 = vld [vmem:[%s3] sm:$0xff]
      %v793 = vld [vmem:[%s3 + $0x8] sm:$0xff]
      %v794 = vld [vmem:[%s3 + $0x10] sm:$0xff]
      %v795 = vld [vmem:[%s3 + $0x18] sm:$0xff]
      %v796 = vld [vmem:[%s4] sm:$0xff]
      %v797 = vld [vmem:[%s4 + $0x8] sm:$0xff]
      %v798 = vld [vmem:[%s4 + $0x10] sm:$0xff]
      %v799 = vld [vmem:[%s4 + $0x18] sm:$0xff]
      %801 = vset.pattern.permute.xlu0 0
      %802 = vperm.xlu0 %801, %v796
      %v803 = vpop.permute.xlu0 %802
      %806 = vset.pattern.permute.xlu0 0
      %807 = vperm.xlu0 %806, %v797
      %v808 = vpop.permute.xlu0 %807
      %811 = vset.pattern.permute.xlu0 0
      %812 = vperm.xlu0 %811, %v798
      %v813 = vpop.permute.xlu0 %812
      %816 = vset.pattern.permute.xlu0 0
      %817 = vperm.xlu0 %816, %v799
      %v818 = vpop.permute.xlu0 %817
      %vm820 = vcmask 261120
      %v822 = vsel %vm820, %v792, 0
      %v825 = vsel %vm820, %v793, 0
      %v828 = vsel %vm820, %v794, 0
      %v831 = vsel %vm820, %v795, 0
      %833 = vmatpush.msra.mxu0 0.0
      %834 = vmatpush.msra.mxu0 0.0
      %835 = vmatpush.msra.mxu0 0.0
      %836 = vmatpush.msra.mxu0 0.0
      %837 = vmatpush.msra.mxu0 0.0
      %838 = vmatpush.msra.mxu0 0.0
      %839 = vmatpush.msra.mxu0 0.0
      %840 = vmatpush.msra.mxu0 0.0
      %841 = vmatpush.msra.mxu0 0.0
      %842 = vmatpush.msra.mxu0 0.0
      %843 = vmatpush.msra.mxu0 0.0
      %844 = vmatpush.msra.mxu0 0.0
      %845 = vmatpush.msra.mxu0 %v737
      %846 = vmatpush.msra.mxu0 %v734
      %847 = vmatpush.msra.mxu0 %v731
      %848 = vmatpush.msra.mxu0 %v728
      %849 = vmatmul.f32.gmra.mxu0 %v822
      %v850 = vpop.f32.mrf.mxu0
      %v851 = vadd.f32 %v803, %v850
      %852 = vmatmul.f32.gmra.mxu0 %v825
      %v853 = vpop.f32.mrf.mxu0
      %v854 = vadd.f32 %v808, %v853
      %855 = vmatmul.f32.gmra.mxu0 %v828
      %v856 = vpop.f32.mrf.mxu0
      %v857 = vadd.f32 %v813, %v856
      %858 = vmatmul.f32.gmra.mxu0 %v831
      %v859 = vpop.f32.mrf.mxu0
      %v860 = vadd.f32 %v818, %v859
      %861 = vdwg.mxu0
      %862 = vmatpush.msra.mxu0 0.0
      %863 = vmatpush.msra.mxu0 0.0
      %864 = vmatpush.msra.mxu0 0.0
      %865 = vmatpush.msra.mxu0 0.0
      %866 = vmatpush.msra.mxu0 0.0
      %867 = vmatpush.msra.mxu0 0.0
      %868 = vmatpush.msra.mxu0 0.0
      %869 = vmatpush.msra.mxu0 0.0
      %870 = vmatpush.msra.mxu0 0.0
      %871 = vmatpush.msra.mxu0 0.0
      %872 = vmatpush.msra.mxu0 0.0
      %873 = vmatpush.msra.mxu0 0.0
      %874 = vmatpush.msra.mxu0 %v778
      %875 = vmatpush.msra.mxu0 %v775
      %876 = vmatpush.msra.mxu0 %v772
      %877 = vmatpush.msra.mxu0 %v769
      %878 = vmatmul.f32.gmra.mxu0 %v822
      %v879 = vpop.f32.mrf.mxu0
      %v880 = vadd.f32 %v803, %v879
      %881 = vmatmul.f32.gmra.mxu0 %v825
      %v882 = vpop.f32.mrf.mxu0
      %v883 = vadd.f32 %v808, %v882
      %884 = vmatmul.f32.gmra.mxu0 %v828
      %v885 = vpop.f32.mrf.mxu0
      %v886 = vadd.f32 %v813, %v885
      %887 = vmatmul.f32.gmra.mxu0 %v831
      %v888 = vpop.f32.mrf.mxu0
      %v889 = vadd.f32 %v818, %v888
      %890 = vdwg.mxu0
      %v891 = vmax.f32 %v851, 0.0
      %v892 = vmax.f32 %v880, 0.0
      %v893 = vmax.f32 %v854, 0.0
      %v894 = vmax.f32 %v883, 0.0
      %v895 = vmax.f32 %v857, 0.0
      %v896 = vmax.f32 %v886, 0.0
      %v897 = vmax.f32 %v860, 0.0
      %v898 = vmax.f32 %v889, 0.0
      %s899 = scalar_lea.vmem %s5, 128
      %v900 = vld [vmem:[%s899] sm:$0xff]
      %v901 = vld [vmem:[%s899 + $0x8] sm:$0xff]
      %v902 = vld [vmem:[%s899 + $0x10] sm:$0xff]
      %v903 = vld [vmem:[%s899 + $0x18] sm:$0xff]
      %905 = vset.pattern.permute.xlu0 0
      %906 = vperm.xlu0 %905, %v900
      %v907 = vpop.permute.xlu0 %906
      %910 = vset.pattern.permute.xlu0 0
      %911 = vperm.xlu0 %910, %v901
      %v912 = vpop.permute.xlu0 %911
      %915 = vset.pattern.permute.xlu0 0
      %916 = vperm.xlu0 %915, %v902
      %v917 = vpop.permute.xlu0 %916
      %920 = vset.pattern.permute.xlu0 0
      %921 = vperm.xlu0 %920, %v903
      %v922 = vpop.permute.xlu0 %921
      %v924 = vmul.f32 %v907, %v891
      %v925 = vmul.f32 %v907, %v892
      %v926 = vmul.f32 %v912, %v893
      %v927 = vmul.f32 %v912, %v894
      %v928 = vmul.f32 %v917, %v895
      %v929 = vmul.f32 %v917, %v896
      %v930 = vmul.f32 %v922, %v897
      %v931 = vmul.f32 %v922, %v898
      %932 = vrot.lane.b32.xlu0 %v891, 17
      %v933 = vpop.permute.xlu0 %932
      %934 = vrot.lane.b32.xlu0 %v893, 17
      %v935 = vpop.permute.xlu0 %934
      %936 = vrot.lane.b32.xlu0 %v895, 17
      %v937 = vpop.permute.xlu0 %936
      %938 = vrot.lane.b32.xlu0 %v897, 17
      %v939 = vpop.permute.xlu0 %938
      %940 = vrot.lane.b32.xlu0 %v892, 17
      %v941 = vpop.permute.xlu0 %940
      %942 = vrot.lane.b32.xlu0 %v894, 17
      %v943 = vpop.permute.xlu0 %942
      %944 = vrot.lane.b32.xlu0 %v896, 17
      %v945 = vpop.permute.xlu0 %944
      %946 = vrot.lane.b32.xlu0 %v898, 17
      %v947 = vpop.permute.xlu0 %946
      %v948 = vlaneseq
      %v949 = vand.u32 %v948, 127
      %vm950 = vcmp.lt.s32.totalorder %v949, 17
      %v951 = vsel %vm950, %v933, %v941
      %v952 = vsel %vm950, %v935, %v943
      %v953 = vsel %vm950, %v937, %v945
      %v954 = vsel %vm950, %v939, %v947
      %v955 = vsel %vm950, %v941, %v933
      %v956 = vsel %vm950, %v943, %v935
      %v957 = vsel %vm950, %v945, %v937
      %v958 = vsel %vm950, %v947, %v939
      %v959 = vld [vmem:[%s5] sm:$0xff]
      %v960 = vld [vmem:[%s5 + $0x8] sm:$0xff]
      %v961 = vld [vmem:[%s5 + $0x10] sm:$0xff]
      %v962 = vld [vmem:[%s5 + $0x18] sm:$0xff]
      %v963 = vld [vmem:[%s7] ss:$8 sm:$0x3]
      %v965 = vperm.slane %v963, 0
      %v966 = vperm.slane %v963, 1
      %v969 = vmul.f32 %v955, %v965
      %v970 = vmul.f32 %v951, %v966
      %v971 = vmul.f32 %v956, %v965
      %v972 = vmul.f32 %v952, %v966
      %v973 = vmul.f32 %v957, %v965
      %v974 = vmul.f32 %v953, %v966
      %v975 = vmul.f32 %v958, %v965
      %v976 = vmul.f32 %v954, %v966
      %978 = vset.pattern.permute.xlu0 0
      %979 = vperm.xlu0 %978, %v959
      %v980 = vpop.permute.xlu0 %979
      %983 = vset.pattern.permute.xlu0 0
      %984 = vperm.xlu0 %983, %v960
      %v985 = vpop.permute.xlu0 %984
      %988 = vset.pattern.permute.xlu0 0
      %989 = vperm.xlu0 %988, %v961
      %v990 = vpop.permute.xlu0 %989
      %993 = vset.pattern.permute.xlu0 0
      %994 = vperm.xlu0 %993, %v962
      %v995 = vpop.permute.xlu0 %994
      %v997 = vmul.f32 %v980, %v969
      %v998 = vmul.f32 %v980, %v970
      %v999 = vmul.f32 %v985, %v971
      %v1000 = vmul.f32 %v985, %v972
      %v1001 = vmul.f32 %v990, %v973
      %v1002 = vmul.f32 %v990, %v974
      %v1003 = vmul.f32 %v995, %v975
      %v1004 = vmul.f32 %v995, %v976
      %v1005 = vadd.f32 %v924, %v997
      %v1006 = vadd.f32 %v925, %v998
      %v1007 = vadd.f32 %v926, %v999
      %v1008 = vadd.f32 %v927, %v1000
      %v1009 = vadd.f32 %v928, %v1001
      %v1010 = vadd.f32 %v929, %v1002
      %v1011 = vadd.f32 %v930, %v1003
      %v1012 = vadd.f32 %v931, %v1004
      %1013 = vrot.lane.b32.xlu0 %v891, 16
      %v1014 = vpop.permute.xlu0 %1013
      %1015 = vrot.lane.b32.xlu0 %v893, 16
      %v1016 = vpop.permute.xlu0 %1015
      %1017 = vrot.lane.b32.xlu0 %v895, 16
      %v1018 = vpop.permute.xlu0 %1017
      %1019 = vrot.lane.b32.xlu0 %v897, 16
      %v1020 = vpop.permute.xlu0 %1019
      %1021 = vrot.lane.b32.xlu0 %v892, 16
      %v1022 = vpop.permute.xlu0 %1021
      %1023 = vrot.lane.b32.xlu0 %v894, 16
      %v1024 = vpop.permute.xlu0 %1023
      %1025 = vrot.lane.b32.xlu0 %v896, 16
      %v1026 = vpop.permute.xlu0 %1025
      %1027 = vrot.lane.b32.xlu0 %v898, 16
      %v1028 = vpop.permute.xlu0 %1027
      %vm1029 = vcmp.lt.s32.totalorder %v949, 16
      %v1030 = vsel %vm1029, %v1014, %v1022
      %v1031 = vsel %vm1029, %v1016, %v1024
      %v1032 = vsel %vm1029, %v1018, %v1026
      %v1033 = vsel %vm1029, %v1020, %v1028
      %v1034 = vsel %vm1029, %v1022, %v1014
      %v1035 = vsel %vm1029, %v1024, %v1016
      %v1036 = vsel %vm1029, %v1026, %v1018
      %v1037 = vsel %vm1029, %v1028, %v1020
      %s1038 = scalar_lea.vmem %s5, 32
      %v1039 = vld [vmem:[%s1038] sm:$0xff]
      %v1040 = vld [vmem:[%s1038 + $0x8] sm:$0xff]
      %v1041 = vld [vmem:[%s1038 + $0x10] sm:$0xff]
      %v1042 = vld [vmem:[%s1038 + $0x18] sm:$0xff]
      %s1043 = scalar_lea.vmem %s7, 1
      %v1044 = vld [vmem:[%s1043] ss:$8 sm:$0x3]
      %v1046 = vperm.slane %v1044, 0
      %v1047 = vperm.slane %v1044, 1
      %v1050 = vmul.f32 %v1034, %v1046
      %v1051 = vmul.f32 %v1030, %v1047
      %v1052 = vmul.f32 %v1035, %v1046
      %v1053 = vmul.f32 %v1031, %v1047
      %v1054 = vmul.f32 %v1036, %v1046
      %v1055 = vmul.f32 %v1032, %v1047
      %v1056 = vmul.f32 %v1037, %v1046
      %v1057 = vmul.f32 %v1033, %v1047
      %1059 = vset.pattern.permute.xlu0 0
      %1060 = vperm.xlu0 %1059, %v1039
      %v1061 = vpop.permute.xlu0 %1060
      %1064 = vset.pattern.permute.xlu0 0
      %1065 = vperm.xlu0 %1064, %v1040
      %v1066 = vpop.permute.xlu0 %1065
      %1069 = vset.pattern.permute.xlu0 0
      %1070 = vperm.xlu0 %1069, %v1041
      %v1071 = vpop.permute.xlu0 %1070
      %1074 = vset.pattern.permute.xlu0 0
      %1075 = vperm.xlu0 %1074, %v1042
      %v1076 = vpop.permute.xlu0 %1075
      %v1078 = vmul.f32 %v1061, %v1050
      %v1079 = vmul.f32 %v1061, %v1051
      %v1080 = vmul.f32 %v1066, %v1052
      %v1081 = vmul.f32 %v1066, %v1053
      %v1082 = vmul.f32 %v1071, %v1054
      %v1083 = vmul.f32 %v1071, %v1055
      %v1084 = vmul.f32 %v1076, %v1056
      %v1085 = vmul.f32 %v1076, %v1057
      %v1086 = vadd.f32 %v1005, %v1078
      %v1087 = vadd.f32 %v1006, %v1079
      %v1088 = vadd.f32 %v1007, %v1080
      %v1089 = vadd.f32 %v1008, %v1081
      %v1090 = vadd.f32 %v1009, %v1082
      %v1091 = vadd.f32 %v1010, %v1083
      %v1092 = vadd.f32 %v1011, %v1084
      %v1093 = vadd.f32 %v1012, %v1085
      %1094 = vrot.lane.b32.xlu0 %v891, 15
      %v1095 = vpop.permute.xlu0 %1094
      %1096 = vrot.lane.b32.xlu0 %v893, 15
      %v1097 = vpop.permute.xlu0 %1096
      %1098 = vrot.lane.b32.xlu0 %v895, 15
      %v1099 = vpop.permute.xlu0 %1098
      %1100 = vrot.lane.b32.xlu0 %v897, 15
      %v1101 = vpop.permute.xlu0 %1100
      %1102 = vrot.lane.b32.xlu0 %v892, 15
      %v1103 = vpop.permute.xlu0 %1102
      %1104 = vrot.lane.b32.xlu0 %v894, 15
      %v1105 = vpop.permute.xlu0 %1104
      %1106 = vrot.lane.b32.xlu0 %v896, 15
      %v1107 = vpop.permute.xlu0 %1106
      %1108 = vrot.lane.b32.xlu0 %v898, 15
      %v1109 = vpop.permute.xlu0 %1108
      %vm1110 = vcmp.lt.s32.totalorder %v949, 15
      %v1111 = vsel %vm1110, %v1095, %v1103
      %v1112 = vsel %vm1110, %v1097, %v1105
      %v1113 = vsel %vm1110, %v1099, %v1107
      %v1114 = vsel %vm1110, %v1101, %v1109
      %v1115 = vsel %vm1110, %v1103, %v1095
      %v1116 = vsel %vm1110, %v1105, %v1097
      %v1117 = vsel %vm1110, %v1107, %v1099
      %v1118 = vsel %vm1110, %v1109, %v1101
      %s1119 = scalar_lea.vmem %s5, 64
      %v1120 = vld [vmem:[%s1119] sm:$0xff]
      %v1121 = vld [vmem:[%s1119 + $0x8] sm:$0xff]
      %v1122 = vld [vmem:[%s1119 + $0x10] sm:$0xff]
      %v1123 = vld [vmem:[%s1119 + $0x18] sm:$0xff]
      %s1124 = scalar_lea.vmem %s7, 2
      %v1125 = vld [vmem:[%s1124] ss:$8 sm:$0x3]
      %v1127 = vperm.slane %v1125, 0
      %v1128 = vperm.slane %v1125, 1
      %v1131 = vmul.f32 %v1115, %v1127
      %v1132 = vmul.f32 %v1111, %v1128
      %v1133 = vmul.f32 %v1116, %v1127
      %v1134 = vmul.f32 %v1112, %v1128
      %v1135 = vmul.f32 %v1117, %v1127
      %v1136 = vmul.f32 %v1113, %v1128
      %v1137 = vmul.f32 %v1118, %v1127
      %v1138 = vmul.f32 %v1114, %v1128
      %1140 = vset.pattern.permute.xlu0 0
      %1141 = vperm.xlu0 %1140, %v1120
      %v1142 = vpop.permute.xlu0 %1141
      %1145 = vset.pattern.permute.xlu0 0
      %1146 = vperm.xlu0 %1145, %v1121
      %v1147 = vpop.permute.xlu0 %1146
      %1150 = vset.pattern.permute.xlu0 0
      %1151 = vperm.xlu0 %1150, %v1122
      %v1152 = vpop.permute.xlu0 %1151
      %1155 = vset.pattern.permute.xlu0 0
      %1156 = vperm.xlu0 %1155, %v1123
      %v1157 = vpop.permute.xlu0 %1156
      %v1159 = vmul.f32 %v1142, %v1131
      %v1160 = vmul.f32 %v1142, %v1132
      %v1161 = vmul.f32 %v1147, %v1133
      %v1162 = vmul.f32 %v1147, %v1134
      %v1163 = vmul.f32 %v1152, %v1135
      %v1164 = vmul.f32 %v1152, %v1136
      %v1165 = vmul.f32 %v1157, %v1137
      %v1166 = vmul.f32 %v1157, %v1138
      %v1167 = vadd.f32 %v1086, %v1159
      %v1168 = vadd.f32 %v1087, %v1160
      %v1169 = vadd.f32 %v1088, %v1161
      %v1170 = vadd.f32 %v1089, %v1162
      %v1171 = vadd.f32 %v1090, %v1163
      %v1172 = vadd.f32 %v1091, %v1164
      %v1173 = vadd.f32 %v1092, %v1165
      %v1174 = vadd.f32 %v1093, %v1166
      %1175 = vrot.lane.b32.xlu0 %v891, 1
      %v1176 = vpop.permute.xlu0 %1175
      %1177 = vrot.lane.b32.xlu0 %v893, 1
      %v1178 = vpop.permute.xlu0 %1177
      %1179 = vrot.lane.b32.xlu0 %v895, 1
      %v1180 = vpop.permute.xlu0 %1179
      %1181 = vrot.lane.b32.xlu0 %v897, 1
      %v1182 = vpop.permute.xlu0 %1181
      %1183 = vrot.lane.b32.xlu0 %v892, 1
      %v1184 = vpop.permute.xlu0 %1183
      %1185 = vrot.lane.b32.xlu0 %v894, 1
      %v1186 = vpop.permute.xlu0 %1185
      %1187 = vrot.lane.b32.xlu0 %v896, 1
      %v1188 = vpop.permute.xlu0 %1187
      %1189 = vrot.lane.b32.xlu0 %v898, 1
      %v1190 = vpop.permute.xlu0 %1189
      %vm1191 = vcmp.lt.s32.totalorder %v949, 1
      %v1192 = vsel %vm1191, %v1176, %v1184
      %v1193 = vsel %vm1191, %v1178, %v1186
      %v1194 = vsel %vm1191, %v1180, %v1188
      %v1195 = vsel %vm1191, %v1182, %v1190
      %v1196 = vsel %vm1191, %v1184, %v1176
      %v1197 = vsel %vm1191, %v1186, %v1178
      %v1198 = vsel %vm1191, %v1188, %v1180
      %v1199 = vsel %vm1191, %v1190, %v1182
      %s1200 = scalar_lea.vmem %s5, 96
      %v1201 = vld [vmem:[%s1200] sm:$0xff]
      %v1202 = vld [vmem:[%s1200 + $0x8] sm:$0xff]
      %v1203 = vld [vmem:[%s1200 + $0x10] sm:$0xff]
      %v1204 = vld [vmem:[%s1200 + $0x18] sm:$0xff]
      %s1205 = scalar_lea.vmem %s7, 3
      %v1206 = vld [vmem:[%s1205] ss:$8 sm:$0x3]
      %v1208 = vperm.slane %v1206, 0
      %v1209 = vperm.slane %v1206, 1
      %v1212 = vmul.f32 %v1196, %v1208
      %v1213 = vmul.f32 %v1192, %v1209
      %v1214 = vmul.f32 %v1197, %v1208
      %v1215 = vmul.f32 %v1193, %v1209
      %v1216 = vmul.f32 %v1198, %v1208
      %v1217 = vmul.f32 %v1194, %v1209
      %v1218 = vmul.f32 %v1199, %v1208
      %v1219 = vmul.f32 %v1195, %v1209
      %1221 = vset.pattern.permute.xlu0 0
      %1222 = vperm.xlu0 %1221, %v1201
      %v1223 = vpop.permute.xlu0 %1222
      %1226 = vset.pattern.permute.xlu0 0
      %1227 = vperm.xlu0 %1226, %v1202
      %v1228 = vpop.permute.xlu0 %1227
      %1231 = vset.pattern.permute.xlu0 0
      %1232 = vperm.xlu0 %1231, %v1203
      %v1233 = vpop.permute.xlu0 %1232
      %1236 = vset.pattern.permute.xlu0 0
      %1237 = vperm.xlu0 %1236, %v1204
      %v1238 = vpop.permute.xlu0 %1237
      %v1240 = vmul.f32 %v1223, %v1212
      %v1241 = vmul.f32 %v1223, %v1213
      %v1242 = vmul.f32 %v1228, %v1214
      %v1243 = vmul.f32 %v1228, %v1215
      %v1244 = vmul.f32 %v1233, %v1216
      %v1245 = vmul.f32 %v1233, %v1217
      %v1246 = vmul.f32 %v1238, %v1218
      %v1247 = vmul.f32 %v1238, %v1219
      %v1248 = vadd.f32 %v1167, %v1240
      %v1249 = vadd.f32 %v1168, %v1241
      %v1250 = vadd.f32 %v1169, %v1242
      %v1251 = vadd.f32 %v1170, %v1243
      %v1252 = vadd.f32 %v1171, %v1244
      %v1253 = vadd.f32 %v1172, %v1245
      %v1254 = vadd.f32 %v1173, %v1246
      %v1255 = vadd.f32 %v1174, %v1247
      %1256 = vrot.lane.b32.xlu0 %v891, 127
      %v1257 = vpop.permute.xlu0 %1256
      %1258 = vrot.lane.b32.xlu0 %v893, 127
      %v1259 = vpop.permute.xlu0 %1258
      %1260 = vrot.lane.b32.xlu0 %v895, 127
      %v1261 = vpop.permute.xlu0 %1260
      %1262 = vrot.lane.b32.xlu0 %v897, 127
      %v1263 = vpop.permute.xlu0 %1262
      %1264 = vrot.lane.b32.xlu0 %v892, 127
      %v1265 = vpop.permute.xlu0 %1264
      %1266 = vrot.lane.b32.xlu0 %v894, 127
      %v1267 = vpop.permute.xlu0 %1266
      %1268 = vrot.lane.b32.xlu0 %v896, 127
      %v1269 = vpop.permute.xlu0 %1268
      %1270 = vrot.lane.b32.xlu0 %v898, 127
      %v1271 = vpop.permute.xlu0 %1270
      %vm1272 = vcmp.lt.s32.totalorder %v949, 127
      %v1273 = vsel %vm1272, %v1257, %v1265
      %v1274 = vsel %vm1272, %v1259, %v1267
      %v1275 = vsel %vm1272, %v1261, %v1269
      %v1276 = vsel %vm1272, %v1263, %v1271
      %v1277 = vsel %vm1272, %v1265, %v1257
      %v1278 = vsel %vm1272, %v1267, %v1259
      %v1279 = vsel %vm1272, %v1269, %v1261
      %v1280 = vsel %vm1272, %v1271, %v1263
      %s1281 = scalar_lea.vmem %s5, 160
      %v1282 = vld [vmem:[%s1281] sm:$0xff]
      %v1283 = vld [vmem:[%s1281 + $0x8] sm:$0xff]
      %v1284 = vld [vmem:[%s1281 + $0x10] sm:$0xff]
      %v1285 = vld [vmem:[%s1281 + $0x18] sm:$0xff]
      %s1286 = scalar_lea.vmem %s7, 5
      %v1287 = vld [vmem:[%s1286] ss:$8 sm:$0x3]
      %v1289 = vperm.slane %v1287, 0
      %v1290 = vperm.slane %v1287, 1
      %v1293 = vmul.f32 %v1273, %v1289
      %v1294 = vmul.f32 %v1277, %v1290
      %v1295 = vmul.f32 %v1274, %v1289
      %v1296 = vmul.f32 %v1278, %v1290
      %v1297 = vmul.f32 %v1275, %v1289
      %v1298 = vmul.f32 %v1279, %v1290
      %v1299 = vmul.f32 %v1276, %v1289
      %v1300 = vmul.f32 %v1280, %v1290
      %1302 = vset.pattern.permute.xlu0 0
      %1303 = vperm.xlu0 %1302, %v1282
      %v1304 = vpop.permute.xlu0 %1303
      %1307 = vset.pattern.permute.xlu0 0
      %1308 = vperm.xlu0 %1307, %v1283
      %v1309 = vpop.permute.xlu0 %1308
      %1312 = vset.pattern.permute.xlu0 0
      %1313 = vperm.xlu0 %1312, %v1284
      %v1314 = vpop.permute.xlu0 %1313
      %1317 = vset.pattern.permute.xlu0 0
      %1318 = vperm.xlu0 %1317, %v1285
      %v1319 = vpop.permute.xlu0 %1318
      %v1321 = vmul.f32 %v1304, %v1293
      %v1322 = vmul.f32 %v1304, %v1294
      %v1323 = vmul.f32 %v1309, %v1295
      %v1324 = vmul.f32 %v1309, %v1296
      %v1325 = vmul.f32 %v1314, %v1297
      %v1326 = vmul.f32 %v1314, %v1298
      %v1327 = vmul.f32 %v1319, %v1299
      %v1328 = vmul.f32 %v1319, %v1300
      %v1329 = vadd.f32 %v1248, %v1321
      %v1330 = vadd.f32 %v1249, %v1322
      %v1331 = vadd.f32 %v1250, %v1323
      %v1332 = vadd.f32 %v1251, %v1324
      %v1333 = vadd.f32 %v1252, %v1325
      %v1334 = vadd.f32 %v1253, %v1326
      %v1335 = vadd.f32 %v1254, %v1327
      %v1336 = vadd.f32 %v1255, %v1328
      %1337 = vrot.lane.b32.xlu0 %v891, 113
      %v1338 = vpop.permute.xlu0 %1337
      %1339 = vrot.lane.b32.xlu0 %v893, 113
      %v1340 = vpop.permute.xlu0 %1339
      %1341 = vrot.lane.b32.xlu0 %v895, 113
      %v1342 = vpop.permute.xlu0 %1341
      %1343 = vrot.lane.b32.xlu0 %v897, 113
      %v1344 = vpop.permute.xlu0 %1343
      %1345 = vrot.lane.b32.xlu0 %v892, 113
      %v1346 = vpop.permute.xlu0 %1345
      %1347 = vrot.lane.b32.xlu0 %v894, 113
      %v1348 = vpop.permute.xlu0 %1347
      %1349 = vrot.lane.b32.xlu0 %v896, 113
      %v1350 = vpop.permute.xlu0 %1349
      %1351 = vrot.lane.b32.xlu0 %v898, 113
      %v1352 = vpop.permute.xlu0 %1351
      %vm1353 = vcmp.lt.s32.totalorder %v949, 113
      %v1354 = vsel %vm1353, %v1338, %v1346
      %v1355 = vsel %vm1353, %v1340, %v1348
      %v1356 = vsel %vm1353, %v1342, %v1350
      %v1357 = vsel %vm1353, %v1344, %v1352
      %v1358 = vsel %vm1353, %v1346, %v1338
      %v1359 = vsel %vm1353, %v1348, %v1340
      %v1360 = vsel %vm1353, %v1350, %v1342
      %v1361 = vsel %vm1353, %v1352, %v1344
      %s1362 = scalar_lea.vmem %s5, 192
      %v1363 = vld [vmem:[%s1362] sm:$0xff]
      %v1364 = vld [vmem:[%s1362 + $0x8] sm:$0xff]
      %v1365 = vld [vmem:[%s1362 + $0x10] sm:$0xff]
      %v1366 = vld [vmem:[%s1362 + $0x18] sm:$0xff]
      %s1367 = scalar_lea.vmem %s7, 6
      %v1368 = vld [vmem:[%s1367] ss:$8 sm:$0x3]
      %v1370 = vperm.slane %v1368, 0
      %v1371 = vperm.slane %v1368, 1
      %v1374 = vmul.f32 %v1354, %v1370
      %v1375 = vmul.f32 %v1358, %v1371
      %v1376 = vmul.f32 %v1355, %v1370
      %v1377 = vmul.f32 %v1359, %v1371
      %v1378 = vmul.f32 %v1356, %v1370
      %v1379 = vmul.f32 %v1360, %v1371
      %v1380 = vmul.f32 %v1357, %v1370
      %v1381 = vmul.f32 %v1361, %v1371
      %1383 = vset.pattern.permute.xlu0 0
      %1384 = vperm.xlu0 %1383, %v1363
      %v1385 = vpop.permute.xlu0 %1384
      %1388 = vset.pattern.permute.xlu0 0
      %1389 = vperm.xlu0 %1388, %v1364
      %v1390 = vpop.permute.xlu0 %1389
      %1393 = vset.pattern.permute.xlu0 0
      %1394 = vperm.xlu0 %1393, %v1365
      %v1395 = vpop.permute.xlu0 %1394
      %1398 = vset.pattern.permute.xlu0 0
      %1399 = vperm.xlu0 %1398, %v1366
      %v1400 = vpop.permute.xlu0 %1399
      %v1402 = vmul.f32 %v1385, %v1374
      %v1403 = vmul.f32 %v1385, %v1375
      %v1404 = vmul.f32 %v1390, %v1376
      %v1405 = vmul.f32 %v1390, %v1377
      %v1406 = vmul.f32 %v1395, %v1378
      %v1407 = vmul.f32 %v1395, %v1379
      %v1408 = vmul.f32 %v1400, %v1380
      %v1409 = vmul.f32 %v1400, %v1381
      %v1410 = vadd.f32 %v1329, %v1402
      %v1411 = vadd.f32 %v1330, %v1403
      %v1412 = vadd.f32 %v1331, %v1404
      %v1413 = vadd.f32 %v1332, %v1405
      %v1414 = vadd.f32 %v1333, %v1406
      %v1415 = vadd.f32 %v1334, %v1407
      %v1416 = vadd.f32 %v1335, %v1408
      %v1417 = vadd.f32 %v1336, %v1409
      %1418 = vrot.lane.b32.xlu0 %v891, 112
      %v1419 = vpop.permute.xlu0 %1418
      %1420 = vrot.lane.b32.xlu0 %v893, 112
      %v1421 = vpop.permute.xlu0 %1420
      %1422 = vrot.lane.b32.xlu0 %v895, 112
      %v1423 = vpop.permute.xlu0 %1422
      %1424 = vrot.lane.b32.xlu0 %v897, 112
      %v1425 = vpop.permute.xlu0 %1424
      %1426 = vrot.lane.b32.xlu0 %v892, 112
      %v1427 = vpop.permute.xlu0 %1426
      %1428 = vrot.lane.b32.xlu0 %v894, 112
      %v1429 = vpop.permute.xlu0 %1428
      %1430 = vrot.lane.b32.xlu0 %v896, 112
      %v1431 = vpop.permute.xlu0 %1430
      %1432 = vrot.lane.b32.xlu0 %v898, 112
      %v1433 = vpop.permute.xlu0 %1432
      %vm1434 = vcmp.lt.s32.totalorder %v949, 112
      %v1435 = vsel %vm1434, %v1419, %v1427
      %v1436 = vsel %vm1434, %v1421, %v1429
      %v1437 = vsel %vm1434, %v1423, %v1431
      %v1438 = vsel %vm1434, %v1425, %v1433
      %v1439 = vsel %vm1434, %v1427, %v1419
      %v1440 = vsel %vm1434, %v1429, %v1421
      %v1441 = vsel %vm1434, %v1431, %v1423
      %v1442 = vsel %vm1434, %v1433, %v1425
      %s1443 = scalar_lea.vmem %s5, 224
      %v1444 = vld [vmem:[%s1443] sm:$0xff]
      %v1445 = vld [vmem:[%s1443 + $0x8] sm:$0xff]
      %v1446 = vld [vmem:[%s1443 + $0x10] sm:$0xff]
      %v1447 = vld [vmem:[%s1443 + $0x18] sm:$0xff]
      %s1448 = scalar_lea.vmem %s7, 7
      %v1449 = vld [vmem:[%s1448] ss:$8 sm:$0x3]
      %v1451 = vperm.slane %v1449, 0
      %v1452 = vperm.slane %v1449, 1
      %v1455 = vmul.f32 %v1435, %v1451
      %v1456 = vmul.f32 %v1439, %v1452
      %v1457 = vmul.f32 %v1436, %v1451
      %v1458 = vmul.f32 %v1440, %v1452
      %v1459 = vmul.f32 %v1437, %v1451
      %v1460 = vmul.f32 %v1441, %v1452
      %v1461 = vmul.f32 %v1438, %v1451
      %v1462 = vmul.f32 %v1442, %v1452
      %1464 = vset.pattern.permute.xlu0 0
      %1465 = vperm.xlu0 %1464, %v1444
      %v1466 = vpop.permute.xlu0 %1465
      %1469 = vset.pattern.permute.xlu0 0
      %1470 = vperm.xlu0 %1469, %v1445
      %v1471 = vpop.permute.xlu0 %1470
      %1474 = vset.pattern.permute.xlu0 0
      %1475 = vperm.xlu0 %1474, %v1446
      %v1476 = vpop.permute.xlu0 %1475
      %1479 = vset.pattern.permute.xlu0 0
      %1480 = vperm.xlu0 %1479, %v1447
      %v1481 = vpop.permute.xlu0 %1480
      %v1483 = vmul.f32 %v1466, %v1455
      %v1484 = vmul.f32 %v1466, %v1456
      %v1485 = vmul.f32 %v1471, %v1457
      %v1486 = vmul.f32 %v1471, %v1458
      %v1487 = vmul.f32 %v1476, %v1459
      %v1488 = vmul.f32 %v1476, %v1460
      %v1489 = vmul.f32 %v1481, %v1461
      %v1490 = vmul.f32 %v1481, %v1462
      %v1491 = vadd.f32 %v1410, %v1483
      %v1492 = vadd.f32 %v1411, %v1484
      %v1493 = vadd.f32 %v1412, %v1485
      %v1494 = vadd.f32 %v1413, %v1486
      %v1495 = vadd.f32 %v1414, %v1487
      %v1496 = vadd.f32 %v1415, %v1488
      %v1497 = vadd.f32 %v1416, %v1489
      %v1498 = vadd.f32 %v1417, %v1490
      %1499 = vrot.lane.b32.xlu0 %v891, 111
      %v1500 = vpop.permute.xlu0 %1499
      %1501 = vrot.lane.b32.xlu0 %v893, 111
      %v1502 = vpop.permute.xlu0 %1501
      %1503 = vrot.lane.b32.xlu0 %v895, 111
      %v1504 = vpop.permute.xlu0 %1503
      %1505 = vrot.lane.b32.xlu0 %v897, 111
      %v1506 = vpop.permute.xlu0 %1505
      %1507 = vrot.lane.b32.xlu0 %v892, 111
      %v1508 = vpop.permute.xlu0 %1507
      %1509 = vrot.lane.b32.xlu0 %v894, 111
      %v1510 = vpop.permute.xlu0 %1509
      %1511 = vrot.lane.b32.xlu0 %v896, 111
      %v1512 = vpop.permute.xlu0 %1511
      %1513 = vrot.lane.b32.xlu0 %v898, 111
      %v1514 = vpop.permute.xlu0 %1513
      %vm1515 = vcmp.lt.s32.totalorder %v949, 111
      %v1516 = vsel %vm1515, %v1500, %v1508
      %v1517 = vsel %vm1515, %v1502, %v1510
      %v1518 = vsel %vm1515, %v1504, %v1512
      %v1519 = vsel %vm1515, %v1506, %v1514
      %v1520 = vsel %vm1515, %v1508, %v1500
      %v1521 = vsel %vm1515, %v1510, %v1502
      %v1522 = vsel %vm1515, %v1512, %v1504
      %v1523 = vsel %vm1515, %v1514, %v1506
      %s1524 = scalar_lea.vmem %s5, 256
      %v1525 = vld [vmem:[%s1524] sm:$0xff]
      %v1526 = vld [vmem:[%s1524 + $0x8] sm:$0xff]
      %v1527 = vld [vmem:[%s1524 + $0x10] sm:$0xff]
      %v1528 = vld [vmem:[%s1524 + $0x18] sm:$0xff]
      %s1529 = scalar_lea.vmem %s7, 16
      %v1530 = vld [vmem:[%s1529] ss:$8 sm:$0x3]
      %v1532 = vperm.slane %v1530, 0
      %v1533 = vperm.slane %v1530, 1
      %v1536 = vmul.f32 %v1516, %v1532
      %v1537 = vmul.f32 %v1520, %v1533
      %v1538 = vmul.f32 %v1517, %v1532
      %v1539 = vmul.f32 %v1521, %v1533
      %v1540 = vmul.f32 %v1518, %v1532
      %v1541 = vmul.f32 %v1522, %v1533
      %v1542 = vmul.f32 %v1519, %v1532
      %v1543 = vmul.f32 %v1523, %v1533
      %1545 = vset.pattern.permute.xlu0 0
      %1546 = vperm.xlu0 %1545, %v1525
      %v1547 = vpop.permute.xlu0 %1546
      %1550 = vset.pattern.permute.xlu0 0
      %1551 = vperm.xlu0 %1550, %v1526
      %v1552 = vpop.permute.xlu0 %1551
      %1555 = vset.pattern.permute.xlu0 0
      %1556 = vperm.xlu0 %1555, %v1527
      %v1557 = vpop.permute.xlu0 %1556
      %1560 = vset.pattern.permute.xlu0 0
      %1561 = vperm.xlu0 %1560, %v1528
      %v1562 = vpop.permute.xlu0 %1561
      %v1564 = vmul.f32 %v1547, %v1536
      %v1565 = vmul.f32 %v1547, %v1537
      %v1566 = vmul.f32 %v1552, %v1538
      %v1567 = vmul.f32 %v1552, %v1539
      %v1568 = vmul.f32 %v1557, %v1540
      %v1569 = vmul.f32 %v1557, %v1541
      %v1570 = vmul.f32 %v1562, %v1542
      %v1571 = vmul.f32 %v1562, %v1543
      %v1572 = vadd.f32 %v1491, %v1564
      %v1573 = vadd.f32 %v1492, %v1565
      %v1574 = vadd.f32 %v1493, %v1566
      %v1575 = vadd.f32 %v1494, %v1567
      %v1576 = vadd.f32 %v1495, %v1568
      %v1577 = vadd.f32 %v1496, %v1569
      %v1578 = vadd.f32 %v1497, %v1570
      %v1579 = vadd.f32 %v1498, %v1571
      %v1580 = vld [vmem:[%s6] sm:$0xff]
      %v1581 = vld [vmem:[%s6 + $0x8] sm:$0xff]
      %v1582 = vld [vmem:[%s6 + $0x10] sm:$0xff]
      %v1583 = vld [vmem:[%s6 + $0x18] sm:$0xff]
      %1585 = vset.pattern.permute.xlu0 0
      %1586 = vperm.xlu0 %1585, %v1580
      %v1587 = vpop.permute.xlu0 %1586
      %1590 = vset.pattern.permute.xlu0 0
      %1591 = vperm.xlu0 %1590, %v1581
      %v1592 = vpop.permute.xlu0 %1591
      %1595 = vset.pattern.permute.xlu0 0
      %1596 = vperm.xlu0 %1595, %v1582
      %v1597 = vpop.permute.xlu0 %1596
      %1600 = vset.pattern.permute.xlu0 0
      %1601 = vperm.xlu0 %1600, %v1583
      %v1602 = vpop.permute.xlu0 %1601
      %v1604 = vadd.f32 %v1572, %v1587
      %v1605 = vadd.f32 %v1573, %v1587
      %v1606 = vadd.f32 %v1574, %v1592
      %v1607 = vadd.f32 %v1575, %v1592
      %v1608 = vadd.f32 %v1576, %v1597
      %v1609 = vadd.f32 %v1577, %v1597
      %v1610 = vadd.f32 %v1578, %v1602
      %v1611 = vadd.f32 %v1579, %v1602
      %v1612 = vmax.f32 %v1604, 0.0
      %v1613 = vmax.f32 %v1605, 0.0
      %v1614 = vmax.f32 %v1606, 0.0
      %v1615 = vmax.f32 %v1607, 0.0
      %v1616 = vmax.f32 %v1608, 0.0
      %v1617 = vmax.f32 %v1609, 0.0
      %v1618 = vmax.f32 %v1610, 0.0
      %v1619 = vmax.f32 %v1611, 0.0
      %v1620 = vadd.f32 %v891, %v1612
      %v1621 = vadd.f32 %v892, %v1613
      %v1622 = vadd.f32 %v893, %v1614
      %v1623 = vadd.f32 %v894, %v1615
      %v1624 = vadd.f32 %v895, %v1616
      %v1625 = vadd.f32 %v896, %v1617
      %v1626 = vadd.f32 %v897, %v1618
      %v1627 = vadd.f32 %v898, %v1619
      %s1628 = scalar_lea.vmem %s3, 32
      %v1629 = vld [vmem:[%s1628] sm:$0xff]
      %v1630 = vld [vmem:[%s1628 + $0x8] sm:$0xff]
      %v1631 = vld [vmem:[%s1628 + $0x10] sm:$0xff]
      %v1632 = vld [vmem:[%s1628 + $0x18] sm:$0xff]
      %s1633 = scalar_lea.vmem %s4, 32
      %v1634 = vld [vmem:[%s1633] sm:$0xff]
      %v1635 = vld [vmem:[%s1633 + $0x8] sm:$0xff]
      %v1636 = vld [vmem:[%s1633 + $0x10] sm:$0xff]
      %v1637 = vld [vmem:[%s1633 + $0x18] sm:$0xff]
      %1639 = vset.pattern.permute.xlu0 0
      %1640 = vperm.xlu0 %1639, %v1634
      %v1641 = vpop.permute.xlu0 %1640
      %1644 = vset.pattern.permute.xlu0 0
      %1645 = vperm.xlu0 %1644, %v1635
      %v1646 = vpop.permute.xlu0 %1645
      %1649 = vset.pattern.permute.xlu0 0
      %1650 = vperm.xlu0 %1649, %v1636
      %v1651 = vpop.permute.xlu0 %1650
      %1654 = vset.pattern.permute.xlu0 0
      %1655 = vperm.xlu0 %1654, %v1637
      %v1656 = vpop.permute.xlu0 %1655
      %v1659 = vsel %vm820, %v1629, 0
      %v1662 = vsel %vm820, %v1630, 0
      %v1665 = vsel %vm820, %v1631, 0
      %v1668 = vsel %vm820, %v1632, 0
      %1670 = vmatpush.msra.mxu0 0.0
      %1671 = vmatpush.msra.mxu0 0.0
      %1672 = vmatpush.msra.mxu0 0.0
      %1673 = vmatpush.msra.mxu0 0.0
      %1674 = vmatpush.msra.mxu0 0.0
      %1675 = vmatpush.msra.mxu0 0.0
      %1676 = vmatpush.msra.mxu0 0.0
      %1677 = vmatpush.msra.mxu0 0.0
      %1678 = vmatpush.msra.mxu0 0.0
      %1679 = vmatpush.msra.mxu0 0.0
      %1680 = vmatpush.msra.mxu0 0.0
      %1681 = vmatpush.msra.mxu0 0.0
      %1682 = vmatpush.msra.mxu0 %v1626
      %1683 = vmatpush.msra.mxu0 %v1624
      %1684 = vmatpush.msra.mxu0 %v1622
      %1685 = vmatpush.msra.mxu0 %v1620
      %1686 = vmatmul.f32.gmra.mxu0 %v1659
      %v1687 = vpop.f32.mrf.mxu0
      %v1688 = vadd.f32 %v1641, %v1687
      %1689 = vmatmul.f32.gmra.mxu0 %v1662
      %v1690 = vpop.f32.mrf.mxu0
      %v1691 = vadd.f32 %v1646, %v1690
      %1692 = vmatmul.f32.gmra.mxu0 %v1665
      %v1693 = vpop.f32.mrf.mxu0
      %v1694 = vadd.f32 %v1651, %v1693
      %1695 = vmatmul.f32.gmra.mxu0 %v1668
      %v1696 = vpop.f32.mrf.mxu0
      %v1697 = vadd.f32 %v1656, %v1696
      %1698 = vdwg.mxu0
      %1699 = vmatpush.msra.mxu0 0.0
      %1700 = vmatpush.msra.mxu0 0.0
      %1701 = vmatpush.msra.mxu0 0.0
      %1702 = vmatpush.msra.mxu0 0.0
      %1703 = vmatpush.msra.mxu0 0.0
      %1704 = vmatpush.msra.mxu0 0.0
      %1705 = vmatpush.msra.mxu0 0.0
      %1706 = vmatpush.msra.mxu0 0.0
      %1707 = vmatpush.msra.mxu0 0.0
      %1708 = vmatpush.msra.mxu0 0.0
      %1709 = vmatpush.msra.mxu0 0.0
      %1710 = vmatpush.msra.mxu0 0.0
      %1711 = vmatpush.msra.mxu0 %v1627
      %1712 = vmatpush.msra.mxu0 %v1625
      %1713 = vmatpush.msra.mxu0 %v1623
      %1714 = vmatpush.msra.mxu0 %v1621
      %1715 = vmatmul.f32.gmra.mxu0 %v1659
      %v1716 = vpop.f32.mrf.mxu0
      %v1717 = vadd.f32 %v1641, %v1716
      %1718 = vmatmul.f32.gmra.mxu0 %v1662
      %v1719 = vpop.f32.mrf.mxu0
      %v1720 = vadd.f32 %v1646, %v1719
      %1721 = vmatmul.f32.gmra.mxu0 %v1665
      %v1722 = vpop.f32.mrf.mxu0
      %v1723 = vadd.f32 %v1651, %v1722
      %1724 = vmatmul.f32.gmra.mxu0 %v1668
      %v1725 = vpop.f32.mrf.mxu0
      %v1726 = vadd.f32 %v1656, %v1725
      %1727 = vdwg.mxu0
      %v1728 = vmax.f32 %v1688, 0.0
      %v1729 = vmax.f32 %v1717, 0.0
      %v1730 = vmax.f32 %v1691, 0.0
      %v1731 = vmax.f32 %v1720, 0.0
      %v1732 = vmax.f32 %v1694, 0.0
      %v1733 = vmax.f32 %v1723, 0.0
      %v1734 = vmax.f32 %v1697, 0.0
      %v1735 = vmax.f32 %v1726, 0.0
      %s1736 = scalar_lea.vmem %s5, 416
      %v1737 = vld [vmem:[%s1736] sm:$0xff]
      %v1738 = vld [vmem:[%s1736 + $0x8] sm:$0xff]
      %v1739 = vld [vmem:[%s1736 + $0x10] sm:$0xff]
      %v1740 = vld [vmem:[%s1736 + $0x18] sm:$0xff]
      %1742 = vset.pattern.permute.xlu0 0
      %1743 = vperm.xlu0 %1742, %v1737
      %v1744 = vpop.permute.xlu0 %1743
      %1747 = vset.pattern.permute.xlu0 0
      %1748 = vperm.xlu0 %1747, %v1738
      %v1749 = vpop.permute.xlu0 %1748
      %1752 = vset.pattern.permute.xlu0 0
      %1753 = vperm.xlu0 %1752, %v1739
      %v1754 = vpop.permute.xlu0 %1753
      %1757 = vset.pattern.permute.xlu0 0
      %1758 = vperm.xlu0 %1757, %v1740
      %v1759 = vpop.permute.xlu0 %1758
      %v1761 = vmul.f32 %v1744, %v1728
      %v1762 = vmul.f32 %v1744, %v1729
      %v1763 = vmul.f32 %v1749, %v1730
      %v1764 = vmul.f32 %v1749, %v1731
      %v1765 = vmul.f32 %v1754, %v1732
      %v1766 = vmul.f32 %v1754, %v1733
      %v1767 = vmul.f32 %v1759, %v1734
      %v1768 = vmul.f32 %v1759, %v1735
      %1769 = vrot.lane.b32.xlu0 %v1728, 17
      %v1770 = vpop.permute.xlu0 %1769
      %1771 = vrot.lane.b32.xlu0 %v1730, 17
      %v1772 = vpop.permute.xlu0 %1771
      %1773 = vrot.lane.b32.xlu0 %v1732, 17
      %v1774 = vpop.permute.xlu0 %1773
      %1775 = vrot.lane.b32.xlu0 %v1734, 17
      %v1776 = vpop.permute.xlu0 %1775
      %1777 = vrot.lane.b32.xlu0 %v1729, 17
      %v1778 = vpop.permute.xlu0 %1777
      %1779 = vrot.lane.b32.xlu0 %v1731, 17
      %v1780 = vpop.permute.xlu0 %1779
      %1781 = vrot.lane.b32.xlu0 %v1733, 17
      %v1782 = vpop.permute.xlu0 %1781
      %1783 = vrot.lane.b32.xlu0 %v1735, 17
      %v1784 = vpop.permute.xlu0 %1783
      %v1785 = vsel %vm950, %v1770, %v1778
      %v1786 = vsel %vm950, %v1772, %v1780
      %v1787 = vsel %vm950, %v1774, %v1782
      %v1788 = vsel %vm950, %v1776, %v1784
      %v1789 = vsel %vm950, %v1778, %v1770
      %v1790 = vsel %vm950, %v1780, %v1772
      %v1791 = vsel %vm950, %v1782, %v1774
      %v1792 = vsel %vm950, %v1784, %v1776
      %s1793 = scalar_lea.vmem %s5, 288
      %v1794 = vld [vmem:[%s1793] sm:$0xff]
      %v1795 = vld [vmem:[%s1793 + $0x8] sm:$0xff]
      %v1796 = vld [vmem:[%s1793 + $0x10] sm:$0xff]
      %v1797 = vld [vmem:[%s1793 + $0x18] sm:$0xff]
      %v1798 = vmul.f32 %v1789, %v965
      %v1799 = vmul.f32 %v1785, %v966
      %v1800 = vmul.f32 %v1790, %v965
      %v1801 = vmul.f32 %v1786, %v966
      %v1802 = vmul.f32 %v1791, %v965
      %v1803 = vmul.f32 %v1787, %v966
      %v1804 = vmul.f32 %v1792, %v965
      %v1805 = vmul.f32 %v1788, %v966
      %1807 = vset.pattern.permute.xlu0 0
      %1808 = vperm.xlu0 %1807, %v1794
      %v1809 = vpop.permute.xlu0 %1808
      %1812 = vset.pattern.permute.xlu0 0
      %1813 = vperm.xlu0 %1812, %v1795
      %v1814 = vpop.permute.xlu0 %1813
      %1817 = vset.pattern.permute.xlu0 0
      %1818 = vperm.xlu0 %1817, %v1796
      %v1819 = vpop.permute.xlu0 %1818
      %1822 = vset.pattern.permute.xlu0 0
      %1823 = vperm.xlu0 %1822, %v1797
      %v1824 = vpop.permute.xlu0 %1823
      %v1826 = vmul.f32 %v1809, %v1798
      %v1827 = vmul.f32 %v1809, %v1799
      %v1828 = vmul.f32 %v1814, %v1800
      %v1829 = vmul.f32 %v1814, %v1801
      %v1830 = vmul.f32 %v1819, %v1802
      %v1831 = vmul.f32 %v1819, %v1803
      %v1832 = vmul.f32 %v1824, %v1804
      %v1833 = vmul.f32 %v1824, %v1805
      %v1834 = vadd.f32 %v1761, %v1826
      %v1835 = vadd.f32 %v1762, %v1827
      %v1836 = vadd.f32 %v1763, %v1828
      %v1837 = vadd.f32 %v1764, %v1829
      %v1838 = vadd.f32 %v1765, %v1830
      %v1839 = vadd.f32 %v1766, %v1831
      %v1840 = vadd.f32 %v1767, %v1832
      %v1841 = vadd.f32 %v1768, %v1833
      %1842 = vrot.lane.b32.xlu0 %v1728, 16
      %v1843 = vpop.permute.xlu0 %1842
      %1844 = vrot.lane.b32.xlu0 %v1730, 16
      %v1845 = vpop.permute.xlu0 %1844
      %1846 = vrot.lane.b32.xlu0 %v1732, 16
      %v1847 = vpop.permute.xlu0 %1846
      %1848 = vrot.lane.b32.xlu0 %v1734, 16
      %v1849 = vpop.permute.xlu0 %1848
      %1850 = vrot.lane.b32.xlu0 %v1729, 16
      %v1851 = vpop.permute.xlu0 %1850
      %1852 = vrot.lane.b32.xlu0 %v1731, 16
      %v1853 = vpop.permute.xlu0 %1852
      %1854 = vrot.lane.b32.xlu0 %v1733, 16
      %v1855 = vpop.permute.xlu0 %1854
      %1856 = vrot.lane.b32.xlu0 %v1735, 16
      %v1857 = vpop.permute.xlu0 %1856
      %v1858 = vsel %vm1029, %v1843, %v1851
      %v1859 = vsel %vm1029, %v1845, %v1853
      %v1860 = vsel %vm1029, %v1847, %v1855
      %v1861 = vsel %vm1029, %v1849, %v1857
      %v1862 = vsel %vm1029, %v1851, %v1843
      %v1863 = vsel %vm1029, %v1853, %v1845
      %v1864 = vsel %vm1029, %v1855, %v1847
      %v1865 = vsel %vm1029, %v1857, %v1849
      %s1866 = scalar_lea.vmem %s5, 320
      %v1867 = vld [vmem:[%s1866] sm:$0xff]
      %v1868 = vld [vmem:[%s1866 + $0x8] sm:$0xff]
      %v1869 = vld [vmem:[%s1866 + $0x10] sm:$0xff]
      %v1870 = vld [vmem:[%s1866 + $0x18] sm:$0xff]
      %v1871 = vmul.f32 %v1862, %v1046
      %v1872 = vmul.f32 %v1858, %v1047
      %v1873 = vmul.f32 %v1863, %v1046
      %v1874 = vmul.f32 %v1859, %v1047
      %v1875 = vmul.f32 %v1864, %v1046
      %v1876 = vmul.f32 %v1860, %v1047
      %v1877 = vmul.f32 %v1865, %v1046
      %v1878 = vmul.f32 %v1861, %v1047
      %1880 = vset.pattern.permute.xlu0 0
      %1881 = vperm.xlu0 %1880, %v1867
      %v1882 = vpop.permute.xlu0 %1881
      %1885 = vset.pattern.permute.xlu0 0
      %1886 = vperm.xlu0 %1885, %v1868
      %v1887 = vpop.permute.xlu0 %1886
      %1890 = vset.pattern.permute.xlu0 0
      %1891 = vperm.xlu0 %1890, %v1869
      %v1892 = vpop.permute.xlu0 %1891
      %1895 = vset.pattern.permute.xlu0 0
      %1896 = vperm.xlu0 %1895, %v1870
      %v1897 = vpop.permute.xlu0 %1896
      %v1899 = vmul.f32 %v1882, %v1871
      %v1900 = vmul.f32 %v1882, %v1872
      %v1901 = vmul.f32 %v1887, %v1873
      %v1902 = vmul.f32 %v1887, %v1874
      %v1903 = vmul.f32 %v1892, %v1875
      %v1904 = vmul.f32 %v1892, %v1876
      %v1905 = vmul.f32 %v1897, %v1877
      %v1906 = vmul.f32 %v1897, %v1878
      %v1907 = vadd.f32 %v1834, %v1899
      %v1908 = vadd.f32 %v1835, %v1900
      %v1909 = vadd.f32 %v1836, %v1901
      %v1910 = vadd.f32 %v1837, %v1902
      %v1911 = vadd.f32 %v1838, %v1903
      %v1912 = vadd.f32 %v1839, %v1904
      %v1913 = vadd.f32 %v1840, %v1905
      %v1914 = vadd.f32 %v1841, %v1906
      %1915 = vrot.lane.b32.xlu0 %v1728, 15
      %v1916 = vpop.permute.xlu0 %1915
      %1917 = vrot.lane.b32.xlu0 %v1730, 15
      %v1918 = vpop.permute.xlu0 %1917
      %1919 = vrot.lane.b32.xlu0 %v1732, 15
      %v1920 = vpop.permute.xlu0 %1919
      %1921 = vrot.lane.b32.xlu0 %v1734, 15
      %v1922 = vpop.permute.xlu0 %1921
      %1923 = vrot.lane.b32.xlu0 %v1729, 15
      %v1924 = vpop.permute.xlu0 %1923
      %1925 = vrot.lane.b32.xlu0 %v1731, 15
      %v1926 = vpop.permute.xlu0 %1925
      %1927 = vrot.lane.b32.xlu0 %v1733, 15
      %v1928 = vpop.permute.xlu0 %1927
      %1929 = vrot.lane.b32.xlu0 %v1735, 15
      %v1930 = vpop.permute.xlu0 %1929
      %v1931 = vsel %vm1110, %v1916, %v1924
      %v1932 = vsel %vm1110, %v1918, %v1926
      %v1933 = vsel %vm1110, %v1920, %v1928
      %v1934 = vsel %vm1110, %v1922, %v1930
      %v1935 = vsel %vm1110, %v1924, %v1916
      %v1936 = vsel %vm1110, %v1926, %v1918
      %v1937 = vsel %vm1110, %v1928, %v1920
      %v1938 = vsel %vm1110, %v1930, %v1922
      %s1939 = scalar_lea.vmem %s5, 352
      %v1940 = vld [vmem:[%s1939] sm:$0xff]
      %v1941 = vld [vmem:[%s1939 + $0x8] sm:$0xff]
      %v1942 = vld [vmem:[%s1939 + $0x10] sm:$0xff]
      %v1943 = vld [vmem:[%s1939 + $0x18] sm:$0xff]
      %v1944 = vmul.f32 %v1935, %v1127
      %v1945 = vmul.f32 %v1931, %v1128
      %v1946 = vmul.f32 %v1936, %v1127
      %v1947 = vmul.f32 %v1932, %v1128
      %v1948 = vmul.f32 %v1937, %v1127
      %v1949 = vmul.f32 %v1933, %v1128
      %v1950 = vmul.f32 %v1938, %v1127
      %v1951 = vmul.f32 %v1934, %v1128
      %1953 = vset.pattern.permute.xlu0 0
      %1954 = vperm.xlu0 %1953, %v1940
      %v1955 = vpop.permute.xlu0 %1954
      %1958 = vset.pattern.permute.xlu0 0
      %1959 = vperm.xlu0 %1958, %v1941
      %v1960 = vpop.permute.xlu0 %1959
      %1963 = vset.pattern.permute.xlu0 0
      %1964 = vperm.xlu0 %1963, %v1942
      %v1965 = vpop.permute.xlu0 %1964
      %1968 = vset.pattern.permute.xlu0 0
      %1969 = vperm.xlu0 %1968, %v1943
      %v1970 = vpop.permute.xlu0 %1969
      %v1972 = vmul.f32 %v1955, %v1944
      %v1973 = vmul.f32 %v1955, %v1945
      %v1974 = vmul.f32 %v1960, %v1946
      %v1975 = vmul.f32 %v1960, %v1947
      %v1976 = vmul.f32 %v1965, %v1948
      %v1977 = vmul.f32 %v1965, %v1949
      %v1978 = vmul.f32 %v1970, %v1950
      %v1979 = vmul.f32 %v1970, %v1951
      %v1980 = vadd.f32 %v1907, %v1972
      %v1981 = vadd.f32 %v1908, %v1973
      %v1982 = vadd.f32 %v1909, %v1974
      %v1983 = vadd.f32 %v1910, %v1975
      %v1984 = vadd.f32 %v1911, %v1976
      %v1985 = vadd.f32 %v1912, %v1977
      %v1986 = vadd.f32 %v1913, %v1978
      %v1987 = vadd.f32 %v1914, %v1979
      %1988 = vrot.lane.b32.xlu0 %v1728, 1
      %v1989 = vpop.permute.xlu0 %1988
      %1990 = vrot.lane.b32.xlu0 %v1730, 1
      %v1991 = vpop.permute.xlu0 %1990
      %1992 = vrot.lane.b32.xlu0 %v1732, 1
      %v1993 = vpop.permute.xlu0 %1992
      %1994 = vrot.lane.b32.xlu0 %v1734, 1
      %v1995 = vpop.permute.xlu0 %1994
      %1996 = vrot.lane.b32.xlu0 %v1729, 1
      %v1997 = vpop.permute.xlu0 %1996
      %1998 = vrot.lane.b32.xlu0 %v1731, 1
      %v1999 = vpop.permute.xlu0 %1998
      %2000 = vrot.lane.b32.xlu0 %v1733, 1
      %v2001 = vpop.permute.xlu0 %2000
      %2002 = vrot.lane.b32.xlu0 %v1735, 1
      %v2003 = vpop.permute.xlu0 %2002
      %v2004 = vsel %vm1191, %v1989, %v1997
      %v2005 = vsel %vm1191, %v1991, %v1999
      %v2006 = vsel %vm1191, %v1993, %v2001
      %v2007 = vsel %vm1191, %v1995, %v2003
      %v2008 = vsel %vm1191, %v1997, %v1989
      %v2009 = vsel %vm1191, %v1999, %v1991
      %v2010 = vsel %vm1191, %v2001, %v1993
      %v2011 = vsel %vm1191, %v2003, %v1995
      %s2012 = scalar_lea.vmem %s5, 384
      %v2013 = vld [vmem:[%s2012] sm:$0xff]
      %v2014 = vld [vmem:[%s2012 + $0x8] sm:$0xff]
      %v2015 = vld [vmem:[%s2012 + $0x10] sm:$0xff]
      %v2016 = vld [vmem:[%s2012 + $0x18] sm:$0xff]
      %v2017 = vmul.f32 %v2008, %v1208
      %v2018 = vmul.f32 %v2004, %v1209
      %v2019 = vmul.f32 %v2009, %v1208
      %v2020 = vmul.f32 %v2005, %v1209
      %v2021 = vmul.f32 %v2010, %v1208
      %v2022 = vmul.f32 %v2006, %v1209
      %v2023 = vmul.f32 %v2011, %v1208
      %v2024 = vmul.f32 %v2007, %v1209
      %2026 = vset.pattern.permute.xlu0 0
      %2027 = vperm.xlu0 %2026, %v2013
      %v2028 = vpop.permute.xlu0 %2027
      %2031 = vset.pattern.permute.xlu0 0
      %2032 = vperm.xlu0 %2031, %v2014
      %v2033 = vpop.permute.xlu0 %2032
      %2036 = vset.pattern.permute.xlu0 0
      %2037 = vperm.xlu0 %2036, %v2015
      %v2038 = vpop.permute.xlu0 %2037
      %2041 = vset.pattern.permute.xlu0 0
      %2042 = vperm.xlu0 %2041, %v2016
      %v2043 = vpop.permute.xlu0 %2042
      %v2045 = vmul.f32 %v2028, %v2017
      %v2046 = vmul.f32 %v2028, %v2018
      %v2047 = vmul.f32 %v2033, %v2019
      %v2048 = vmul.f32 %v2033, %v2020
      %v2049 = vmul.f32 %v2038, %v2021
      %v2050 = vmul.f32 %v2038, %v2022
      %v2051 = vmul.f32 %v2043, %v2023
      %v2052 = vmul.f32 %v2043, %v2024
      %v2053 = vadd.f32 %v1980, %v2045
      %v2054 = vadd.f32 %v1981, %v2046
      %v2055 = vadd.f32 %v1982, %v2047
      %v2056 = vadd.f32 %v1983, %v2048
      %v2057 = vadd.f32 %v1984, %v2049
      %v2058 = vadd.f32 %v1985, %v2050
      %v2059 = vadd.f32 %v1986, %v2051
      %v2060 = vadd.f32 %v1987, %v2052
      %2061 = vrot.lane.b32.xlu0 %v1728, 127
      %v2062 = vpop.permute.xlu0 %2061
      %2063 = vrot.lane.b32.xlu0 %v1730, 127
      %v2064 = vpop.permute.xlu0 %2063
      %2065 = vrot.lane.b32.xlu0 %v1732, 127
      %v2066 = vpop.permute.xlu0 %2065
      %2067 = vrot.lane.b32.xlu0 %v1734, 127
      %v2068 = vpop.permute.xlu0 %2067
      %2069 = vrot.lane.b32.xlu0 %v1729, 127
      %v2070 = vpop.permute.xlu0 %2069
      %2071 = vrot.lane.b32.xlu0 %v1731, 127
      %v2072 = vpop.permute.xlu0 %2071
      %2073 = vrot.lane.b32.xlu0 %v1733, 127
      %v2074 = vpop.permute.xlu0 %2073
      %2075 = vrot.lane.b32.xlu0 %v1735, 127
      %v2076 = vpop.permute.xlu0 %2075
      %v2077 = vsel %vm1272, %v2062, %v2070
      %v2078 = vsel %vm1272, %v2064, %v2072
      %v2079 = vsel %vm1272, %v2066, %v2074
      %v2080 = vsel %vm1272, %v2068, %v2076
      %v2081 = vsel %vm1272, %v2070, %v2062
      %v2082 = vsel %vm1272, %v2072, %v2064
      %v2083 = vsel %vm1272, %v2074, %v2066
      %v2084 = vsel %vm1272, %v2076, %v2068
      %s2085 = scalar_lea.vmem %s5, 448
      %v2086 = vld [vmem:[%s2085] sm:$0xff]
      %v2087 = vld [vmem:[%s2085 + $0x8] sm:$0xff]
      %v2088 = vld [vmem:[%s2085 + $0x10] sm:$0xff]
      %v2089 = vld [vmem:[%s2085 + $0x18] sm:$0xff]
      %v2090 = vmul.f32 %v2077, %v1289
      %v2091 = vmul.f32 %v2081, %v1290
      %v2092 = vmul.f32 %v2078, %v1289
      %v2093 = vmul.f32 %v2082, %v1290
      %v2094 = vmul.f32 %v2079, %v1289
      %v2095 = vmul.f32 %v2083, %v1290
      %v2096 = vmul.f32 %v2080, %v1289
      %v2097 = vmul.f32 %v2084, %v1290
      %2099 = vset.pattern.permute.xlu0 0
      %2100 = vperm.xlu0 %2099, %v2086
      %v2101 = vpop.permute.xlu0 %2100
      %2104 = vset.pattern.permute.xlu0 0
      %2105 = vperm.xlu0 %2104, %v2087
      %v2106 = vpop.permute.xlu0 %2105
      %2109 = vset.pattern.permute.xlu0 0
      %2110 = vperm.xlu0 %2109, %v2088
      %v2111 = vpop.permute.xlu0 %2110
      %2114 = vset.pattern.permute.xlu0 0
      %2115 = vperm.xlu0 %2114, %v2089
      %v2116 = vpop.permute.xlu0 %2115
      %v2118 = vmul.f32 %v2101, %v2090
      %v2119 = vmul.f32 %v2101, %v2091
      %v2120 = vmul.f32 %v2106, %v2092
      %v2121 = vmul.f32 %v2106, %v2093
      %v2122 = vmul.f32 %v2111, %v2094
      %v2123 = vmul.f32 %v2111, %v2095
      %v2124 = vmul.f32 %v2116, %v2096
      %v2125 = vmul.f32 %v2116, %v2097
      %v2126 = vadd.f32 %v2053, %v2118
      %v2127 = vadd.f32 %v2054, %v2119
      %v2128 = vadd.f32 %v2055, %v2120
      %v2129 = vadd.f32 %v2056, %v2121
      %v2130 = vadd.f32 %v2057, %v2122
      %v2131 = vadd.f32 %v2058, %v2123
      %v2132 = vadd.f32 %v2059, %v2124
      %v2133 = vadd.f32 %v2060, %v2125
      %2134 = vrot.lane.b32.xlu0 %v1728, 113
      %v2135 = vpop.permute.xlu0 %2134
      %2136 = vrot.lane.b32.xlu0 %v1730, 113
      %v2137 = vpop.permute.xlu0 %2136
      %2138 = vrot.lane.b32.xlu0 %v1732, 113
      %v2139 = vpop.permute.xlu0 %2138
      %2140 = vrot.lane.b32.xlu0 %v1734, 113
      %v2141 = vpop.permute.xlu0 %2140
      %2142 = vrot.lane.b32.xlu0 %v1729, 113
      %v2143 = vpop.permute.xlu0 %2142
      %2144 = vrot.lane.b32.xlu0 %v1731, 113
      %v2145 = vpop.permute.xlu0 %2144
      %2146 = vrot.lane.b32.xlu0 %v1733, 113
      %v2147 = vpop.permute.xlu0 %2146
      %2148 = vrot.lane.b32.xlu0 %v1735, 113
      %v2149 = vpop.permute.xlu0 %2148
      %v2150 = vsel %vm1353, %v2135, %v2143
      %v2151 = vsel %vm1353, %v2137, %v2145
      %v2152 = vsel %vm1353, %v2139, %v2147
      %v2153 = vsel %vm1353, %v2141, %v2149
      %v2154 = vsel %vm1353, %v2143, %v2135
      %v2155 = vsel %vm1353, %v2145, %v2137
      %v2156 = vsel %vm1353, %v2147, %v2139
      %v2157 = vsel %vm1353, %v2149, %v2141
      %s2158 = scalar_lea.vmem %s5, 480
      %v2159 = vld [vmem:[%s2158] sm:$0xff]
      %v2160 = vld [vmem:[%s2158 + $0x8] sm:$0xff]
      %v2161 = vld [vmem:[%s2158 + $0x10] sm:$0xff]
      %v2162 = vld [vmem:[%s2158 + $0x18] sm:$0xff]
      %v2163 = vmul.f32 %v2150, %v1370
      %v2164 = vmul.f32 %v2154, %v1371
      %v2165 = vmul.f32 %v2151, %v1370
      %v2166 = vmul.f32 %v2155, %v1371
      %v2167 = vmul.f32 %v2152, %v1370
      %v2168 = vmul.f32 %v2156, %v1371
      %v2169 = vmul.f32 %v2153, %v1370
      %v2170 = vmul.f32 %v2157, %v1371
      %2172 = vset.pattern.permute.xlu0 0
      %2173 = vperm.xlu0 %2172, %v2159
      %v2174 = vpop.permute.xlu0 %2173
      %2177 = vset.pattern.permute.xlu0 0
      %2178 = vperm.xlu0 %2177, %v2160
      %v2179 = vpop.permute.xlu0 %2178
      %2182 = vset.pattern.permute.xlu0 0
      %2183 = vperm.xlu0 %2182, %v2161
      %v2184 = vpop.permute.xlu0 %2183
      %2187 = vset.pattern.permute.xlu0 0
      %2188 = vperm.xlu0 %2187, %v2162
      %v2189 = vpop.permute.xlu0 %2188
      %v2191 = vmul.f32 %v2174, %v2163
      %v2192 = vmul.f32 %v2174, %v2164
      %v2193 = vmul.f32 %v2179, %v2165
      %v2194 = vmul.f32 %v2179, %v2166
      %v2195 = vmul.f32 %v2184, %v2167
      %v2196 = vmul.f32 %v2184, %v2168
      %v2197 = vmul.f32 %v2189, %v2169
      %v2198 = vmul.f32 %v2189, %v2170
      %v2199 = vadd.f32 %v2126, %v2191
      %v2200 = vadd.f32 %v2127, %v2192
      %v2201 = vadd.f32 %v2128, %v2193
      %v2202 = vadd.f32 %v2129, %v2194
      %v2203 = vadd.f32 %v2130, %v2195
      %v2204 = vadd.f32 %v2131, %v2196
      %v2205 = vadd.f32 %v2132, %v2197
      %v2206 = vadd.f32 %v2133, %v2198
      %2207 = vrot.lane.b32.xlu0 %v1728, 112
      %v2208 = vpop.permute.xlu0 %2207
      %2209 = vrot.lane.b32.xlu0 %v1730, 112
      %v2210 = vpop.permute.xlu0 %2209
      %2211 = vrot.lane.b32.xlu0 %v1732, 112
      %v2212 = vpop.permute.xlu0 %2211
      %2213 = vrot.lane.b32.xlu0 %v1734, 112
      %v2214 = vpop.permute.xlu0 %2213
      %2215 = vrot.lane.b32.xlu0 %v1729, 112
      %v2216 = vpop.permute.xlu0 %2215
      %2217 = vrot.lane.b32.xlu0 %v1731, 112
      %v2218 = vpop.permute.xlu0 %2217
      %2219 = vrot.lane.b32.xlu0 %v1733, 112
      %v2220 = vpop.permute.xlu0 %2219
      %2221 = vrot.lane.b32.xlu0 %v1735, 112
      %v2222 = vpop.permute.xlu0 %2221
      %v2223 = vsel %vm1434, %v2208, %v2216
      %v2224 = vsel %vm1434, %v2210, %v2218
      %v2225 = vsel %vm1434, %v2212, %v2220
      %v2226 = vsel %vm1434, %v2214, %v2222
      %v2227 = vsel %vm1434, %v2216, %v2208
      %v2228 = vsel %vm1434, %v2218, %v2210
      %v2229 = vsel %vm1434, %v2220, %v2212
      %v2230 = vsel %vm1434, %v2222, %v2214
      %s2231 = scalar_lea.vmem %s5, 512
      %v2232 = vld [vmem:[%s2231] sm:$0xff]
      %v2233 = vld [vmem:[%s2231 + $0x8] sm:$0xff]
      %v2234 = vld [vmem:[%s2231 + $0x10] sm:$0xff]
      %v2235 = vld [vmem:[%s2231 + $0x18] sm:$0xff]
      %v2236 = vmul.f32 %v2223, %v1451
      %v2237 = vmul.f32 %v2227, %v1452
      %v2238 = vmul.f32 %v2224, %v1451
      %v2239 = vmul.f32 %v2228, %v1452
      %v2240 = vmul.f32 %v2225, %v1451
      %v2241 = vmul.f32 %v2229, %v1452
      %v2242 = vmul.f32 %v2226, %v1451
      %v2243 = vmul.f32 %v2230, %v1452
      %2245 = vset.pattern.permute.xlu0 0
      %2246 = vperm.xlu0 %2245, %v2232
      %v2247 = vpop.permute.xlu0 %2246
      %2250 = vset.pattern.permute.xlu0 0
      %2251 = vperm.xlu0 %2250, %v2233
      %v2252 = vpop.permute.xlu0 %2251
      %2255 = vset.pattern.permute.xlu0 0
      %2256 = vperm.xlu0 %2255, %v2234
      %v2257 = vpop.permute.xlu0 %2256
      %2260 = vset.pattern.permute.xlu0 0
      %2261 = vperm.xlu0 %2260, %v2235
      %v2262 = vpop.permute.xlu0 %2261
      %v2264 = vmul.f32 %v2247, %v2236
      %v2265 = vmul.f32 %v2247, %v2237
      %v2266 = vmul.f32 %v2252, %v2238
      %v2267 = vmul.f32 %v2252, %v2239
      %v2268 = vmul.f32 %v2257, %v2240
      %v2269 = vmul.f32 %v2257, %v2241
      %v2270 = vmul.f32 %v2262, %v2242
      %v2271 = vmul.f32 %v2262, %v2243
      %v2272 = vadd.f32 %v2199, %v2264
      %v2273 = vadd.f32 %v2200, %v2265
      %v2274 = vadd.f32 %v2201, %v2266
      %v2275 = vadd.f32 %v2202, %v2267
      %v2276 = vadd.f32 %v2203, %v2268
      %v2277 = vadd.f32 %v2204, %v2269
      %v2278 = vadd.f32 %v2205, %v2270
      %v2279 = vadd.f32 %v2206, %v2271
      %2280 = vrot.lane.b32.xlu0 %v1728, 111
      %v2281 = vpop.permute.xlu0 %2280
      %2282 = vrot.lane.b32.xlu0 %v1730, 111
      %v2283 = vpop.permute.xlu0 %2282
      %2284 = vrot.lane.b32.xlu0 %v1732, 111
      %v2285 = vpop.permute.xlu0 %2284
      %2286 = vrot.lane.b32.xlu0 %v1734, 111
      %v2287 = vpop.permute.xlu0 %2286
      %2288 = vrot.lane.b32.xlu0 %v1729, 111
      %v2289 = vpop.permute.xlu0 %2288
      %2290 = vrot.lane.b32.xlu0 %v1731, 111
      %v2291 = vpop.permute.xlu0 %2290
      %2292 = vrot.lane.b32.xlu0 %v1733, 111
      %v2293 = vpop.permute.xlu0 %2292
      %2294 = vrot.lane.b32.xlu0 %v1735, 111
      %v2295 = vpop.permute.xlu0 %2294
      %v2296 = vsel %vm1515, %v2281, %v2289
      %v2297 = vsel %vm1515, %v2283, %v2291
      %v2298 = vsel %vm1515, %v2285, %v2293
      %v2299 = vsel %vm1515, %v2287, %v2295
      %v2300 = vsel %vm1515, %v2289, %v2281
      %v2301 = vsel %vm1515, %v2291, %v2283
      %v2302 = vsel %vm1515, %v2293, %v2285
      %v2303 = vsel %vm1515, %v2295, %v2287
      %s2304 = scalar_lea.vmem %s5, 544
      %v2305 = vld [vmem:[%s2304] sm:$0xff]
      %v2306 = vld [vmem:[%s2304 + $0x8] sm:$0xff]
      %v2307 = vld [vmem:[%s2304 + $0x10] sm:$0xff]
      %v2308 = vld [vmem:[%s2304 + $0x18] sm:$0xff]
      %v2309 = vmul.f32 %v2296, %v1532
      %v2310 = vmul.f32 %v2300, %v1533
      %v2311 = vmul.f32 %v2297, %v1532
      %v2312 = vmul.f32 %v2301, %v1533
      %v2313 = vmul.f32 %v2298, %v1532
      %v2314 = vmul.f32 %v2302, %v1533
      %v2315 = vmul.f32 %v2299, %v1532
      %v2316 = vmul.f32 %v2303, %v1533
      %2318 = vset.pattern.permute.xlu0 0
      %2319 = vperm.xlu0 %2318, %v2305
      %v2320 = vpop.permute.xlu0 %2319
      %2323 = vset.pattern.permute.xlu0 0
      %2324 = vperm.xlu0 %2323, %v2306
      %v2325 = vpop.permute.xlu0 %2324
      %2328 = vset.pattern.permute.xlu0 0
      %2329 = vperm.xlu0 %2328, %v2307
      %v2330 = vpop.permute.xlu0 %2329
      %2333 = vset.pattern.permute.xlu0 0
      %2334 = vperm.xlu0 %2333, %v2308
      %v2335 = vpop.permute.xlu0 %2334
      %v2337 = vmul.f32 %v2320, %v2309
      %v2338 = vmul.f32 %v2320, %v2310
      %v2339 = vmul.f32 %v2325, %v2311
      %v2340 = vmul.f32 %v2325, %v2312
      %v2341 = vmul.f32 %v2330, %v2313
      %v2342 = vmul.f32 %v2330, %v2314
      %v2343 = vmul.f32 %v2335, %v2315
      %v2344 = vmul.f32 %v2335, %v2316
      %v2345 = vadd.f32 %v2272, %v2337
      %v2346 = vadd.f32 %v2273, %v2338
      %v2347 = vadd.f32 %v2274, %v2339
      %v2348 = vadd.f32 %v2275, %v2340
      %v2349 = vadd.f32 %v2276, %v2341
      %v2350 = vadd.f32 %v2277, %v2342
      %v2351 = vadd.f32 %v2278, %v2343
      %v2352 = vadd.f32 %v2279, %v2344
      %s2353 = scalar_lea.vmem %s6, 32
      %v2354 = vld [vmem:[%s2353] sm:$0xff]
      %v2355 = vld [vmem:[%s2353 + $0x8] sm:$0xff]
      %v2356 = vld [vmem:[%s2353 + $0x10] sm:$0xff]
      %v2357 = vld [vmem:[%s2353 + $0x18] sm:$0xff]
      %2359 = vset.pattern.permute.xlu0 0
      %2360 = vperm.xlu0 %2359, %v2354
      %v2361 = vpop.permute.xlu0 %2360
      %2364 = vset.pattern.permute.xlu0 0
      %2365 = vperm.xlu0 %2364, %v2355
      %v2366 = vpop.permute.xlu0 %2365
      %2369 = vset.pattern.permute.xlu0 0
      %2370 = vperm.xlu0 %2369, %v2356
      %v2371 = vpop.permute.xlu0 %2370
      %2374 = vset.pattern.permute.xlu0 0
      %2375 = vperm.xlu0 %2374, %v2357
      %v2376 = vpop.permute.xlu0 %2375
      %v2378 = vadd.f32 %v2345, %v2361
      %v2379 = vadd.f32 %v2346, %v2361
      %v2380 = vadd.f32 %v2347, %v2366
      %v2381 = vadd.f32 %v2348, %v2366
      %v2382 = vadd.f32 %v2349, %v2371
      %v2383 = vadd.f32 %v2350, %v2371
      %v2384 = vadd.f32 %v2351, %v2376
      %v2385 = vadd.f32 %v2352, %v2376
      %v2386 = vmax.f32 %v2378, 0.0
      %v2387 = vmax.f32 %v2379, 0.0
      %v2388 = vmax.f32 %v2380, 0.0
      %v2389 = vmax.f32 %v2381, 0.0
      %v2390 = vmax.f32 %v2382, 0.0
      %v2391 = vmax.f32 %v2383, 0.0
      %v2392 = vmax.f32 %v2384, 0.0
      %v2393 = vmax.f32 %v2385, 0.0
      %v2394 = vadd.f32 %v1728, %v2386
      %v2395 = vadd.f32 %v1729, %v2387
      %v2396 = vadd.f32 %v1730, %v2388
      %v2397 = vadd.f32 %v1731, %v2389
      %v2398 = vadd.f32 %v1732, %v2390
      %v2399 = vadd.f32 %v1733, %v2391
      %v2400 = vadd.f32 %v1734, %v2392
      %v2401 = vadd.f32 %v1735, %v2393
      %s2402 = scalar_lea.vmem %s3, 64
      %v2403 = vld [vmem:[%s2402] sm:$0xff]
      %v2404 = vld [vmem:[%s2402 + $0x8] sm:$0xff]
      %v2405 = vld [vmem:[%s2402 + $0x10] sm:$0xff]
      %v2406 = vld [vmem:[%s2402 + $0x18] sm:$0xff]
      %s2407 = scalar_lea.vmem %s4, 64
      %v2408 = vld [vmem:[%s2407] sm:$0xff]
      %v2409 = vld [vmem:[%s2407 + $0x8] sm:$0xff]
      %v2410 = vld [vmem:[%s2407 + $0x10] sm:$0xff]
      %v2411 = vld [vmem:[%s2407 + $0x18] sm:$0xff]
      %2413 = vset.pattern.permute.xlu0 0
      %2414 = vperm.xlu0 %2413, %v2408
      %v2415 = vpop.permute.xlu0 %2414
      %2418 = vset.pattern.permute.xlu0 0
      %2419 = vperm.xlu0 %2418, %v2409
      %v2420 = vpop.permute.xlu0 %2419
      %2423 = vset.pattern.permute.xlu0 0
      %2424 = vperm.xlu0 %2423, %v2410
      %v2425 = vpop.permute.xlu0 %2424
      %2428 = vset.pattern.permute.xlu0 0
      %2429 = vperm.xlu0 %2428, %v2411
      %v2430 = vpop.permute.xlu0 %2429
      %v2433 = vsel %vm820, %v2403, 0
      %v2436 = vsel %vm820, %v2404, 0
      %v2439 = vsel %vm820, %v2405, 0
      %v2442 = vsel %vm820, %v2406, 0
      %2444 = vmatpush.msra.mxu0 0.0
      %2445 = vmatpush.msra.mxu0 0.0
      %2446 = vmatpush.msra.mxu0 0.0
      %2447 = vmatpush.msra.mxu0 0.0
      %2448 = vmatpush.msra.mxu0 0.0
      %2449 = vmatpush.msra.mxu0 0.0
      %2450 = vmatpush.msra.mxu0 0.0
      %2451 = vmatpush.msra.mxu0 0.0
      %2452 = vmatpush.msra.mxu0 0.0
      %2453 = vmatpush.msra.mxu0 0.0
      %2454 = vmatpush.msra.mxu0 0.0
      %2455 = vmatpush.msra.mxu0 0.0
      %2456 = vmatpush.msra.mxu0 %v2400
      %2457 = vmatpush.msra.mxu0 %v2398
      %2458 = vmatpush.msra.mxu0 %v2396
      %2459 = vmatpush.msra.mxu0 %v2394
      %2460 = vmatmul.f32.gmra.mxu0 %v2433
      %v2461 = vpop.f32.mrf.mxu0
      %v2462 = vadd.f32 %v2415, %v2461
      %2463 = vmatmul.f32.gmra.mxu0 %v2436
      %v2464 = vpop.f32.mrf.mxu0
      %v2465 = vadd.f32 %v2420, %v2464
      %2466 = vmatmul.f32.gmra.mxu0 %v2439
      %v2467 = vpop.f32.mrf.mxu0
      %v2468 = vadd.f32 %v2425, %v2467
      %2469 = vmatmul.f32.gmra.mxu0 %v2442
      %v2470 = vpop.f32.mrf.mxu0
      %v2471 = vadd.f32 %v2430, %v2470
      %2472 = vdwg.mxu0
      %2473 = vmatpush.msra.mxu0 0.0
      %2474 = vmatpush.msra.mxu0 0.0
      %2475 = vmatpush.msra.mxu0 0.0
      %2476 = vmatpush.msra.mxu0 0.0
      %2477 = vmatpush.msra.mxu0 0.0
      %2478 = vmatpush.msra.mxu0 0.0
      %2479 = vmatpush.msra.mxu0 0.0
      %2480 = vmatpush.msra.mxu0 0.0
      %2481 = vmatpush.msra.mxu0 0.0
      %2482 = vmatpush.msra.mxu0 0.0
      %2483 = vmatpush.msra.mxu0 0.0
      %2484 = vmatpush.msra.mxu0 0.0
      %2485 = vmatpush.msra.mxu0 %v2401
      %2486 = vmatpush.msra.mxu0 %v2399
      %2487 = vmatpush.msra.mxu0 %v2397
      %2488 = vmatpush.msra.mxu0 %v2395
      %2489 = vmatmul.f32.gmra.mxu0 %v2433
      %v2490 = vpop.f32.mrf.mxu0
      %v2491 = vadd.f32 %v2415, %v2490
      %2492 = vmatmul.f32.gmra.mxu0 %v2436
      %v2493 = vpop.f32.mrf.mxu0
      %v2494 = vadd.f32 %v2420, %v2493
      %2495 = vmatmul.f32.gmra.mxu0 %v2439
      %v2496 = vpop.f32.mrf.mxu0
      %v2497 = vadd.f32 %v2425, %v2496
      %2498 = vmatmul.f32.gmra.mxu0 %v2442
      %v2499 = vpop.f32.mrf.mxu0
      %v2500 = vadd.f32 %v2430, %v2499
      %2501 = vdwg.mxu0
      %v2502 = vsub.f32 0.0, %v2462
      %v2503 = vsub.f32 0.0, %v2491
      %v2504 = vsub.f32 0.0, %v2465
      %v2505 = vsub.f32 0.0, %v2494
      %v2506 = vsub.f32 0.0, %v2468
      %v2507 = vsub.f32 0.0, %v2497
      %v2508 = vsub.f32 0.0, %v2471
      %v2509 = vsub.f32 0.0, %v2500
      %v2510 = vmul.f32 %v2502, 1.442695
      %v2511 = vpow.pop %v2510
      %v2512 = vmul.f32 %v2503, 1.442695
      %v2513 = vpow.pop %v2512
      %v2514 = vmul.f32 %v2504, 1.442695
      %v2515 = vpow.pop %v2514
      %v2516 = vmul.f32 %v2505, 1.442695
      %v2517 = vpow.pop %v2516
      %v2518 = vmul.f32 %v2506, 1.442695
      %v2519 = vpow.pop %v2518
      %v2520 = vmul.f32 %v2507, 1.442695
      %v2521 = vpow.pop %v2520
      %v2522 = vmul.f32 %v2508, 1.442695
      %v2523 = vpow.pop %v2522
      %v2524 = vmul.f32 %v2509, 1.442695
      %v2525 = vpow.pop %v2524
      %v2526 = vadd.f32 %v2511, 1.0
      %v2527 = vadd.f32 %v2513, 1.0
      %v2528 = vadd.f32 %v2515, 1.0
      %v2529 = vadd.f32 %v2517, 1.0
      %v2530 = vadd.f32 %v2519, 1.0
      %v2531 = vadd.f32 %v2521, 1.0
      %v2532 = vadd.f32 %v2523, 1.0
      %v2533 = vadd.f32 %v2525, 1.0
      %v2534 = vrcp.pop %v2526
      %v2535 = vmul.f32 %v2526, %v2534
      %v2536 = vsub.f32 1.0, %v2535
      %v2537 = vmul.f32 %v2534, %v2536
      %v2538 = vadd.f32 %v2534, %v2537
      %vm2539 = vweird.f32 %v2526
      %vm2540 = vweird.f32 %v2534
      %vm2541 = vmor %vm2539, %vm2540
      %v2542 = vsel %vm2541, %v2534, %v2538
      %v2543 = vand.u32 2147483647, %v2526
      %vm2544 = vcmp.eq.f32.partialorder %v2543, 8.507059e+37
      %v2545 = vand.u32 %v2526, 2147483648
      %v2546 = vor.u32 1.1754944e-38, %v2545
      %v2547 = vsel %vm2544, %v2546, %v2542
      %v2548 = vmul.f32 1.0, %v2547
      %v2549 = vrcp.pop %v2527
      %v2550 = vmul.f32 %v2527, %v2549
      %v2551 = vsub.f32 1.0, %v2550
      %v2552 = vmul.f32 %v2549, %v2551
      %v2553 = vadd.f32 %v2549, %v2552
      %vm2554 = vweird.f32 %v2527
      %vm2555 = vweird.f32 %v2549
      %vm2556 = vmor %vm2554, %vm2555
      %v2557 = vsel %vm2556, %v2549, %v2553
      %v2558 = vand.u32 2147483647, %v2527
      %vm2559 = vcmp.eq.f32.partialorder %v2558, 8.507059e+37
      %v2560 = vand.u32 %v2527, 2147483648
      %v2561 = vor.u32 1.1754944e-38, %v2560
      %v2562 = vsel %vm2559, %v2561, %v2557
      %v2563 = vmul.f32 1.0, %v2562
      %v2564 = vrcp.pop %v2528
      %v2565 = vmul.f32 %v2528, %v2564
      %v2566 = vsub.f32 1.0, %v2565
      %v2567 = vmul.f32 %v2564, %v2566
      %v2568 = vadd.f32 %v2564, %v2567
      %vm2569 = vweird.f32 %v2528
      %vm2570 = vweird.f32 %v2564
      %vm2571 = vmor %vm2569, %vm2570
      %v2572 = vsel %vm2571, %v2564, %v2568
      %v2573 = vand.u32 2147483647, %v2528
      %vm2574 = vcmp.eq.f32.partialorder %v2573, 8.507059e+37
      %v2575 = vand.u32 %v2528, 2147483648
      %v2576 = vor.u32 1.1754944e-38, %v2575
      %v2577 = vsel %vm2574, %v2576, %v2572
      %v2578 = vmul.f32 1.0, %v2577
      %v2579 = vrcp.pop %v2529
      %v2580 = vmul.f32 %v2529, %v2579
      %v2581 = vsub.f32 1.0, %v2580
      %v2582 = vmul.f32 %v2579, %v2581
      %v2583 = vadd.f32 %v2579, %v2582
      %vm2584 = vweird.f32 %v2529
      %vm2585 = vweird.f32 %v2579
      %vm2586 = vmor %vm2584, %vm2585
      %v2587 = vsel %vm2586, %v2579, %v2583
      %v2588 = vand.u32 2147483647, %v2529
      %vm2589 = vcmp.eq.f32.partialorder %v2588, 8.507059e+37
      %v2590 = vand.u32 %v2529, 2147483648
      %v2591 = vor.u32 1.1754944e-38, %v2590
      %v2592 = vsel %vm2589, %v2591, %v2587
      %v2593 = vmul.f32 1.0, %v2592
      %v2594 = vrcp.pop %v2530
      %v2595 = vmul.f32 %v2530, %v2594
      %v2596 = vsub.f32 1.0, %v2595
      %v2597 = vmul.f32 %v2594, %v2596
      %v2598 = vadd.f32 %v2594, %v2597
      %vm2599 = vweird.f32 %v2530
      %vm2600 = vweird.f32 %v2594
      %vm2601 = vmor %vm2599, %vm2600
      %v2602 = vsel %vm2601, %v2594, %v2598
      %v2603 = vand.u32 2147483647, %v2530
      %vm2604 = vcmp.eq.f32.partialorder %v2603, 8.507059e+37
      %v2605 = vand.u32 %v2530, 2147483648
      %v2606 = vor.u32 1.1754944e-38, %v2605
      %v2607 = vsel %vm2604, %v2606, %v2602
      %v2608 = vmul.f32 1.0, %v2607
      %v2609 = vrcp.pop %v2531
      %v2610 = vmul.f32 %v2531, %v2609
      %v2611 = vsub.f32 1.0, %v2610
      %v2612 = vmul.f32 %v2609, %v2611
      %v2613 = vadd.f32 %v2609, %v2612
      %vm2614 = vweird.f32 %v2531
      %vm2615 = vweird.f32 %v2609
      %vm2616 = vmor %vm2614, %vm2615
      %v2617 = vsel %vm2616, %v2609, %v2613
      %v2618 = vand.u32 2147483647, %v2531
      %vm2619 = vcmp.eq.f32.partialorder %v2618, 8.507059e+37
      %v2620 = vand.u32 %v2531, 2147483648
      %v2621 = vor.u32 1.1754944e-38, %v2620
      %v2622 = vsel %vm2619, %v2621, %v2617
      %v2623 = vmul.f32 1.0, %v2622
      %v2624 = vrcp.pop %v2532
      %v2625 = vmul.f32 %v2532, %v2624
      %v2626 = vsub.f32 1.0, %v2625
      %v2627 = vmul.f32 %v2624, %v2626
      %v2628 = vadd.f32 %v2624, %v2627
      %vm2629 = vweird.f32 %v2532
      %vm2630 = vweird.f32 %v2624
      %vm2631 = vmor %vm2629, %vm2630
      %v2632 = vsel %vm2631, %v2624, %v2628
      %v2633 = vand.u32 2147483647, %v2532
      %vm2634 = vcmp.eq.f32.partialorder %v2633, 8.507059e+37
      %v2635 = vand.u32 %v2532, 2147483648
      %v2636 = vor.u32 1.1754944e-38, %v2635
      %v2637 = vsel %vm2634, %v2636, %v2632
      %v2638 = vmul.f32 1.0, %v2637
      %v2639 = vrcp.pop %v2533
      %v2640 = vmul.f32 %v2533, %v2639
      %v2641 = vsub.f32 1.0, %v2640
      %v2642 = vmul.f32 %v2639, %v2641
      %v2643 = vadd.f32 %v2639, %v2642
      %vm2644 = vweird.f32 %v2533
      %vm2645 = vweird.f32 %v2639
      %vm2646 = vmor %vm2644, %vm2645
      %v2647 = vsel %vm2646, %v2639, %v2643
      %v2648 = vand.u32 2147483647, %v2533
      %vm2649 = vcmp.eq.f32.partialorder %v2648, 8.507059e+37
      %v2650 = vand.u32 %v2533, 2147483648
      %v2651 = vor.u32 1.1754944e-38, %v2650
      %v2652 = vsel %vm2649, %v2651, %v2647
      %v2653 = vmul.f32 1.0, %v2652
      %v2654 = vmul.f32 %v2462, %v2548
      %v2655 = vmul.f32 %v2491, %v2563
      %v2656 = vmul.f32 %v2465, %v2578
      %v2657 = vmul.f32 %v2494, %v2593
      %v2658 = vmul.f32 %v2468, %v2608
      %v2659 = vmul.f32 %v2497, %v2623
      %v2660 = vmul.f32 %v2471, %v2638
      %v2661 = vmul.f32 %v2500, %v2653
      %s2662 = scalar_lea.vmem %s5, 704
      %v2663 = vld [vmem:[%s2662] sm:$0xff]
      %v2664 = vld [vmem:[%s2662 + $0x8] sm:$0xff]
      %v2665 = vld [vmem:[%s2662 + $0x10] sm:$0xff]
      %v2666 = vld [vmem:[%s2662 + $0x18] sm:$0xff]
      %2668 = vset.pattern.permute.xlu0 0
      %2669 = vperm.xlu0 %2668, %v2663
      %v2670 = vpop.permute.xlu0 %2669
      %2673 = vset.pattern.permute.xlu0 0
      %2674 = vperm.xlu0 %2673, %v2664
      %v2675 = vpop.permute.xlu0 %2674
      %2678 = vset.pattern.permute.xlu0 0
      %2679 = vperm.xlu0 %2678, %v2665
      %v2680 = vpop.permute.xlu0 %2679
      %2683 = vset.pattern.permute.xlu0 0
      %2684 = vperm.xlu0 %2683, %v2666
      %v2685 = vpop.permute.xlu0 %2684
      %v2687 = vmul.f32 %v2670, %v2654
      %v2688 = vmul.f32 %v2670, %v2655
      %v2689 = vmul.f32 %v2675, %v2656
      %v2690 = vmul.f32 %v2675, %v2657
      %v2691 = vmul.f32 %v2680, %v2658
      %v2692 = vmul.f32 %v2680, %v2659
      %v2693 = vmul.f32 %v2685, %v2660
      %v2694 = vmul.f32 %v2685, %v2661
      %2695 = vrot.lane.b32.xlu0 %v2654, 17
      %v2696 = vpop.permute.xlu0 %2695
      %2697 = vrot.lane.b32.xlu0 %v2656, 17
      %v2698 = vpop.permute.xlu0 %2697
      %2699 = vrot.lane.b32.xlu0 %v2658, 17
      %v2700 = vpop.permute.xlu0 %2699
      %2701 = vrot.lane.b32.xlu0 %v2660, 17
      %v2702 = vpop.permute.xlu0 %2701
      %2703 = vrot.lane.b32.xlu0 %v2655, 17
      %v2704 = vpop.permute.xlu0 %2703
      %2705 = vrot.lane.b32.xlu0 %v2657, 17
      %v2706 = vpop.permute.xlu0 %2705
      %2707 = vrot.lane.b32.xlu0 %v2659, 17
      %v2708 = vpop.permute.xlu0 %2707
      %2709 = vrot.lane.b32.xlu0 %v2661, 17
      %v2710 = vpop.permute.xlu0 %2709
      %v2711 = vsel %vm950, %v2696, %v2704
      %v2712 = vsel %vm950, %v2698, %v2706
      %v2713 = vsel %vm950, %v2700, %v2708
      %v2714 = vsel %vm950, %v2702, %v2710
      %v2715 = vsel %vm950, %v2704, %v2696
      %v2716 = vsel %vm950, %v2706, %v2698
      %v2717 = vsel %vm950, %v2708, %v2700
      %v2718 = vsel %vm950, %v2710, %v2702
      %s2719 = scalar_lea.vmem %s5, 576
      %v2720 = vld [vmem:[%s2719] sm:$0xff]
      %v2721 = vld [vmem:[%s2719 + $0x8] sm:$0xff]
      %v2722 = vld [vmem:[%s2719 + $0x10] sm:$0xff]
      %v2723 = vld [vmem:[%s2719 + $0x18] sm:$0xff]
      %v2724 = vmul.f32 %v2715, %v965
      %v2725 = vmul.f32 %v2711, %v966
      %v2726 = vmul.f32 %v2716, %v965
      %v2727 = vmul.f32 %v2712, %v966
      %v2728 = vmul.f32 %v2717, %v965
      %v2729 = vmul.f32 %v2713, %v966
      %v2730 = vmul.f32 %v2718, %v965
      %v2731 = vmul.f32 %v2714, %v966
      %2733 = vset.pattern.permute.xlu0 0
      %2734 = vperm.xlu0 %2733, %v2720
      %v2735 = vpop.permute.xlu0 %2734
      %2738 = vset.pattern.permute.xlu0 0
      %2739 = vperm.xlu0 %2738, %v2721
      %v2740 = vpop.permute.xlu0 %2739
      %2743 = vset.pattern.permute.xlu0 0
      %2744 = vperm.xlu0 %2743, %v2722
      %v2745 = vpop.permute.xlu0 %2744
      %2748 = vset.pattern.permute.xlu0 0
      %2749 = vperm.xlu0 %2748, %v2723
      %v2750 = vpop.permute.xlu0 %2749
      %v2752 = vmul.f32 %v2735, %v2724
      %v2753 = vmul.f32 %v2735, %v2725
      %v2754 = vmul.f32 %v2740, %v2726
      %v2755 = vmul.f32 %v2740, %v2727
      %v2756 = vmul.f32 %v2745, %v2728
      %v2757 = vmul.f32 %v2745, %v2729
      %v2758 = vmul.f32 %v2750, %v2730
      %v2759 = vmul.f32 %v2750, %v2731
      %v2760 = vadd.f32 %v2687, %v2752
      %v2761 = vadd.f32 %v2688, %v2753
      %v2762 = vadd.f32 %v2689, %v2754
      %v2763 = vadd.f32 %v2690, %v2755
      %v2764 = vadd.f32 %v2691, %v2756
      %v2765 = vadd.f32 %v2692, %v2757
      %v2766 = vadd.f32 %v2693, %v2758
      %v2767 = vadd.f32 %v2694, %v2759
      %2768 = vrot.lane.b32.xlu0 %v2654, 16
      %v2769 = vpop.permute.xlu0 %2768
      %2770 = vrot.lane.b32.xlu0 %v2656, 16
      %v2771 = vpop.permute.xlu0 %2770
      %2772 = vrot.lane.b32.xlu0 %v2658, 16
      %v2773 = vpop.permute.xlu0 %2772
      %2774 = vrot.lane.b32.xlu0 %v2660, 16
      %v2775 = vpop.permute.xlu0 %2774
      %2776 = vrot.lane.b32.xlu0 %v2655, 16
      %v2777 = vpop.permute.xlu0 %2776
      %2778 = vrot.lane.b32.xlu0 %v2657, 16
      %v2779 = vpop.permute.xlu0 %2778
      %2780 = vrot.lane.b32.xlu0 %v2659, 16
      %v2781 = vpop.permute.xlu0 %2780
      %2782 = vrot.lane.b32.xlu0 %v2661, 16
      %v2783 = vpop.permute.xlu0 %2782
      %v2784 = vsel %vm1029, %v2769, %v2777
      %v2785 = vsel %vm1029, %v2771, %v2779
      %v2786 = vsel %vm1029, %v2773, %v2781
      %v2787 = vsel %vm1029, %v2775, %v2783
      %v2788 = vsel %vm1029, %v2777, %v2769
      %v2789 = vsel %vm1029, %v2779, %v2771
      %v2790 = vsel %vm1029, %v2781, %v2773
      %v2791 = vsel %vm1029, %v2783, %v2775
      %s2792 = scalar_lea.vmem %s5, 608
      %v2793 = vld [vmem:[%s2792] sm:$0xff]
      %v2794 = vld [vmem:[%s2792 + $0x8] sm:$0xff]
      %v2795 = vld [vmem:[%s2792 + $0x10] sm:$0xff]
      %v2796 = vld [vmem:[%s2792 + $0x18] sm:$0xff]
      %v2797 = vmul.f32 %v2788, %v1046
      %v2798 = vmul.f32 %v2784, %v1047
      %v2799 = vmul.f32 %v2789, %v1046
      %v2800 = vmul.f32 %v2785, %v1047
      %v2801 = vmul.f32 %v2790, %v1046
      %v2802 = vmul.f32 %v2786, %v1047
      %v2803 = vmul.f32 %v2791, %v1046
      %v2804 = vmul.f32 %v2787, %v1047
      %2806 = vset.pattern.permute.xlu0 0
      %2807 = vperm.xlu0 %2806, %v2793
      %v2808 = vpop.permute.xlu0 %2807
      %2811 = vset.pattern.permute.xlu0 0
      %2812 = vperm.xlu0 %2811, %v2794
      %v2813 = vpop.permute.xlu0 %2812
      %2816 = vset.pattern.permute.xlu0 0
      %2817 = vperm.xlu0 %2816, %v2795
      %v2818 = vpop.permute.xlu0 %2817
      %2821 = vset.pattern.permute.xlu0 0
      %2822 = vperm.xlu0 %2821, %v2796
      %v2823 = vpop.permute.xlu0 %2822
      %v2825 = vmul.f32 %v2808, %v2797
      %v2826 = vmul.f32 %v2808, %v2798
      %v2827 = vmul.f32 %v2813, %v2799
      %v2828 = vmul.f32 %v2813, %v2800
      %v2829 = vmul.f32 %v2818, %v2801
      %v2830 = vmul.f32 %v2818, %v2802
      %v2831 = vmul.f32 %v2823, %v2803
      %v2832 = vmul.f32 %v2823, %v2804
      %v2833 = vadd.f32 %v2760, %v2825
      %v2834 = vadd.f32 %v2761, %v2826
      %v2835 = vadd.f32 %v2762, %v2827
      %v2836 = vadd.f32 %v2763, %v2828
      %v2837 = vadd.f32 %v2764, %v2829
      %v2838 = vadd.f32 %v2765, %v2830
      %v2839 = vadd.f32 %v2766, %v2831
      %v2840 = vadd.f32 %v2767, %v2832
      %2841 = vrot.lane.b32.xlu0 %v2654, 15
      %v2842 = vpop.permute.xlu0 %2841
      %2843 = vrot.lane.b32.xlu0 %v2656, 15
      %v2844 = vpop.permute.xlu0 %2843
      %2845 = vrot.lane.b32.xlu0 %v2658, 15
      %v2846 = vpop.permute.xlu0 %2845
      %2847 = vrot.lane.b32.xlu0 %v2660, 15
      %v2848 = vpop.permute.xlu0 %2847
      %2849 = vrot.lane.b32.xlu0 %v2655, 15
      %v2850 = vpop.permute.xlu0 %2849
      %2851 = vrot.lane.b32.xlu0 %v2657, 15
      %v2852 = vpop.permute.xlu0 %2851
      %2853 = vrot.lane.b32.xlu0 %v2659, 15
      %v2854 = vpop.permute.xlu0 %2853
      %2855 = vrot.lane.b32.xlu0 %v2661, 15
      %v2856 = vpop.permute.xlu0 %2855
      %v2857 = vsel %vm1110, %v2842, %v2850
      %v2858 = vsel %vm1110, %v2844, %v2852
      %v2859 = vsel %vm1110, %v2846, %v2854
      %v2860 = vsel %vm1110, %v2848, %v2856
      %v2861 = vsel %vm1110, %v2850, %v2842
      %v2862 = vsel %vm1110, %v2852, %v2844
      %v2863 = vsel %vm1110, %v2854, %v2846
      %v2864 = vsel %vm1110, %v2856, %v2848
      %s2865 = scalar_lea.vmem %s5, 640
      %v2866 = vld [vmem:[%s2865] sm:$0xff]
      %v2867 = vld [vmem:[%s2865 + $0x8] sm:$0xff]
      %v2868 = vld [vmem:[%s2865 + $0x10] sm:$0xff]
      %v2869 = vld [vmem:[%s2865 + $0x18] sm:$0xff]
      %v2870 = vmul.f32 %v2861, %v1127
      %v2871 = vmul.f32 %v2857, %v1128
      %v2872 = vmul.f32 %v2862, %v1127
      %v2873 = vmul.f32 %v2858, %v1128
      %v2874 = vmul.f32 %v2863, %v1127
      %v2875 = vmul.f32 %v2859, %v1128
      %v2876 = vmul.f32 %v2864, %v1127
      %v2877 = vmul.f32 %v2860, %v1128
      %2879 = vset.pattern.permute.xlu0 0
      %2880 = vperm.xlu0 %2879, %v2866
      %v2881 = vpop.permute.xlu0 %2880
      %2884 = vset.pattern.permute.xlu0 0
      %2885 = vperm.xlu0 %2884, %v2867
      %v2886 = vpop.permute.xlu0 %2885
      %2889 = vset.pattern.permute.xlu0 0
      %2890 = vperm.xlu0 %2889, %v2868
      %v2891 = vpop.permute.xlu0 %2890
      %2894 = vset.pattern.permute.xlu0 0
      %2895 = vperm.xlu0 %2894, %v2869
      %v2896 = vpop.permute.xlu0 %2895
      %v2898 = vmul.f32 %v2881, %v2870
      %v2899 = vmul.f32 %v2881, %v2871
      %v2900 = vmul.f32 %v2886, %v2872
      %v2901 = vmul.f32 %v2886, %v2873
      %v2902 = vmul.f32 %v2891, %v2874
      %v2903 = vmul.f32 %v2891, %v2875
      %v2904 = vmul.f32 %v2896, %v2876
      %v2905 = vmul.f32 %v2896, %v2877
      %v2906 = vadd.f32 %v2833, %v2898
      %v2907 = vadd.f32 %v2834, %v2899
      %v2908 = vadd.f32 %v2835, %v2900
      %v2909 = vadd.f32 %v2836, %v2901
      %v2910 = vadd.f32 %v2837, %v2902
      %v2911 = vadd.f32 %v2838, %v2903
      %v2912 = vadd.f32 %v2839, %v2904
      %v2913 = vadd.f32 %v2840, %v2905
      %2914 = vrot.lane.b32.xlu0 %v2654, 1
      %v2915 = vpop.permute.xlu0 %2914
      %2916 = vrot.lane.b32.xlu0 %v2656, 1
      %v2917 = vpop.permute.xlu0 %2916
      %2918 = vrot.lane.b32.xlu0 %v2658, 1
      %v2919 = vpop.permute.xlu0 %2918
      %2920 = vrot.lane.b32.xlu0 %v2660, 1
      %v2921 = vpop.permute.xlu0 %2920
      %2922 = vrot.lane.b32.xlu0 %v2655, 1
      %v2923 = vpop.permute.xlu0 %2922
      %2924 = vrot.lane.b32.xlu0 %v2657, 1
      %v2925 = vpop.permute.xlu0 %2924
      %2926 = vrot.lane.b32.xlu0 %v2659, 1
      %v2927 = vpop.permute.xlu0 %2926
      %2928 = vrot.lane.b32.xlu0 %v2661, 1
      %v2929 = vpop.permute.xlu0 %2928
      %v2930 = vsel %vm1191, %v2915, %v2923
      %v2931 = vsel %vm1191, %v2917, %v2925
      %v2932 = vsel %vm1191, %v2919, %v2927
      %v2933 = vsel %vm1191, %v2921, %v2929
      %v2934 = vsel %vm1191, %v2923, %v2915
      %v2935 = vsel %vm1191, %v2925, %v2917
      %v2936 = vsel %vm1191, %v2927, %v2919
      %v2937 = vsel %vm1191, %v2929, %v2921
      %s2938 = scalar_lea.vmem %s5, 672
      %v2939 = vld [vmem:[%s2938] sm:$0xff]
      %v2940 = vld [vmem:[%s2938 + $0x8] sm:$0xff]
      %v2941 = vld [vmem:[%s2938 + $0x10] sm:$0xff]
      %v2942 = vld [vmem:[%s2938 + $0x18] sm:$0xff]
      %v2943 = vmul.f32 %v2934, %v1208
      %v2944 = vmul.f32 %v2930, %v1209
      %v2945 = vmul.f32 %v2935, %v1208
      %v2946 = vmul.f32 %v2931, %v1209
      %v2947 = vmul.f32 %v2936, %v1208
      %v2948 = vmul.f32 %v2932, %v1209
      %v2949 = vmul.f32 %v2937, %v1208
      %v2950 = vmul.f32 %v2933, %v1209
      %2952 = vset.pattern.permute.xlu0 0
      %2953 = vperm.xlu0 %2952, %v2939
      %v2954 = vpop.permute.xlu0 %2953
      %2957 = vset.pattern.permute.xlu0 0
      %2958 = vperm.xlu0 %2957, %v2940
      %v2959 = vpop.permute.xlu0 %2958
      %2962 = vset.pattern.permute.xlu0 0
      %2963 = vperm.xlu0 %2962, %v2941
      %v2964 = vpop.permute.xlu0 %2963
      %2967 = vset.pattern.permute.xlu0 0
      %2968 = vperm.xlu0 %2967, %v2942
      %v2969 = vpop.permute.xlu0 %2968
      %v2971 = vmul.f32 %v2954, %v2943
      %v2972 = vmul.f32 %v2954, %v2944
      %v2973 = vmul.f32 %v2959, %v2945
      %v2974 = vmul.f32 %v2959, %v2946
      %v2975 = vmul.f32 %v2964, %v2947
      %v2976 = vmul.f32 %v2964, %v2948
      %v2977 = vmul.f32 %v2969, %v2949
      %v2978 = vmul.f32 %v2969, %v2950
      %v2979 = vadd.f32 %v2906, %v2971
      %v2980 = vadd.f32 %v2907, %v2972
      %v2981 = vadd.f32 %v2908, %v2973
      %v2982 = vadd.f32 %v2909, %v2974
      %v2983 = vadd.f32 %v2910, %v2975
      %v2984 = vadd.f32 %v2911, %v2976
      %v2985 = vadd.f32 %v2912, %v2977
      %v2986 = vadd.f32 %v2913, %v2978
      %2987 = vrot.lane.b32.xlu0 %v2654, 127
      %v2988 = vpop.permute.xlu0 %2987
      %2989 = vrot.lane.b32.xlu0 %v2656, 127
      %v2990 = vpop.permute.xlu0 %2989
      %2991 = vrot.lane.b32.xlu0 %v2658, 127
      %v2992 = vpop.permute.xlu0 %2991
      %2993 = vrot.lane.b32.xlu0 %v2660, 127
      %v2994 = vpop.permute.xlu0 %2993
      %2995 = vrot.lane.b32.xlu0 %v2655, 127
      %v2996 = vpop.permute.xlu0 %2995
      %2997 = vrot.lane.b32.xlu0 %v2657, 127
      %v2998 = vpop.permute.xlu0 %2997
      %2999 = vrot.lane.b32.xlu0 %v2659, 127
      %v3000 = vpop.permute.xlu0 %2999
      %3001 = vrot.lane.b32.xlu0 %v2661, 127
      %v3002 = vpop.permute.xlu0 %3001
      %v3003 = vsel %vm1272, %v2988, %v2996
      %v3004 = vsel %vm1272, %v2990, %v2998
      %v3005 = vsel %vm1272, %v2992, %v3000
      %v3006 = vsel %vm1272, %v2994, %v3002
      %v3007 = vsel %vm1272, %v2996, %v2988
      %v3008 = vsel %vm1272, %v2998, %v2990
      %v3009 = vsel %vm1272, %v3000, %v2992
      %v3010 = vsel %vm1272, %v3002, %v2994
      %s3011 = scalar_lea.vmem %s5, 736
      %v3012 = vld [vmem:[%s3011] sm:$0xff]
      %v3013 = vld [vmem:[%s3011 + $0x8] sm:$0xff]
      %v3014 = vld [vmem:[%s3011 + $0x10] sm:$0xff]
      %v3015 = vld [vmem:[%s3011 + $0x18] sm:$0xff]
      %v3016 = vmul.f32 %v3003, %v1289
      %v3017 = vmul.f32 %v3007, %v1290
      %v3018 = vmul.f32 %v3004, %v1289
      %v3019 = vmul.f32 %v3008, %v1290
      %v3020 = vmul.f32 %v3005, %v1289
      %v3021 = vmul.f32 %v3009, %v1290
      %v3022 = vmul.f32 %v3006, %v1289
      %v3023 = vmul.f32 %v3010, %v1290
      %3025 = vset.pattern.permute.xlu0 0
      %3026 = vperm.xlu0 %3025, %v3012
      %v3027 = vpop.permute.xlu0 %3026
      %3030 = vset.pattern.permute.xlu0 0
      %3031 = vperm.xlu0 %3030, %v3013
      %v3032 = vpop.permute.xlu0 %3031
      %3035 = vset.pattern.permute.xlu0 0
      %3036 = vperm.xlu0 %3035, %v3014
      %v3037 = vpop.permute.xlu0 %3036
      %3040 = vset.pattern.permute.xlu0 0
      %3041 = vperm.xlu0 %3040, %v3015
      %v3042 = vpop.permute.xlu0 %3041
      %v3044 = vmul.f32 %v3027, %v3016
      %v3045 = vmul.f32 %v3027, %v3017
      %v3046 = vmul.f32 %v3032, %v3018
      %v3047 = vmul.f32 %v3032, %v3019
      %v3048 = vmul.f32 %v3037, %v3020
      %v3049 = vmul.f32 %v3037, %v3021
      %v3050 = vmul.f32 %v3042, %v3022
      %v3051 = vmul.f32 %v3042, %v3023
      %v3052 = vadd.f32 %v2979, %v3044
      %v3053 = vadd.f32 %v2980, %v3045
      %v3054 = vadd.f32 %v2981, %v3046
      %v3055 = vadd.f32 %v2982, %v3047
      %v3056 = vadd.f32 %v2983, %v3048
      %v3057 = vadd.f32 %v2984, %v3049
      %v3058 = vadd.f32 %v2985, %v3050
      %v3059 = vadd.f32 %v2986, %v3051
      %3060 = vrot.lane.b32.xlu0 %v2654, 113
      %v3061 = vpop.permute.xlu0 %3060
      %3062 = vrot.lane.b32.xlu0 %v2656, 113
      %v3063 = vpop.permute.xlu0 %3062
      %3064 = vrot.lane.b32.xlu0 %v2658, 113
      %v3065 = vpop.permute.xlu0 %3064
      %3066 = vrot.lane.b32.xlu0 %v2660, 113
      %v3067 = vpop.permute.xlu0 %3066
      %3068 = vrot.lane.b32.xlu0 %v2655, 113
      %v3069 = vpop.permute.xlu0 %3068
      %3070 = vrot.lane.b32.xlu0 %v2657, 113
      %v3071 = vpop.permute.xlu0 %3070
      %3072 = vrot.lane.b32.xlu0 %v2659, 113
      %v3073 = vpop.permute.xlu0 %3072
      %3074 = vrot.lane.b32.xlu0 %v2661, 113
      %v3075 = vpop.permute.xlu0 %3074
      %v3076 = vsel %vm1353, %v3061, %v3069
      %v3077 = vsel %vm1353, %v3063, %v3071
      %v3078 = vsel %vm1353, %v3065, %v3073
      %v3079 = vsel %vm1353, %v3067, %v3075
      %v3080 = vsel %vm1353, %v3069, %v3061
      %v3081 = vsel %vm1353, %v3071, %v3063
      %v3082 = vsel %vm1353, %v3073, %v3065
      %v3083 = vsel %vm1353, %v3075, %v3067
      %s3084 = scalar_lea.vmem %s5, 768
      %v3085 = vld [vmem:[%s3084] sm:$0xff]
      %v3086 = vld [vmem:[%s3084 + $0x8] sm:$0xff]
      %v3087 = vld [vmem:[%s3084 + $0x10] sm:$0xff]
      %v3088 = vld [vmem:[%s3084 + $0x18] sm:$0xff]
      %v3089 = vmul.f32 %v3076, %v1370
      %v3090 = vmul.f32 %v3080, %v1371
      %v3091 = vmul.f32 %v3077, %v1370
      %v3092 = vmul.f32 %v3081, %v1371
      %v3093 = vmul.f32 %v3078, %v1370
      %v3094 = vmul.f32 %v3082, %v1371
      %v3095 = vmul.f32 %v3079, %v1370
      %v3096 = vmul.f32 %v3083, %v1371
      %3098 = vset.pattern.permute.xlu0 0
      %3099 = vperm.xlu0 %3098, %v3085
      %v3100 = vpop.permute.xlu0 %3099
      %3103 = vset.pattern.permute.xlu0 0
      %3104 = vperm.xlu0 %3103, %v3086
      %v3105 = vpop.permute.xlu0 %3104
      %3108 = vset.pattern.permute.xlu0 0
      %3109 = vperm.xlu0 %3108, %v3087
      %v3110 = vpop.permute.xlu0 %3109
      %3113 = vset.pattern.permute.xlu0 0
      %3114 = vperm.xlu0 %3113, %v3088
      %v3115 = vpop.permute.xlu0 %3114
      %v3117 = vmul.f32 %v3100, %v3089
      %v3118 = vmul.f32 %v3100, %v3090
      %v3119 = vmul.f32 %v3105, %v3091
      %v3120 = vmul.f32 %v3105, %v3092
      %v3121 = vmul.f32 %v3110, %v3093
      %v3122 = vmul.f32 %v3110, %v3094
      %v3123 = vmul.f32 %v3115, %v3095
      %v3124 = vmul.f32 %v3115, %v3096
      %v3125 = vadd.f32 %v3052, %v3117
      %v3126 = vadd.f32 %v3053, %v3118
      %v3127 = vadd.f32 %v3054, %v3119
      %v3128 = vadd.f32 %v3055, %v3120
      %v3129 = vadd.f32 %v3056, %v3121
      %v3130 = vadd.f32 %v3057, %v3122
      %v3131 = vadd.f32 %v3058, %v3123
      %v3132 = vadd.f32 %v3059, %v3124
      %3133 = vrot.lane.b32.xlu0 %v2654, 112
      %v3134 = vpop.permute.xlu0 %3133
      %3135 = vrot.lane.b32.xlu0 %v2656, 112
      %v3136 = vpop.permute.xlu0 %3135
      %3137 = vrot.lane.b32.xlu0 %v2658, 112
      %v3138 = vpop.permute.xlu0 %3137
      %3139 = vrot.lane.b32.xlu0 %v2660, 112
      %v3140 = vpop.permute.xlu0 %3139
      %3141 = vrot.lane.b32.xlu0 %v2655, 112
      %v3142 = vpop.permute.xlu0 %3141
      %3143 = vrot.lane.b32.xlu0 %v2657, 112
      %v3144 = vpop.permute.xlu0 %3143
      %3145 = vrot.lane.b32.xlu0 %v2659, 112
      %v3146 = vpop.permute.xlu0 %3145
      %3147 = vrot.lane.b32.xlu0 %v2661, 112
      %v3148 = vpop.permute.xlu0 %3147
      %v3149 = vsel %vm1434, %v3134, %v3142
      %v3150 = vsel %vm1434, %v3136, %v3144
      %v3151 = vsel %vm1434, %v3138, %v3146
      %v3152 = vsel %vm1434, %v3140, %v3148
      %v3153 = vsel %vm1434, %v3142, %v3134
      %v3154 = vsel %vm1434, %v3144, %v3136
      %v3155 = vsel %vm1434, %v3146, %v3138
      %v3156 = vsel %vm1434, %v3148, %v3140
      %s3157 = scalar_lea.vmem %s5, 800
      %v3158 = vld [vmem:[%s3157] sm:$0xff]
      %v3159 = vld [vmem:[%s3157 + $0x8] sm:$0xff]
      %v3160 = vld [vmem:[%s3157 + $0x10] sm:$0xff]
      %v3161 = vld [vmem:[%s3157 + $0x18] sm:$0xff]
      %v3162 = vmul.f32 %v3149, %v1451
      %v3163 = vmul.f32 %v3153, %v1452
      %v3164 = vmul.f32 %v3150, %v1451
      %v3165 = vmul.f32 %v3154, %v1452
      %v3166 = vmul.f32 %v3151, %v1451
      %v3167 = vmul.f32 %v3155, %v1452
      %v3168 = vmul.f32 %v3152, %v1451
      %v3169 = vmul.f32 %v3156, %v1452
      %3171 = vset.pattern.permute.xlu0 0
      %3172 = vperm.xlu0 %3171, %v3158
      %v3173 = vpop.permute.xlu0 %3172
      %3176 = vset.pattern.permute.xlu0 0
      %3177 = vperm.xlu0 %3176, %v3159
      %v3178 = vpop.permute.xlu0 %3177
      %3181 = vset.pattern.permute.xlu0 0
      %3182 = vperm.xlu0 %3181, %v3160
      %v3183 = vpop.permute.xlu0 %3182
      %3186 = vset.pattern.permute.xlu0 0
      %3187 = vperm.xlu0 %3186, %v3161
      %v3188 = vpop.permute.xlu0 %3187
      %v3190 = vmul.f32 %v3173, %v3162
      %v3191 = vmul.f32 %v3173, %v3163
      %v3192 = vmul.f32 %v3178, %v3164
      %v3193 = vmul.f32 %v3178, %v3165
      %v3194 = vmul.f32 %v3183, %v3166
      %v3195 = vmul.f32 %v3183, %v3167
      %v3196 = vmul.f32 %v3188, %v3168
      %v3197 = vmul.f32 %v3188, %v3169
      %v3198 = vadd.f32 %v3125, %v3190
      %v3199 = vadd.f32 %v3126, %v3191
      %v3200 = vadd.f32 %v3127, %v3192
      %v3201 = vadd.f32 %v3128, %v3193
      %v3202 = vadd.f32 %v3129, %v3194
      %v3203 = vadd.f32 %v3130, %v3195
      %v3204 = vadd.f32 %v3131, %v3196
      %v3205 = vadd.f32 %v3132, %v3197
      %3206 = vrot.lane.b32.xlu0 %v2654, 111
      %v3207 = vpop.permute.xlu0 %3206
      %3208 = vrot.lane.b32.xlu0 %v2656, 111
      %v3209 = vpop.permute.xlu0 %3208
      %3210 = vrot.lane.b32.xlu0 %v2658, 111
      %v3211 = vpop.permute.xlu0 %3210
      %3212 = vrot.lane.b32.xlu0 %v2660, 111
      %v3213 = vpop.permute.xlu0 %3212
      %3214 = vrot.lane.b32.xlu0 %v2655, 111
      %v3215 = vpop.permute.xlu0 %3214
      %3216 = vrot.lane.b32.xlu0 %v2657, 111
      %v3217 = vpop.permute.xlu0 %3216
      %3218 = vrot.lane.b32.xlu0 %v2659, 111
      %v3219 = vpop.permute.xlu0 %3218
      %3220 = vrot.lane.b32.xlu0 %v2661, 111
      %v3221 = vpop.permute.xlu0 %3220
      %v3222 = vsel %vm1515, %v3207, %v3215
      %v3223 = vsel %vm1515, %v3209, %v3217
      %v3224 = vsel %vm1515, %v3211, %v3219
      %v3225 = vsel %vm1515, %v3213, %v3221
      %v3226 = vsel %vm1515, %v3215, %v3207
      %v3227 = vsel %vm1515, %v3217, %v3209
      %v3228 = vsel %vm1515, %v3219, %v3211
      %v3229 = vsel %vm1515, %v3221, %v3213
      %s3230 = scalar_lea.vmem %s5, 832
      %v3231 = vld [vmem:[%s3230] sm:$0xff]
      %v3232 = vld [vmem:[%s3230 + $0x8] sm:$0xff]
      %v3233 = vld [vmem:[%s3230 + $0x10] sm:$0xff]
      %v3234 = vld [vmem:[%s3230 + $0x18] sm:$0xff]
      %v3235 = vmul.f32 %v3222, %v1532
      %v3236 = vmul.f32 %v3226, %v1533
      %v3237 = vmul.f32 %v3223, %v1532
      %v3238 = vmul.f32 %v3227, %v1533
      %v3239 = vmul.f32 %v3224, %v1532
      %v3240 = vmul.f32 %v3228, %v1533
      %v3241 = vmul.f32 %v3225, %v1532
      %v3242 = vmul.f32 %v3229, %v1533
      %3244 = vset.pattern.permute.xlu0 0
      %3245 = vperm.xlu0 %3244, %v3231
      %v3246 = vpop.permute.xlu0 %3245
      %3249 = vset.pattern.permute.xlu0 0
      %3250 = vperm.xlu0 %3249, %v3232
      %v3251 = vpop.permute.xlu0 %3250
      %3254 = vset.pattern.permute.xlu0 0
      %3255 = vperm.xlu0 %3254, %v3233
      %v3256 = vpop.permute.xlu0 %3255
      %3259 = vset.pattern.permute.xlu0 0
      %3260 = vperm.xlu0 %3259, %v3234
      %v3261 = vpop.permute.xlu0 %3260
      %v3263 = vmul.f32 %v3246, %v3235
      %v3264 = vmul.f32 %v3246, %v3236
      %v3265 = vmul.f32 %v3251, %v3237
      %v3266 = vmul.f32 %v3251, %v3238
      %v3267 = vmul.f32 %v3256, %v3239
      %v3268 = vmul.f32 %v3256, %v3240
      %v3269 = vmul.f32 %v3261, %v3241
      %v3270 = vmul.f32 %v3261, %v3242
      %v3271 = vadd.f32 %v3198, %v3263
      %v3272 = vadd.f32 %v3199, %v3264
      %v3273 = vadd.f32 %v3200, %v3265
      %v3274 = vadd.f32 %v3201, %v3266
      %v3275 = vadd.f32 %v3202, %v3267
      %v3276 = vadd.f32 %v3203, %v3268
      %v3277 = vadd.f32 %v3204, %v3269
      %v3278 = vadd.f32 %v3205, %v3270
      %s3279 = scalar_lea.vmem %s6, 64
      %v3280 = vld [vmem:[%s3279] sm:$0xff]
      %v3281 = vld [vmem:[%s3279 + $0x8] sm:$0xff]
      %v3282 = vld [vmem:[%s3279 + $0x10] sm:$0xff]
      %v3283 = vld [vmem:[%s3279 + $0x18] sm:$0xff]
      %3285 = vset.pattern.permute.xlu0 0
      %3286 = vperm.xlu0 %3285, %v3280
      %v3287 = vpop.permute.xlu0 %3286
      %3290 = vset.pattern.permute.xlu0 0
      %3291 = vperm.xlu0 %3290, %v3281
      %v3292 = vpop.permute.xlu0 %3291
      %3295 = vset.pattern.permute.xlu0 0
      %3296 = vperm.xlu0 %3295, %v3282
      %v3297 = vpop.permute.xlu0 %3296
      %3300 = vset.pattern.permute.xlu0 0
      %3301 = vperm.xlu0 %3300, %v3283
      %v3302 = vpop.permute.xlu0 %3301
      %v3304 = vadd.f32 %v3271, %v3287
      %v3305 = vadd.f32 %v3272, %v3287
      %v3306 = vadd.f32 %v3273, %v3292
      %v3307 = vadd.f32 %v3274, %v3292
      %v3308 = vadd.f32 %v3275, %v3297
      %v3309 = vadd.f32 %v3276, %v3297
      %v3310 = vadd.f32 %v3277, %v3302
      %v3311 = vadd.f32 %v3278, %v3302
      %v3312 = vmax.f32 %v3304, 0.0
      %v3313 = vmax.f32 %v3305, 0.0
      %v3314 = vmax.f32 %v3306, 0.0
      %v3315 = vmax.f32 %v3307, 0.0
      %v3316 = vmax.f32 %v3308, 0.0
      %v3317 = vmax.f32 %v3309, 0.0
      %v3318 = vmax.f32 %v3310, 0.0
      %v3319 = vmax.f32 %v3311, 0.0
      %v3320 = vadd.f32 %v2654, %v3312
      %v3321 = vadd.f32 %v2655, %v3313
      %v3322 = vadd.f32 %v2656, %v3314
      %v3323 = vadd.f32 %v2657, %v3315
      %v3324 = vadd.f32 %v2658, %v3316
      %v3325 = vadd.f32 %v2659, %v3317
      %v3326 = vadd.f32 %v2660, %v3318
      %v3327 = vadd.f32 %v2661, %v3319
      %s3328 = scalar_lea.vmem %s3, 96
      %v3329 = vld [vmem:[%s3328] sm:$0xff]
      %v3330 = vld [vmem:[%s3328 + $0x8] sm:$0xff]
      %v3331 = vld [vmem:[%s3328 + $0x10] sm:$0xff]
      %v3332 = vld [vmem:[%s3328 + $0x18] sm:$0xff]
      %v3334 = vsel %vm820, %v3329, 0
      %v3337 = vsel %vm820, %v3330, 0
      %v3340 = vsel %vm820, %v3331, 0
      %v3343 = vsel %vm820, %v3332, 0
      %3345 = vmatpush.msra.mxu0 0.0
      %3346 = vmatpush.msra.mxu0 0.0
      %3347 = vmatpush.msra.mxu0 0.0
      %3348 = vmatpush.msra.mxu0 0.0
      %3349 = vmatpush.msra.mxu0 0.0
      %3350 = vmatpush.msra.mxu0 0.0
      %3351 = vmatpush.msra.mxu0 0.0
      %3352 = vmatpush.msra.mxu0 0.0
      %3353 = vmatpush.msra.mxu0 0.0
      %3354 = vmatpush.msra.mxu0 0.0
      %3355 = vmatpush.msra.mxu0 0.0
      %3356 = vmatpush.msra.mxu0 0.0
      %3357 = vmatpush.msra.mxu0 %v3326
      %3358 = vmatpush.msra.mxu0 %v3324
      %3359 = vmatpush.msra.mxu0 %v3322
      %3360 = vmatpush.msra.mxu0 %v3320
      %3361 = vmatmul.f32.gmra.mxu0 %v3334
      %v3362 = vpop.f32.mrf.mxu0
      %v3363 = vadd.f32 0.0, %v3362
      %3364 = vmatmul.f32.gmra.mxu0 %v3337
      %v3365 = vpop.f32.mrf.mxu0
      %v3366 = vadd.f32 0.0, %v3365
      %3367 = vmatmul.f32.gmra.mxu0 %v3340
      %v3368 = vpop.f32.mrf.mxu0
      %v3369 = vadd.f32 0.0, %v3368
      %3370 = vmatmul.f32.gmra.mxu0 %v3343
      %v3371 = vpop.f32.mrf.mxu0
      %v3372 = vadd.f32 0.0, %v3371
      %3373 = vdwg.mxu0
      %3374 = vmatpush.msra.mxu0 0.0
      %3375 = vmatpush.msra.mxu0 0.0
      %3376 = vmatpush.msra.mxu0 0.0
      %3377 = vmatpush.msra.mxu0 0.0
      %3378 = vmatpush.msra.mxu0 0.0
      %3379 = vmatpush.msra.mxu0 0.0
      %3380 = vmatpush.msra.mxu0 0.0
      %3381 = vmatpush.msra.mxu0 0.0
      %3382 = vmatpush.msra.mxu0 0.0
      %3383 = vmatpush.msra.mxu0 0.0
      %3384 = vmatpush.msra.mxu0 0.0
      %3385 = vmatpush.msra.mxu0 0.0
      %3386 = vmatpush.msra.mxu0 %v3327
      %3387 = vmatpush.msra.mxu0 %v3325
      %3388 = vmatpush.msra.mxu0 %v3323
      %3389 = vmatpush.msra.mxu0 %v3321
      %3390 = vmatmul.f32.gmra.mxu0 %v3334
      %v3391 = vpop.f32.mrf.mxu0
      %v3392 = vadd.f32 0.0, %v3391
      %3393 = vmatmul.f32.gmra.mxu0 %v3337
      %v3394 = vpop.f32.mrf.mxu0
      %v3395 = vadd.f32 0.0, %v3394
      %3396 = vmatmul.f32.gmra.mxu0 %v3340
      %v3397 = vpop.f32.mrf.mxu0
      %v3398 = vadd.f32 0.0, %v3397
      %3399 = vmatmul.f32.gmra.mxu0 %v3343
      %v3400 = vpop.f32.mrf.mxu0
      %v3401 = vadd.f32 0.0, %v3400
      %3402 = vdwg.mxu0
      %v3403 = vmax.f32 %v3363, 0.0
      %v3404 = vmax.f32 %v3392, 0.0
      %v3405 = vmax.f32 %v3366, 0.0
      %v3406 = vmax.f32 %v3395, 0.0
      %v3407 = vmax.f32 %v3369, 0.0
      %v3408 = vmax.f32 %v3398, 0.0
      %v3409 = vmax.f32 %v3372, 0.0
      %v3410 = vmax.f32 %v3401, 0.0
      %v3411 = vsub.f32 0.0, %v3403
      %v3412 = vsub.f32 0.0, %v3404
      %v3413 = vsub.f32 0.0, %v3405
      %v3414 = vsub.f32 0.0, %v3406
      %v3415 = vsub.f32 0.0, %v3407
      %v3416 = vsub.f32 0.0, %v3408
      %v3417 = vsub.f32 0.0, %v3409
      %v3418 = vsub.f32 0.0, %v3410
      %v3419 = vmul.f32 %v3411, 1.442695
      %v3420 = vpow.pop %v3419
      %v3421 = vmul.f32 %v3412, 1.442695
      %v3422 = vpow.pop %v3421
      %v3423 = vmul.f32 %v3413, 1.442695
      %v3424 = vpow.pop %v3423
      %v3425 = vmul.f32 %v3414, 1.442695
      %v3426 = vpow.pop %v3425
      %v3427 = vmul.f32 %v3415, 1.442695
      %v3428 = vpow.pop %v3427
      %v3429 = vmul.f32 %v3416, 1.442695
      %v3430 = vpow.pop %v3429
      %v3431 = vmul.f32 %v3417, 1.442695
      %v3432 = vpow.pop %v3431
      %v3433 = vmul.f32 %v3418, 1.442695
      %v3434 = vpow.pop %v3433
      %v3435 = vadd.f32 %v3420, 1.0
      %v3436 = vadd.f32 %v3422, 1.0
      %v3437 = vadd.f32 %v3424, 1.0
      %v3438 = vadd.f32 %v3426, 1.0
      %v3439 = vadd.f32 %v3428, 1.0
      %v3440 = vadd.f32 %v3430, 1.0
      %v3441 = vadd.f32 %v3432, 1.0
      %v3442 = vadd.f32 %v3434, 1.0
      %v3443 = vrcp.pop %v3435
      %v3444 = vmul.f32 %v3435, %v3443
      %v3445 = vsub.f32 1.0, %v3444
      %v3446 = vmul.f32 %v3443, %v3445
      %v3447 = vadd.f32 %v3443, %v3446
      %vm3448 = vweird.f32 %v3435
      %vm3449 = vweird.f32 %v3443
      %vm3450 = vmor %vm3448, %vm3449
      %v3451 = vsel %vm3450, %v3443, %v3447
      %v3452 = vand.u32 2147483647, %v3435
      %vm3453 = vcmp.eq.f32.partialorder %v3452, 8.507059e+37
      %v3454 = vand.u32 %v3435, 2147483648
      %v3455 = vor.u32 1.1754944e-38, %v3454
      %v3456 = vsel %vm3453, %v3455, %v3451
      %v3457 = vmul.f32 1.0, %v3456
      %v3458 = vrcp.pop %v3436
      %v3459 = vmul.f32 %v3436, %v3458
      %v3460 = vsub.f32 1.0, %v3459
      %v3461 = vmul.f32 %v3458, %v3460
      %v3462 = vadd.f32 %v3458, %v3461
      %vm3463 = vweird.f32 %v3436
      %vm3464 = vweird.f32 %v3458
      %vm3465 = vmor %vm3463, %vm3464
      %v3466 = vsel %vm3465, %v3458, %v3462
      %v3467 = vand.u32 2147483647, %v3436
      %vm3468 = vcmp.eq.f32.partialorder %v3467, 8.507059e+37
      %v3469 = vand.u32 %v3436, 2147483648
      %v3470 = vor.u32 1.1754944e-38, %v3469
      %v3471 = vsel %vm3468, %v3470, %v3466
      %v3472 = vmul.f32 1.0, %v3471
      %v3473 = vrcp.pop %v3437
      %v3474 = vmul.f32 %v3437, %v3473
      %v3475 = vsub.f32 1.0, %v3474
      %v3476 = vmul.f32 %v3473, %v3475
      %v3477 = vadd.f32 %v3473, %v3476
      %vm3478 = vweird.f32 %v3437
      %vm3479 = vweird.f32 %v3473
      %vm3480 = vmor %vm3478, %vm3479
      %v3481 = vsel %vm3480, %v3473, %v3477
      %v3482 = vand.u32 2147483647, %v3437
      %vm3483 = vcmp.eq.f32.partialorder %v3482, 8.507059e+37
      %v3484 = vand.u32 %v3437, 2147483648
      %v3485 = vor.u32 1.1754944e-38, %v3484
      %v3486 = vsel %vm3483, %v3485, %v3481
      %v3487 = vmul.f32 1.0, %v3486
      %v3488 = vrcp.pop %v3438
      %v3489 = vmul.f32 %v3438, %v3488
      %v3490 = vsub.f32 1.0, %v3489
      %v3491 = vmul.f32 %v3488, %v3490
      %v3492 = vadd.f32 %v3488, %v3491
      %vm3493 = vweird.f32 %v3438
      %vm3494 = vweird.f32 %v3488
      %vm3495 = vmor %vm3493, %vm3494
      %v3496 = vsel %vm3495, %v3488, %v3492
      %v3497 = vand.u32 2147483647, %v3438
      %vm3498 = vcmp.eq.f32.partialorder %v3497, 8.507059e+37
      %v3499 = vand.u32 %v3438, 2147483648
      %v3500 = vor.u32 1.1754944e-38, %v3499
      %v3501 = vsel %vm3498, %v3500, %v3496
      %v3502 = vmul.f32 1.0, %v3501
      %v3503 = vrcp.pop %v3439
      %v3504 = vmul.f32 %v3439, %v3503
      %v3505 = vsub.f32 1.0, %v3504
      %v3506 = vmul.f32 %v3503, %v3505
      %v3507 = vadd.f32 %v3503, %v3506
      %vm3508 = vweird.f32 %v3439
      %vm3509 = vweird.f32 %v3503
      %vm3510 = vmor %vm3508, %vm3509
      %v3511 = vsel %vm3510, %v3503, %v3507
      %v3512 = vand.u32 2147483647, %v3439
      %vm3513 = vcmp.eq.f32.partialorder %v3512, 8.507059e+37
      %v3514 = vand.u32 %v3439, 2147483648
      %v3515 = vor.u32 1.1754944e-38, %v3514
      %v3516 = vsel %vm3513, %v3515, %v3511
      %v3517 = vmul.f32 1.0, %v3516
      %v3518 = vrcp.pop %v3440
      %v3519 = vmul.f32 %v3440, %v3518
      %v3520 = vsub.f32 1.0, %v3519
      %v3521 = vmul.f32 %v3518, %v3520
      %v3522 = vadd.f32 %v3518, %v3521
      %vm3523 = vweird.f32 %v3440
      %vm3524 = vweird.f32 %v3518
      %vm3525 = vmor %vm3523, %vm3524
      %v3526 = vsel %vm3525, %v3518, %v3522
      %v3527 = vand.u32 2147483647, %v3440
      %vm3528 = vcmp.eq.f32.partialorder %v3527, 8.507059e+37
      %v3529 = vand.u32 %v3440, 2147483648
      %v3530 = vor.u32 1.1754944e-38, %v3529
      %v3531 = vsel %vm3528, %v3530, %v3526
      %v3532 = vmul.f32 1.0, %v3531
      %v3533 = vrcp.pop %v3441
      %v3534 = vmul.f32 %v3441, %v3533
      %v3535 = vsub.f32 1.0, %v3534
      %v3536 = vmul.f32 %v3533, %v3535
      %v3537 = vadd.f32 %v3533, %v3536
      %vm3538 = vweird.f32 %v3441
      %vm3539 = vweird.f32 %v3533
      %vm3540 = vmor %vm3538, %vm3539
      %v3541 = vsel %vm3540, %v3533, %v3537
      %v3542 = vand.u32 2147483647, %v3441
      %vm3543 = vcmp.eq.f32.partialorder %v3542, 8.507059e+37
      %v3544 = vand.u32 %v3441, 2147483648
      %v3545 = vor.u32 1.1754944e-38, %v3544
      %v3546 = vsel %vm3543, %v3545, %v3541
      %v3547 = vmul.f32 1.0, %v3546
      %v3548 = vrcp.pop %v3442
      %v3549 = vmul.f32 %v3442, %v3548
      %v3550 = vsub.f32 1.0, %v3549
      %v3551 = vmul.f32 %v3548, %v3550
      %v3552 = vadd.f32 %v3548, %v3551
      %vm3553 = vweird.f32 %v3442
      %vm3554 = vweird.f32 %v3548
      %vm3555 = vmor %vm3553, %vm3554
      %v3556 = vsel %vm3555, %v3548, %v3552
      %v3557 = vand.u32 2147483647, %v3442
      %vm3558 = vcmp.eq.f32.partialorder %v3557, 8.507059e+37
      %v3559 = vand.u32 %v3442, 2147483648
      %v3560 = vor.u32 1.1754944e-38, %v3559
      %v3561 = vsel %vm3558, %v3560, %v3556
      %v3562 = vmul.f32 1.0, %v3561
      %v3563 = vadd.f32 %v3457, 1.0
      %v3564 = vadd.f32 %v3472, 1.0
      %v3565 = vadd.f32 %v3487, 1.0
      %v3566 = vadd.f32 %v3502, 1.0
      %v3567 = vadd.f32 %v3517, 1.0
      %v3568 = vadd.f32 %v3532, 1.0
      %v3569 = vadd.f32 %v3547, 1.0
      %v3570 = vadd.f32 %v3562, 1.0
      %v3571 = vmul.f32 %v728, %v3563
      %v3572 = vmul.f32 %v769, %v3564
      %v3573 = vmul.f32 %v731, %v3565
      %v3574 = vmul.f32 %v772, %v3566
      %v3575 = vmul.f32 %v734, %v3567
      %v3576 = vmul.f32 %v775, %v3568
      %v3577 = vmul.f32 %v737, %v3569
      %v3578 = vmul.f32 %v778, %v3570
      %v3579 = vld [vmem:[%s8] sm:$0x1]
      %v3580 = vld [vmem:[#allocation2] sm:$0x1]
      %3582 = vset.pattern.permute.xlu0 0
      %3583 = vperm.xlu0 %3582, %v3580
      %v3584 = vpop.permute.xlu0 %3583
      %v3586 = vperm.slane %v3584, 0
      %v3588 = vsel %vm820, %v3579, 0
      %3590 = vmatpush.msra.mxu0 0.0
      %3591 = vmatpush.msra.mxu0 0.0
      %3592 = vmatpush.msra.mxu0 0.0
      %3593 = vmatpush.msra.mxu0 0.0
      %3594 = vmatpush.msra.mxu0 0.0
      %3595 = vmatpush.msra.mxu0 0.0
      %3596 = vmatpush.msra.mxu0 0.0
      %3597 = vmatpush.msra.mxu0 0.0
      %3598 = vmatpush.msra.mxu0 0.0
      %3599 = vmatpush.msra.mxu0 0.0
      %3600 = vmatpush.msra.mxu0 0.0
      %3601 = vmatpush.msra.mxu0 0.0
      %3602 = vmatpush.msra.mxu0 %v749
      %3603 = vmatpush.msra.mxu0 %v746
      %3604 = vmatpush.msra.mxu0 %v743
      %3605 = vmatpush.msra.mxu0 %v740
      %3606 = vmatmul.f32.gmra.mxu0 %v3588
      %v3607 = vpop.f32.mrf.mxu0
      %v3608 = vadd.f32 %v3586, %v3607
      %3609 = vdwg.mxu0
      %3610 = vmatpush.msra.mxu0 0.0
      %3611 = vmatpush.msra.mxu0 0.0
      %3612 = vmatpush.msra.mxu0 0.0
      %3613 = vmatpush.msra.mxu0 0.0
      %3614 = vmatpush.msra.mxu0 0.0
      %3615 = vmatpush.msra.mxu0 0.0
      %3616 = vmatpush.msra.mxu0 0.0
      %3617 = vmatpush.msra.mxu0 0.0
      %3618 = vmatpush.msra.mxu0 0.0
      %3619 = vmatpush.msra.mxu0 0.0
      %3620 = vmatpush.msra.mxu0 0.0
      %3621 = vmatpush.msra.mxu0 0.0
      %3622 = vmatpush.msra.mxu0 %v790
      %3623 = vmatpush.msra.mxu0 %v787
      %3624 = vmatpush.msra.mxu0 %v784
      %3625 = vmatpush.msra.mxu0 %v781
      %3626 = vmatmul.f32.gmra.mxu0 %v3588
      %v3627 = vpop.f32.mrf.mxu0
      %v3628 = vadd.f32 %v3586, %v3627
      %3629 = vdwg.mxu0
      %vm3630 = vcmask 1040384
      %v3631 = vsel %vm3630, %v3608, -inf
      %v3632 = vsel %vm3630, %v3628, -inf
      %v3633 = vmax.f32 %v3631, %v3632
      %3634 = vmax.xlane.f32.xlu0 %v3633
      %v3635 = vpop.xlane.xlu0 %3634
      %v3636 = vsub.f32 %v3608, %v3635
      %v3637 = vsub.f32 %v3628, %v3635
      %v3638 = vmul.f32 %v3636, 1.442695
      %v3639 = vpow.pop %v3638
      %v3640 = vmul.f32 %v3637, 1.442695
      %v3641 = vpow.pop %v3640
      %v3642 = vsel %vm3630, %v3639, 0.0
      %v3643 = vsel %vm3630, %v3641, 0.0
      %v3644 = vadd.f32 %v3642, %v3643
      %3645 = vadd.xlane.f32.xlu0 %v3644
      %v3646 = vpop.xlane.xlu0 %3645
      %v3647 = vrcp.pop %v3646
      %v3648 = vmul.f32 %v3646, %v3647
      %v3649 = vsub.f32 1.0, %v3648
      %v3650 = vmul.f32 %v3647, %v3649
      %v3651 = vadd.f32 %v3647, %v3650
      %vm3652 = vweird.f32 %v3646
      %vm3653 = vweird.f32 %v3647
      %vm3654 = vmor %vm3652, %vm3653
      %v3655 = vsel %vm3654, %v3647, %v3651
      %v3656 = vand.u32 2147483647, %v3646
      %vm3657 = vcmp.eq.f32.partialorder %v3656, 8.507059e+37
      %v3658 = vand.u32 %v3646, 2147483648
      %v3659 = vor.u32 1.1754944e-38, %v3658
      %v3660 = vsel %vm3657, %v3659, %v3655
      %v3661 = vmul.f32 %v3639, %v3660
      %v3662 = vmul.f32 %v3641, %v3660
      %v3663 = vperm.slane %v3661, 0
      %v3664 = vperm.slane %v3662, 0
      %v3665 = vmul.f32 %v740, %v3663
      %v3666 = vmul.f32 %v781, %v3664
      %v3667 = vmul.f32 %v743, %v3663
      %v3668 = vmul.f32 %v784, %v3664
      %v3669 = vmul.f32 %v746, %v3663
      %v3670 = vmul.f32 %v787, %v3664
      %v3671 = vmul.f32 %v749, %v3663
      %v3672 = vmul.f32 %v790, %v3664
      %3673 = vmatpush.msra.mxu0 1.0
      %3674 = vmatpush.msra.mxu0 1.0
      %3675 = vmatpush.msra.mxu0 1.0
      %3676 = vmatpush.msra.mxu0 1.0
      %3677 = vmatpush.msra.mxu0 1.0
      %3678 = vmatpush.msra.mxu0 1.0
      %3679 = vmatpush.msra.mxu0 1.0
      %3680 = vmatpush.msra.mxu0 1.0
      %3681 = vmatpush.msra.mxu0 1.0
      %3682 = vmatpush.msra.mxu0 1.0
      %3683 = vmatpush.msra.mxu0 1.0
      %3684 = vmatpush.msra.mxu0 1.0
      %3685 = vmatpush.msra.mxu0 1.0
      %3686 = vmatpush.msra.mxu0 1.0
      %3687 = vmatpush.msra.mxu0 1.0
      %3688 = vmatpush.msra.mxu0 1.0
      %3689 = vmatmul.f32.gmra.mxu0 %v3665
      %v3690 = vpop.f32.mrf.mxu0
      %v3691 = vadd.f32 0.0, %v3690
      %3692 = vmatmul.f32.gmra.mxu0 %v3667
      %v3693 = vpop.f32.mrf.mxu0
      %v3694 = vadd.f32 0.0, %v3693
      %3695 = vmatmul.f32.gmra.mxu0 %v3669
      %v3696 = vpop.f32.mrf.mxu0
      %v3697 = vadd.f32 0.0, %v3696
      %3698 = vmatmul.f32.gmra.mxu0 %v3671
      %v3699 = vpop.f32.mrf.mxu0
      %v3700 = vadd.f32 0.0, %v3699
      %3701 = vdwg.mxu0
      %3702 = vmatpush.msra.mxu0 1.0
      %3703 = vmatpush.msra.mxu0 1.0
      %3704 = vmatpush.msra.mxu0 1.0
      %3705 = vmatpush.msra.mxu0 1.0
      %3706 = vmatpush.msra.mxu0 1.0
      %3707 = vmatpush.msra.mxu0 1.0
      %3708 = vmatpush.msra.mxu0 1.0
      %3709 = vmatpush.msra.mxu0 1.0
      %3710 = vmatpush.msra.mxu0 1.0
      %3711 = vmatpush.msra.mxu0 1.0
      %3712 = vmatpush.msra.mxu0 1.0
      %3713 = vmatpush.msra.mxu0 1.0
      %3714 = vmatpush.msra.mxu0 1.0
      %3715 = vmatpush.msra.mxu0 1.0
      %3716 = vmatpush.msra.mxu0 1.0
      %3717 = vmatpush.msra.mxu0 1.0
      %3718 = vmatmul.f32.gmra.mxu0 %v3666
      %v3719 = vpop.f32.mrf.mxu0
      %v3720 = vadd.f32 %v3691, %v3719
      %3721 = vmatmul.f32.gmra.mxu0 %v3668
      %v3722 = vpop.f32.mrf.mxu0
      %v3723 = vadd.f32 %v3694, %v3722
      %3724 = vmatmul.f32.gmra.mxu0 %v3670
      %v3725 = vpop.f32.mrf.mxu0
      %v3726 = vadd.f32 %v3697, %v3725
      %3727 = vmatmul.f32.gmra.mxu0 %v3672
      %v3728 = vpop.f32.mrf.mxu0
      %v3729 = vadd.f32 %v3700, %v3728
      %3730 = vdwg.mxu0
      %v3731 = vld [vmem:[%s10] sm:$0xff]
      %v3732 = vld [vmem:[%s10 + $0x8] sm:$0xff]
      %v3733 = vld [vmem:[%s10 + $0x10] sm:$0xff]
      %v3734 = vld [vmem:[%s10 + $0x18] sm:$0xff]
      %v3735 = vld [vmem:[%s10 + $0x20] sm:$0xff]
      %v3736 = vld [vmem:[%s10 + $0x28] sm:$0xff]
      %v3737 = vld [vmem:[%s10 + $0x30] sm:$0xff]
      %v3738 = vld [vmem:[%s10 + $0x38] sm:$0xff]
      %v3739 = vld [vmem:[%s11] sm:$0xff]
      %v3740 = vld [vmem:[%s11 + $0x8] sm:$0xff]
      %v3741 = vld [vmem:[%s11 + $0x10] sm:$0xff]
      %v3742 = vld [vmem:[%s11 + $0x18] sm:$0xff]
      %v3743 = vld [vmem:[%s11 + $0x20] sm:$0xff]
      %v3744 = vld [vmem:[%s11 + $0x28] sm:$0xff]
      %v3745 = vld [vmem:[%s11 + $0x30] sm:$0xff]
      %v3746 = vld [vmem:[%s11 + $0x38] sm:$0xff]
      %v3748 = vsel %vm820, %v3731, 0
      %v3751 = vsel %vm820, %v3732, 0
      %v3754 = vsel %vm820, %v3733, 0
      %v3757 = vsel %vm820, %v3734, 0
      %v3760 = vsel %vm820, %v3735, 0
      %v3763 = vsel %vm820, %v3736, 0
      %v3766 = vsel %vm820, %v3737, 0
      %v3769 = vsel %vm820, %v3738, 0
      %3771 = vmatpush.msra.mxu0 0.0
      %3772 = vmatpush.msra.mxu0 0.0
      %3773 = vmatpush.msra.mxu0 0.0
      %3774 = vmatpush.msra.mxu0 0.0
      %3775 = vmatpush.msra.mxu0 0.0
      %3776 = vmatpush.msra.mxu0 0.0
      %3777 = vmatpush.msra.mxu0 0.0
      %3778 = vmatpush.msra.mxu0 0.0
      %3779 = vmatpush.msra.mxu0 0.0
      %3780 = vmatpush.msra.mxu0 0.0
      %3781 = vmatpush.msra.mxu0 0.0
      %3782 = vmatpush.msra.mxu0 0.0
      %3783 = vmatpush.msra.mxu0 %v3729
      %3784 = vmatpush.msra.mxu0 %v3726
      %3785 = vmatpush.msra.mxu0 %v3723
      %3786 = vmatpush.msra.mxu0 %v3720
      %3787 = vmatmul.f32.gmra.mxu0 %v3748
      %v3788 = vpop.f32.mrf.mxu0
      %v3789 = vadd.f32 %v3739, %v3788
      %3790 = vmatmul.f32.gmra.mxu0 %v3751
      %v3791 = vpop.f32.mrf.mxu0
      %v3792 = vadd.f32 %v3740, %v3791
      %3793 = vmatmul.f32.gmra.mxu0 %v3754
      %v3794 = vpop.f32.mrf.mxu0
      %v3795 = vadd.f32 %v3741, %v3794
      %3796 = vmatmul.f32.gmra.mxu0 %v3757
      %v3797 = vpop.f32.mrf.mxu0
      %v3798 = vadd.f32 %v3742, %v3797
      %3799 = vmatmul.f32.gmra.mxu0 %v3760
      %v3800 = vpop.f32.mrf.mxu0
      %v3801 = vadd.f32 %v3743, %v3800
      %3802 = vmatmul.f32.gmra.mxu0 %v3763
      %v3803 = vpop.f32.mrf.mxu0
      %v3804 = vadd.f32 %v3744, %v3803
      %3805 = vmatmul.f32.gmra.mxu0 %v3766
      %v3806 = vpop.f32.mrf.mxu0
      %v3807 = vadd.f32 %v3745, %v3806
      %3808 = vmatmul.f32.gmra.mxu0 %v3769
      %v3809 = vpop.f32.mrf.mxu0
      %v3810 = vadd.f32 %v3746, %v3809
      %3811 = vdwg.mxu0
      %vm3812 = vcmask 7168
      %v3813 = vsel %vm3812, %v3789, 0.0
      %v3814 = vsel %vm3812, %v3792, 0.0
      %v3815 = vadd.f32 %v3813, %v3814
      %v3816 = vsel %vm3812, %v3795, 0.0
      %v3817 = vadd.f32 %v3815, %v3816
      %v3818 = vsel %vm3812, %v3798, 0.0
      %v3819 = vadd.f32 %v3817, %v3818
      %v3820 = vsel %vm3812, %v3801, 0.0
      %v3821 = vadd.f32 %v3819, %v3820
      %v3822 = vsel %vm3812, %v3804, 0.0
      %v3823 = vadd.f32 %v3821, %v3822
      %v3824 = vsel %vm3812, %v3807, 0.0
      %v3825 = vadd.f32 %v3823, %v3824
      %v3826 = vsel %vm3812, %v3810, 0.0
      %v3827 = vadd.f32 %v3825, %v3826
      %v3828 = vrot.slane %v3827, 4
      %v3829 = vadd.f32 %v3827, %v3828
      %v3830 = vrot.slane %v3829, 2
      %v3831 = vadd.f32 %v3829, %v3830
      %v3832 = vrot.slane %v3831, 1
      %v3833 = vadd.f32 %v3831, %v3832
      %v3834 = vrcp.pop 64.0
      %v3835 = vmul.f32 64.0, %v3834
      %v3836 = vsub.f32 1.0, %v3835
      %v3837 = vmul.f32 %v3834, %v3836
      %v3838 = vadd.f32 %v3834, %v3837
      %vm3839 = vweird.f32 %v3834
      %v3840 = vsel %vm3839, %v3834, %v3838
      %v3841 = vmul.f32 %v3833, %v3840
      %v3842 = vsub.f32 %v3789, %v3841
      %v3843 = vsub.f32 %v3792, %v3841
      %v3844 = vsub.f32 %v3795, %v3841
      %v3845 = vsub.f32 %v3798, %v3841
      %v3846 = vsub.f32 %v3801, %v3841
      %v3847 = vsub.f32 %v3804, %v3841
      %v3848 = vsub.f32 %v3807, %v3841
      %v3849 = vsub.f32 %v3810, %v3841
      %v3850 = vmul.f32 %v3842, %v3842
      %v3851 = vmul.f32 %v3843, %v3843
      %v3852 = vmul.f32 %v3844, %v3844
      %v3853 = vmul.f32 %v3845, %v3845
      %v3854 = vmul.f32 %v3846, %v3846
      %v3855 = vmul.f32 %v3847, %v3847
      %v3856 = vmul.f32 %v3848, %v3848
      %v3857 = vmul.f32 %v3849, %v3849
      %v3858 = vsel %vm3812, %v3850, 0.0
      %v3859 = vsel %vm3812, %v3851, 0.0
      %v3860 = vadd.f32 %v3858, %v3859
      %v3861 = vsel %vm3812, %v3852, 0.0
      %v3862 = vadd.f32 %v3860, %v3861
      %v3863 = vsel %vm3812, %v3853, 0.0
      %v3864 = vadd.f32 %v3862, %v3863
      %v3865 = vsel %vm3812, %v3854, 0.0
      %v3866 = vadd.f32 %v3864, %v3865
      %v3867 = vsel %vm3812, %v3855, 0.0
      %v3868 = vadd.f32 %v3866, %v3867
      %v3869 = vsel %vm3812, %v3856, 0.0
      %v3870 = vadd.f32 %v3868, %v3869
      %v3871 = vsel %vm3812, %v3857, 0.0
      %v3872 = vadd.f32 %v3870, %v3871
      %v3873 = vrot.slane %v3872, 4
      %v3874 = vadd.f32 %v3872, %v3873
      %v3875 = vrot.slane %v3874, 2
      %v3876 = vadd.f32 %v3874, %v3875
      %v3877 = vrot.slane %v3876, 1
      %v3878 = vadd.f32 %v3876, %v3877
      %v3879 = vmul.f32 %v3878, %v3840
      %v3880 = vadd.f32 %v3879, 1e-05
      %v3881 = vrsqrt.pop %v3880
      %v3882 = vmul.f32 %v3881, %v3880
      %v3883 = vmul.f32 %v3882, %v3881
      %v3884 = vmul.f32 0.5, %v3883
      %v3885 = vsub.f32 1.5, %v3884
      %v3886 = vmul.f32 %v3881, %v3885
      %v3887 = vmul.f32 %v3880, %v3886
      %vm3888 = vcmp.eq.f32.partialorder %v3880, inf
      %v3889 = vsel %vm3888, %v3880, %v3887
      %vm3890 = vcmp.eq.f32.partialorder %v3880, 0.0
      %v3891 = vand.u32 %v3880, 2147483648
      %v3892 = vsel %vm3890, %v3891, %v3889
      %v3893 = vrcp.pop %v3892
      %v3894 = vmul.f32 %v3892, %v3893
      %v3895 = vsub.f32 1.0, %v3894
      %v3896 = vmul.f32 %v3893, %v3895
      %v3897 = vadd.f32 %v3893, %v3896
      %vm3898 = vweird.f32 %v3892
      %vm3899 = vweird.f32 %v3893
      %vm3900 = vmor %vm3898, %vm3899
      %v3901 = vsel %vm3900, %v3893, %v3897
      %v3902 = vand.u32 2147483647, %v3892
      %vm3903 = vcmp.eq.f32.partialorder %v3902, 8.507059e+37
      %v3904 = vand.u32 %v3892, 2147483648
      %v3905 = vor.u32 1.1754944e-38, %v3904
      %v3906 = vsel %vm3903, %v3905, %v3901
      %v3907 = vmul.f32 %v3842, %v3906
      %v3908 = vmul.f32 %v3843, %v3906
      %v3909 = vmul.f32 %v3844, %v3906
      %v3910 = vmul.f32 %v3845, %v3906
      %v3911 = vmul.f32 %v3846, %v3906
      %v3912 = vmul.f32 %v3847, %v3906
      %v3913 = vmul.f32 %v3848, %v3906
      %v3914 = vmul.f32 %v3849, %v3906
      %v3915 = vld [vmem:[%s12] sm:$0xff]
      %v3916 = vld [vmem:[%s12 + $0x8] sm:$0xff]
      %v3917 = vld [vmem:[%s12 + $0x10] sm:$0xff]
      %v3918 = vld [vmem:[%s12 + $0x18] sm:$0xff]
      %v3919 = vld [vmem:[%s12 + $0x20] sm:$0xff]
      %v3920 = vld [vmem:[%s12 + $0x28] sm:$0xff]
      %v3921 = vld [vmem:[%s12 + $0x30] sm:$0xff]
      %v3922 = vld [vmem:[%s12 + $0x38] sm:$0xff]
      %v3923 = vmul.f32 %v3907, %v3915
      %v3924 = vmul.f32 %v3908, %v3916
      %v3925 = vmul.f32 %v3909, %v3917
      %v3926 = vmul.f32 %v3910, %v3918
      %v3927 = vmul.f32 %v3911, %v3919
      %v3928 = vmul.f32 %v3912, %v3920
      %v3929 = vmul.f32 %v3913, %v3921
      %v3930 = vmul.f32 %v3914, %v3922
      %v3931 = vld [vmem:[%s13] sm:$0xff]
      %v3932 = vld [vmem:[%s13 + $0x8] sm:$0xff]
      %v3933 = vld [vmem:[%s13 + $0x10] sm:$0xff]
      %v3934 = vld [vmem:[%s13 + $0x18] sm:$0xff]
      %v3935 = vld [vmem:[%s13 + $0x20] sm:$0xff]
      %v3936 = vld [vmem:[%s13 + $0x28] sm:$0xff]
      %v3937 = vld [vmem:[%s13 + $0x30] sm:$0xff]
      %v3938 = vld [vmem:[%s13 + $0x38] sm:$0xff]
      %v3939 = vadd.f32 %v3923, %v3931
      %v3940 = vadd.f32 %v3924, %v3932
      %v3941 = vadd.f32 %v3925, %v3933
      %v3942 = vadd.f32 %v3926, %v3934
      %v3943 = vadd.f32 %v3927, %v3935
      %v3944 = vadd.f32 %v3928, %v3936
      %v3945 = vadd.f32 %v3929, %v3937
      %v3946 = vadd.f32 %v3930, %v3938
      %v3947 = vmax.f32 %v3939, 0.0
      %v3948 = vmax.f32 %v3940, 0.0
      %v3949 = vmax.f32 %v3941, 0.0
      %v3950 = vmax.f32 %v3942, 0.0
      %v3951 = vmax.f32 %v3943, 0.0
      %v3952 = vmax.f32 %v3944, 0.0
      %v3953 = vmax.f32 %v3945, 0.0
      %v3954 = vmax.f32 %v3946, 0.0
      %v3955 = vld [vmem:[%s14] sm:$0xff]
      %v3956 = vld [vmem:[%s14 + $0x8] sm:$0xff]
      %v3957 = vld [vmem:[%s14 + $0x10] sm:$0xff]
      %v3958 = vld [vmem:[%s14 + $0x18] sm:$0xff]
      %v3959 = vld [vmem:[%s15] sm:$0xff]
      %v3960 = vld [vmem:[%s15 + $0x8] sm:$0xff]
      %v3961 = vld [vmem:[%s15 + $0x10] sm:$0xff]
      %v3962 = vld [vmem:[%s15 + $0x18] sm:$0xff]
      %vm3963 = vcmask 523264
      %v3965 = vsel %vm3963, %v3955, 0
      %v3968 = vsel %vm3963, %v3956, 0
      %v3971 = vsel %vm3963, %v3957, 0
      %v3974 = vsel %vm3963, %v3958, 0
      %3976 = vmatpush.msra.mxu0 0.0
      %3977 = vmatpush.msra.mxu0 0.0
      %3978 = vmatpush.msra.mxu0 0.0
      %3979 = vmatpush.msra.mxu0 0.0
      %3980 = vmatpush.msra.mxu0 0.0
      %3981 = vmatpush.msra.mxu0 0.0
      %3982 = vmatpush.msra.mxu0 0.0
      %3983 = vmatpush.msra.mxu0 0.0
      %3984 = vmatpush.msra.mxu0 %v3954
      %3985 = vmatpush.msra.mxu0 %v3953
      %3986 = vmatpush.msra.mxu0 %v3952
      %3987 = vmatpush.msra.mxu0 %v3951
      %3988 = vmatpush.msra.mxu0 %v3950
      %3989 = vmatpush.msra.mxu0 %v3949
      %3990 = vmatpush.msra.mxu0 %v3948
      %3991 = vmatpush.msra.mxu0 %v3947
      %3992 = vmatmul.f32.gmra.mxu0 %v3965
      %v3993 = vpop.f32.mrf.mxu0
      %v3994 = vadd.f32 %v3959, %v3993
      %3995 = vmatmul.f32.gmra.mxu0 %v3968
      %v3996 = vpop.f32.mrf.mxu0
      %v3997 = vadd.f32 %v3960, %v3996
      %3998 = vmatmul.f32.gmra.mxu0 %v3971
      %v3999 = vpop.f32.mrf.mxu0
      %v4000 = vadd.f32 %v3961, %v3999
      %4001 = vmatmul.f32.gmra.mxu0 %v3974
      %v4002 = vpop.f32.mrf.mxu0
      %v4003 = vadd.f32 %v3962, %v4002
      %4004 = vdwg.mxu0
      %v4005 = vsub.f32 0.0, %v3994
      %v4006 = vsub.f32 0.0, %v3997
      %v4007 = vsub.f32 0.0, %v4000
      %v4008 = vsub.f32 0.0, %v4003
      %v4009 = vmul.f32 %v4005, 1.442695
      %v4010 = vpow.pop %v4009
      %v4011 = vmul.f32 %v4006, 1.442695
      %v4012 = vpow.pop %v4011
      %v4013 = vmul.f32 %v4007, 1.442695
      %v4014 = vpow.pop %v4013
      %v4015 = vmul.f32 %v4008, 1.442695
      %v4016 = vpow.pop %v4015
      %v4017 = vadd.f32 %v4010, 1.0
      %v4018 = vadd.f32 %v4012, 1.0
      %v4019 = vadd.f32 %v4014, 1.0
      %v4020 = vadd.f32 %v4016, 1.0
      %v4021 = vrcp.pop %v4017
      %v4022 = vmul.f32 %v4017, %v4021
      %v4023 = vsub.f32 1.0, %v4022
      %v4024 = vmul.f32 %v4021, %v4023
      %v4025 = vadd.f32 %v4021, %v4024
      %vm4026 = vweird.f32 %v4017
      %vm4027 = vweird.f32 %v4021
      %vm4028 = vmor %vm4026, %vm4027
      %v4029 = vsel %vm4028, %v4021, %v4025
      %v4030 = vand.u32 2147483647, %v4017
      %vm4031 = vcmp.eq.f32.partialorder %v4030, 8.507059e+37
      %v4032 = vand.u32 %v4017, 2147483648
      %v4033 = vor.u32 1.1754944e-38, %v4032
      %v4034 = vsel %vm4031, %v4033, %v4029
      %v4035 = vmul.f32 1.0, %v4034
      %v4036 = vrcp.pop %v4018
      %v4037 = vmul.f32 %v4018, %v4036
      %v4038 = vsub.f32 1.0, %v4037
      %v4039 = vmul.f32 %v4036, %v4038
      %v4040 = vadd.f32 %v4036, %v4039
      %vm4041 = vweird.f32 %v4018
      %vm4042 = vweird.f32 %v4036
      %vm4043 = vmor %vm4041, %vm4042
      %v4044 = vsel %vm4043, %v4036, %v4040
      %v4045 = vand.u32 2147483647, %v4018
      %vm4046 = vcmp.eq.f32.partialorder %v4045, 8.507059e+37
      %v4047 = vand.u32 %v4018, 2147483648
      %v4048 = vor.u32 1.1754944e-38, %v4047
      %v4049 = vsel %vm4046, %v4048, %v4044
      %v4050 = vmul.f32 1.0, %v4049
      %v4051 = vrcp.pop %v4019
      %v4052 = vmul.f32 %v4019, %v4051
      %v4053 = vsub.f32 1.0, %v4052
      %v4054 = vmul.f32 %v4051, %v4053
      %v4055 = vadd.f32 %v4051, %v4054
      %vm4056 = vweird.f32 %v4019
      %vm4057 = vweird.f32 %v4051
      %vm4058 = vmor %vm4056, %vm4057
      %v4059 = vsel %vm4058, %v4051, %v4055
      %v4060 = vand.u32 2147483647, %v4019
      %vm4061 = vcmp.eq.f32.partialorder %v4060, 8.507059e+37
      %v4062 = vand.u32 %v4019, 2147483648
      %v4063 = vor.u32 1.1754944e-38, %v4062
      %v4064 = vsel %vm4061, %v4063, %v4059
      %v4065 = vmul.f32 1.0, %v4064
      %v4066 = vrcp.pop %v4020
      %v4067 = vmul.f32 %v4020, %v4066
      %v4068 = vsub.f32 1.0, %v4067
      %v4069 = vmul.f32 %v4066, %v4068
      %v4070 = vadd.f32 %v4066, %v4069
      %vm4071 = vweird.f32 %v4020
      %vm4072 = vweird.f32 %v4066
      %vm4073 = vmor %vm4071, %vm4072
      %v4074 = vsel %vm4073, %v4066, %v4070
      %v4075 = vand.u32 2147483647, %v4020
      %vm4076 = vcmp.eq.f32.partialorder %v4075, 8.507059e+37
      %v4077 = vand.u32 %v4020, 2147483648
      %v4078 = vor.u32 1.1754944e-38, %v4077
      %v4079 = vsel %vm4076, %v4078, %v4074
      %v4080 = vmul.f32 1.0, %v4079
      %v4081 = vadd.f32 %v4035, 1.0
      %v4082 = vadd.f32 %v4050, 1.0
      %v4083 = vadd.f32 %v4065, 1.0
      %v4084 = vadd.f32 %v4080, 1.0
      %4086 = vset.pattern.permute.xlu0 0
      %4087 = vperm.xlu0 %4086, %v4081
      %v4088 = vpop.permute.xlu0 %4087
      %4091 = vset.pattern.permute.xlu0 0
      %4092 = vperm.xlu0 %4091, %v4082
      %v4093 = vpop.permute.xlu0 %4092
      %4096 = vset.pattern.permute.xlu0 0
      %4097 = vperm.xlu0 %4096, %v4083
      %v4098 = vpop.permute.xlu0 %4097
      %4101 = vset.pattern.permute.xlu0 0
      %4102 = vperm.xlu0 %4101, %v4084
      %v4103 = vpop.permute.xlu0 %4102
      %v4105 = vmul.f32 %v740, %v4088
      %v4106 = vmul.f32 %v781, %v4088
      %v4107 = vmul.f32 %v743, %v4093
      %v4108 = vmul.f32 %v784, %v4093
      %v4109 = vmul.f32 %v746, %v4098
      %v4110 = vmul.f32 %v787, %v4098
      %v4111 = vmul.f32 %v749, %v4103
      %v4112 = vmul.f32 %v790, %v4103
      %v4113 = vld [vmem:[%s16] sm:$0xff]
      %v4114 = vld [vmem:[%s16 + $0x8] sm:$0xff]
      %v4115 = vld [vmem:[%s16 + $0x10] sm:$0xff]
      %v4116 = vld [vmem:[%s16 + $0x18] sm:$0xff]
      %v4117 = vld [vmem:[%s17] sm:$0xff]
      %v4118 = vld [vmem:[%s17 + $0x8] sm:$0xff]
      %v4119 = vld [vmem:[%s17 + $0x10] sm:$0xff]
      %v4120 = vld [vmem:[%s17 + $0x18] sm:$0xff]
      %v4122 = vsel %vm820, %v4117, 0
      %v4125 = vsel %vm820, %v4118, 0
      %v4128 = vsel %vm820, %v4119, 0
      %v4131 = vsel %vm820, %v4120, 0
      %4133 = vmatpush.msra.mxu0 0.0
      %4134 = vmatpush.msra.mxu0 0.0
      %4135 = vmatpush.msra.mxu0 0.0
      %4136 = vmatpush.msra.mxu0 0.0
      %4137 = vmatpush.msra.mxu0 0.0
      %4138 = vmatpush.msra.mxu0 0.0
      %4139 = vmatpush.msra.mxu0 0.0
      %4140 = vmatpush.msra.mxu0 0.0
      %4141 = vmatpush.msra.mxu0 0.0
      %4142 = vmatpush.msra.mxu0 0.0
      %4143 = vmatpush.msra.mxu0 0.0
      %4144 = vmatpush.msra.mxu0 0.0
      %4145 = vmatpush.msra.mxu0 %v4111
      %4146 = vmatpush.msra.mxu0 %v4109
      %4147 = vmatpush.msra.mxu0 %v4107
      %4148 = vmatpush.msra.mxu0 %v4105
      %4149 = vmatmul.f32.gmra.mxu0 %v4122
      %v4150 = vpop.f32.mrf.mxu0
      %v4151 = vadd.f32 0.0, %v4150
      %4152 = vmatmul.f32.gmra.mxu0 %v4125
      %v4153 = vpop.f32.mrf.mxu0
      %v4154 = vadd.f32 0.0, %v4153
      %4155 = vmatmul.f32.gmra.mxu0 %v4128
      %v4156 = vpop.f32.mrf.mxu0
      %v4157 = vadd.f32 0.0, %v4156
      %4158 = vmatmul.f32.gmra.mxu0 %v4131
      %v4159 = vpop.f32.mrf.mxu0
      %v4160 = vadd.f32 0.0, %v4159
      %4161 = vdwg.mxu0
      %4162 = vmatpush.msra.mxu0 0.0
      %4163 = vmatpush.msra.mxu0 0.0
      %4164 = vmatpush.msra.mxu0 0.0
      %4165 = vmatpush.msra.mxu0 0.0
      %4166 = vmatpush.msra.mxu0 0.0
      %4167 = vmatpush.msra.mxu0 0.0
      %4168 = vmatpush.msra.mxu0 0.0
      %4169 = vmatpush.msra.mxu0 0.0
      %4170 = vmatpush.msra.mxu0 0.0
      %4171 = vmatpush.msra.mxu0 0.0
      %4172 = vmatpush.msra.mxu0 0.0
      %4173 = vmatpush.msra.mxu0 0.0
      %4174 = vmatpush.msra.mxu0 %v4112
      %4175 = vmatpush.msra.mxu0 %v4110
      %4176 = vmatpush.msra.mxu0 %v4108
      %4177 = vmatpush.msra.mxu0 %v4106
      %4178 = vmatmul.f32.gmra.mxu0 %v4122
      %v4179 = vpop.f32.mrf.mxu0
      %v4180 = vadd.f32 0.0, %v4179
      %4181 = vmatmul.f32.gmra.mxu0 %v4125
      %v4182 = vpop.f32.mrf.mxu0
      %v4183 = vadd.f32 0.0, %v4182
      %4184 = vmatmul.f32.gmra.mxu0 %v4128
      %v4185 = vpop.f32.mrf.mxu0
      %v4186 = vadd.f32 0.0, %v4185
      %4187 = vmatmul.f32.gmra.mxu0 %v4131
      %v4188 = vpop.f32.mrf.mxu0
      %v4189 = vadd.f32 0.0, %v4188
      %4190 = vdwg.mxu0
      %v4192 = vsel %vm820, %v4113, 0
      %v4195 = vsel %vm820, %v4114, 0
      %v4198 = vsel %vm820, %v4115, 0
      %v4201 = vsel %vm820, %v4116, 0
      %4203 = vmatpush.msra.mxu0 0.0
      %4204 = vmatpush.msra.mxu0 0.0
      %4205 = vmatpush.msra.mxu0 0.0
      %4206 = vmatpush.msra.mxu0 0.0
      %4207 = vmatpush.msra.mxu0 0.0
      %4208 = vmatpush.msra.mxu0 0.0
      %4209 = vmatpush.msra.mxu0 0.0
      %4210 = vmatpush.msra.mxu0 0.0
      %4211 = vmatpush.msra.mxu0 0.0
      %4212 = vmatpush.msra.mxu0 0.0
      %4213 = vmatpush.msra.mxu0 0.0
      %4214 = vmatpush.msra.mxu0 0.0
      %4215 = vmatpush.msra.mxu0 %v3577
      %4216 = vmatpush.msra.mxu0 %v3575
      %4217 = vmatpush.msra.mxu0 %v3573
      %4218 = vmatpush.msra.mxu0 %v3571
      %4219 = vmatmul.f32.gmra.mxu0 %v4192
      %v4220 = vpop.f32.mrf.mxu0
      %v4221 = vadd.f32 %v4151, %v4220
      %4222 = vmatmul.f32.gmra.mxu0 %v4195
      %v4223 = vpop.f32.mrf.mxu0
      %v4224 = vadd.f32 %v4154, %v4223
      %4225 = vmatmul.f32.gmra.mxu0 %v4198
      %v4226 = vpop.f32.mrf.mxu0
      %v4227 = vadd.f32 %v4157, %v4226
      %4228 = vmatmul.f32.gmra.mxu0 %v4201
      %v4229 = vpop.f32.mrf.mxu0
      %v4230 = vadd.f32 %v4160, %v4229
      %4231 = vdwg.mxu0
      %4232 = vmatpush.msra.mxu0 0.0
      %4233 = vmatpush.msra.mxu0 0.0
      %4234 = vmatpush.msra.mxu0 0.0
      %4235 = vmatpush.msra.mxu0 0.0
      %4236 = vmatpush.msra.mxu0 0.0
      %4237 = vmatpush.msra.mxu0 0.0
      %4238 = vmatpush.msra.mxu0 0.0
      %4239 = vmatpush.msra.mxu0 0.0
      %4240 = vmatpush.msra.mxu0 0.0
      %4241 = vmatpush.msra.mxu0 0.0
      %4242 = vmatpush.msra.mxu0 0.0
      %4243 = vmatpush.msra.mxu0 0.0
      %4244 = vmatpush.msra.mxu0 %v3578
      %4245 = vmatpush.msra.mxu0 %v3576
      %4246 = vmatpush.msra.mxu0 %v3574
      %4247 = vmatpush.msra.mxu0 %v3572
      %4248 = vmatmul.f32.gmra.mxu0 %v4192
      %v4249 = vpop.f32.mrf.mxu0
      %v4250 = vadd.f32 %v4180, %v4249
      %4251 = vmatmul.f32.gmra.mxu0 %v4195
      %v4252 = vpop.f32.mrf.mxu0
      %v4253 = vadd.f32 %v4183, %v4252
      %4254 = vmatmul.f32.gmra.mxu0 %v4198
      %v4255 = vpop.f32.mrf.mxu0
      %v4256 = vadd.f32 %v4186, %v4255
      %4257 = vmatmul.f32.gmra.mxu0 %v4201
      %v4258 = vpop.f32.mrf.mxu0
      %v4259 = vadd.f32 %v4189, %v4258
      %4260 = vdwg.mxu0
      %v4261 = vld [vmem:[%s18] sm:$0xff]
      %v4262 = vld [vmem:[%s18 + $0x8] sm:$0xff]
      %v4263 = vld [vmem:[%s18 + $0x10] sm:$0xff]
      %v4264 = vld [vmem:[%s18 + $0x18] sm:$0xff]
      %4266 = vset.pattern.permute.xlu0 0
      %4267 = vperm.xlu0 %4266, %v4261
      %v4268 = vpop.permute.xlu0 %4267
      %4271 = vset.pattern.permute.xlu0 0
      %4272 = vperm.xlu0 %4271, %v4262
      %v4273 = vpop.permute.xlu0 %4272
      %4276 = vset.pattern.permute.xlu0 0
      %4277 = vperm.xlu0 %4276, %v4263
      %v4278 = vpop.permute.xlu0 %4277
      %4281 = vset.pattern.permute.xlu0 0
      %4282 = vperm.xlu0 %4281, %v4264
      %v4283 = vpop.permute.xlu0 %4282
      %v4285 = vadd.f32 %v4221, %v4268
      %v4286 = vadd.f32 %v4250, %v4268
      %v4287 = vadd.f32 %v4224, %v4273
      %v4288 = vadd.f32 %v4253, %v4273
      %v4289 = vadd.f32 %v4227, %v4278
      %v4290 = vadd.f32 %v4256, %v4278
      %v4291 = vadd.f32 %v4230, %v4283
      %v4292 = vadd.f32 %v4259, %v4283
      %v4293 = vmax.f32 %v4285, 0.0
      %v4294 = vmax.f32 %v4286, 0.0
      %v4295 = vmax.f32 %v4287, 0.0
      %v4296 = vmax.f32 %v4288, 0.0
      %v4297 = vmax.f32 %v4289, 0.0
      %v4298 = vmax.f32 %v4290, 0.0
      %v4299 = vmax.f32 %v4291, 0.0
      %v4300 = vmax.f32 %v4292, 0.0
      %4301 = vst [vmem:[%s604] sm:$0xff] %v4293
      %4302 = vst [vmem:[%s604 + $0x8] sm:$0xff] %v4294
      %4303 = vst [vmem:[%s604 + $0x10] sm:$0xff] %v4295
      %4304 = vst [vmem:[%s604 + $0x18] sm:$0xff] %v4296
      %4305 = vst [vmem:[%s604 + $0x20] sm:$0xff] %v4297
      %4306 = vst [vmem:[%s604 + $0x28] sm:$0xff] %v4298
      %4307 = vst [vmem:[%s604 + $0x30] sm:$0xff] %v4299
      %4308 = vst [vmem:[%s604 + $0x38] sm:$0xff] %v4300
      %p4309 = scmp.lt.s32.totalorder %s32, 1
      %s4310 = scalar_select %p4309, %s32, 1
      %s4311 = smul.addr %s4310, 8
      %s4312 = smul.addr %s4311, 8
      %s4313 = scalar_lea.vmem %s19, %s4312
      // Predicated region
      $region97: #{glsa_forward.1} parent=95 // pred_check
        %p4314 = pneg %p454
      $region98: #{glsa_forward.1} parent=95 // pred_check_branch
        %4316 = sbr.rel (%p4314) target = $region100
      $region99: #{glsa_forward.1} parent=95 // pred_region
        _
      $region100: #{glsa_forward.1} parent=95 // pred_fallthru
        _
    $region96: #{glsa_forward.1} parent=5 // pred_fallthru
      _
    %p4317 = scmp.le.s32.totalorder 2, %s27
    // Predicated region
    $region101: #{glsa_forward.1} parent=5 // pred_check
      %p4318 = pneg %p4317
    $region102: #{glsa_forward.1} parent=5 // pred_check_branch
      %4320 = sbr.rel (%p4318) target = $region104
    $region103: #{glsa_forward.1} parent=5 // pred_region
      %s4321 = ssub.s32 %s27, 2
      // Predicated region
      $region105: #{glsa_forward.1} parent=103 // pred_check
        %p4322 = pneg %p460
      $region106: #{glsa_forward.1} parent=103 // pred_check_branch
        %4324 = sbr.rel (%p4322) target = $region108
      $region107: #{glsa_forward.1} parent=103 // pred_region
        %p4325 = scmp.lt.s32.totalorder %s33, 1
        %s4326 = scalar_select %p4325, %s33, 1
        %s4327 = smul.addr %s4326, 8
        %s4328 = smul.addr %s4327, 8
        %s4329 = scalar_lea.vmem %s19, %s4328
      $region108: #{glsa_forward.1} parent=103 // pred_fallthru
        _
    $region104: #{glsa_forward.1} parent=5 // pred_fallthru
      _
  $region6: #{glsa_forward.1} parent=0 // loop_footer
    %s31 = sadd.s32 1, %s27
  $region7: #{glsa_forward.1} parent=0 // loop_footer_branch
    %26 = sbr.rel target = $region3
  $region8: #{glsa_forward.1} parent=0 // loop_exit
    _

</llo_original>
